<compile_context>
chip_gen: v6e
topology: v6e:2x2x1
jax: 0.10.0
libtpu: 0.0.40
codegen_flags: <defaults>
</compile_context>

<pallas_src>
import functools

import jax
import jax.numpy as jnp
from jax.experimental import pallas as pl
from jax.experimental.pallas import tpu as pltpu


def _attn_kernel(xq_ref, xkv_ref, mask_ref, wq_ref, bq_ref, wkv_ref, bkv_ref,
                 wo_ref, bo_ref, out_ref, k_sc, v_sc, acc_ref, *,
                 heads_per_group, head_dim, approx_recip):
    """One grid step = (batch element, query tile, head group)."""
    Hc, D = heads_per_group, head_dim
    Hcd = Hc * D
    S = k_sc.shape[2]                      # k_sc: (H, D, S)
    g = pl.program_id(2)
    head0 = pl.multiple_of(g * Hc, Hc)

    # --- K/V projection for this head group: once per batch element (first
    #     query tile).  K is stored pre-transposed (head, D, S) so the per-tile
    #     score matmul needs no relayout; V stays (head, S, D). ----------------
    @pl.when(pl.program_id(1) == 0)
    def _():
        x_kv = xkv_ref[0]                                                # (S, E)
        kv = jnp.dot(x_kv, wkv_ref[g],
                     preferred_element_type=jnp.float32) + bkv_ref[g]    # (S, 2*Hcd) f32
        k = jnp.transpose(kv[:, :Hcd].reshape(S, Hc, D), (1, 0, 2))      # (Hc, S, D)
        v = jnp.transpose(kv[:, Hcd:].reshape(S, Hc, D), (1, 0, 2))      # (Hc, S, D)
        k_sc[pl.ds(head0, Hc)] = jnp.swapaxes(k, 1, 2).astype(k_sc.dtype)  # (Hc, D, S)
        v_sc[pl.ds(head0, Hc)] = v.astype(v_sc.dtype)

    # --- Q projection for this (query tile, head group); q_proj scaling is
    #     folded into Wq/bq on the host. ---------------------------------------
    x_q = xq_ref[0]                                                      # (Tq, E)
    q = jnp.dot(x_q, wq_ref[g],
                preferred_element_type=jnp.float32) + bq_ref[g]          # (Tq, Hcd) f32
    Tq = q.shape[0]
    q3 = jnp.transpose(q.reshape(Tq, Hc, D), (1, 0, 2)).astype(k_sc.dtype)  # (Hc, Tq, D)

    # --- Scores + softmax numerator (normalization deferred to the context). ---
    k_g = k_sc[pl.ds(head0, Hc)]                                         # (Hc, D, S)
    scores = jnp.einsum("htd,hds->hts", q3, k_g,
                        preferred_element_type=jnp.float32)              # (Hc, Tq, S) f32
    scores = scores + mask_ref[0, 0].astype(jnp.float32)[None, :, :]
    scores = scores - jnp.max(scores, axis=-1, keepdims=True)
    p = jnp.exp(scores)
    inv_denom = pl.reciprocal(jnp.sum(p, axis=-1, keepdims=True),
                              approx=approx_recip)                       # (Hc, Tq, 1)
    # NOTE: dropout p = 0.0 (inference), so attn_probs == attn_weights.

    v_g = v_sc[pl.ds(head0, Hc)]                                         # (Hc, S, D)
    ctx = jnp.einsum("hts,hsd->htd", p.astype(v_g.dtype), v_g,
                     preferred_element_type=jnp.float32)                 # (Hc, Tq, D) f32
    ctx = ctx * inv_denom          # deferred normalization: D << S multiplies

    # --- Output-projection contribution of this head group: per-head matmul
    #     against Wo[g, h] (no (H,Tq,D)->(Tq,E) relayout), head sum is a cheap
    #     elementwise reduce, then accumulate across groups in f32 scratch. ----
    partial = jnp.einsum("htd,hde->hte", ctx.astype(wo_ref.dtype), wo_ref[g],
                         preferred_element_type=jnp.float32)             # (Hc, Tq, E) f32
    contrib = jnp.sum(partial, axis=0)                                   # (Tq, E) f32

    @pl.when(g == 0)
    def _():
        acc_ref[...] = jnp.zeros_like(acc_ref)

    acc_ref[...] += contrib

    @pl.when(g == pl.num_programs(2) - 1)
    def _():
        out_ref[0] = (acc_ref[...] + bo_ref[...]).astype(out_ref.dtype)


def unitrec_attention(hidden_states, attention_mask, params, *, num_heads,
                      key_value_states=None, compute_dtype=jnp.bfloat16,
                      mask_dtype=jnp.bfloat16, q_tile=None, head_chunk=None):
    """UniTRecAttention forward.  params hold PyTorch-convention (out, in) weights."""
    bsz, tgt_len, embed_dim = hidden_states.shape
    head_dim = embed_dim // num_heads
    assert head_dim * num_heads == embed_dim
    scaling = head_dim ** -0.5
    out_dtype = hidden_states.dtype
    cdtype = jnp.dtype(compute_dtype)
    approx_recip = bool(cdtype != jnp.dtype(jnp.float32))

    kv_input = hidden_states if key_value_states is None else key_value_states
    src_len = kv_input.shape[1]

    if attention_mask is None:
        attention_mask = jnp.zeros((bsz, 1, tgt_len, src_len), jnp.float32)
    assert attention_mask.shape == (bsz, 1, tgt_len, src_len)

    # --- Generation-aware sizing (v5e/v6e: 128 MiB VMEM, v7x: 64 MiB). ---------
    try:
        vmem_cap = int(pltpu.get_tpu_info().vmem_capacity_bytes)
    except Exception:  # interpret mode / older jax: assume v6e-class VMEM.
        vmem_cap = 128 * 1024 * 1024
    big_vmem = vmem_cap >= (96 << 20)
    vmem_limit = max(32 << 20, min(100 << 20, (vmem_cap * 4) // 5))

    # Query tile: multiple of 8 (or the full length).
    if q_tile is None:
        q_tile = 256 if big_vmem else 128
    tq = min(q_tile, tgt_len)
    if tq != tgt_len:
        tq = max(8, (tq // 8) * 8)
    n_q = pl.cdiv(tgt_len, tq)

    # Head-group size: bound the f32 (Hc, Tq, S) score slab.
    slab_budget = (8 << 20) if big_vmem else (4 << 20)
    if head_chunk is None:
        hc_cap = max(1, slab_budget // (tq * src_len * 4))
        head_chunk = max(d for d in range(1, num_heads + 1)
                         if num_heads % d == 0 and d <= hc_cap)
    hc = min(head_chunk, num_heads)
    assert num_heads % hc == 0, "head_chunk must divide num_heads"
    n_g = num_heads // hc

    E, H, D, G = embed_dim, num_heads, head_dim, n_g
    hcd = hc * D

    # --- Host-side weight prep (torch nn.Linear: y = x @ W.T + b), grouped by
    #     head group so the kernel can index one group's slice dynamically. -----
    def group_cols(w):  # (E, E) -> (G, E, hcd): output features grouped by head group
        return jnp.transpose(w.reshape(E, G, hcd), (1, 0, 2))

    wq = group_cols(params["q_proj_w"].T * scaling).astype(cdtype)       # scaling folded in
    bq = (params["q_proj_b"].astype(jnp.float32) * scaling).reshape(G, 1, hcd)
    wk = group_cols(params["k_proj_w"].T)
    wv = group_cols(params["v_proj_w"].T)
    wkv = jnp.concatenate([wk, wv], axis=2).astype(cdtype)               # (G, E, 2*hcd)
    bkv = jnp.concatenate(                                               # k_proj: bias=False
        [jnp.zeros((G, 1, hcd), jnp.float32),
         params["v_proj_b"].astype(jnp.float32).reshape(G, 1, hcd)], axis=2)
    wo = params["out_proj_w"].T.reshape(G, hc, D, E).astype(cdtype)      # per-head rows
    bo = params["out_proj_b"].astype(jnp.float32).reshape(1, E)

    x_q = hidden_states.astype(cdtype)
    x_kv = kv_input.astype(cdtype)
    mask = attention_mask.astype(mask_dtype)       # narrow the mask HBM stream (bf16 default)

    kernel = functools.partial(_attn_kernel, heads_per_group=hc, head_dim=D,
                               approx_recip=approx_recip)

    def _build(single_buffer_consts):
        def const_spec(shape):
            idx = (0,) * len(shape)
            kwargs = ({"pipeline_mode": pl.Buffered(1)}
                      if single_buffer_consts else {})
            return pl.BlockSpec(shape, lambda b, qi, g: idx, **kwargs)

        kv_kwargs = ({"pipeline_mode": pl.Buffered(1)}
                     if single_buffer_consts else {})

        grid_spec = pltpu.PrefetchScalarGridSpec(
            num_scalar_prefetch=0,
            grid=(bsz, n_q, G),
            in_specs=[
                pl.BlockSpec((1, tq, E), lambda b, qi, g: (b, qi, 0)),         # query rows
                pl.BlockSpec((1, src_len, E), lambda b, qi, g: (b, 0, 0),      # K/V source
                             **kv_kwargs),
                pl.BlockSpec((1, 1, tq, src_len), lambda b, qi, g: (b, 0, qi, 0)),  # mask
                const_spec((G, E, hcd)),         # Wq (pre-scaled, head-grouped)
                const_spec((G, 1, hcd)),         # bq (pre-scaled)
                const_spec((G, E, 2 * hcd)),     # W[k|v]
                const_spec((G, 1, 2 * hcd)),     # b[k|v]  (k half zero: bias=False)
                const_spec((G, hc, D, E)),       # Wo, per-head (D, E) slices
                const_spec((1, E)),              # bo
            ],
            out_specs=pl.BlockSpec((1, tq, E), lambda b, qi, g: (b, qi, 0)),
            scratch_shapes=[
                pltpu.VMEM((H, D, src_len), cdtype),   # K^T scratch  (head, d, s)
                pltpu.VMEM((H, src_len, D), cdtype),   # V  scratch   (head, s, d)
                pltpu.VMEM((tq, E), jnp.float32),      # out-proj accumulator over head groups
            ],
        )
        return pl.pallas_call(
            kernel,
            out_shape=jax.ShapeDtypeStruct((bsz, tgt_len, E), out_dtype),
            grid_spec=grid_spec,
            compiler_params=pltpu.CompilerParams(
                dimension_semantics=("parallel", "arbitrary", "arbitrary"),
                vmem_limit_bytes=vmem_limit),
        )

    args = (x_q, x_kv, mask, wq, bq, wkv, bkv, wo, bo)
    try:
        return _build(True)(*args)
    except Exception:
        # Fallback for jax versions without BlockSpec(pipeline_mode=...): identical
        # kernel, constants just default-double-buffered (2x weight VMEM).
        return _build(False)(*args)


def unitrec_attention_ref(hidden_states, attention_mask, params, *, num_heads,
                          key_value_states=None):
    """Pure-JAX reference mirroring the PyTorch forward."""
    bsz, tgt_len, embed_dim = hidden_states.shape
    head_dim = embed_dim // num_heads
    scaling = head_dim ** -0.5
    kv_in = hidden_states if key_value_states is None else key_value_states
    src_len = kv_in.shape[1]

    def linear(x, w, b=None):
        y = x @ w.T
        return y if b is None else y + b

    q = linear(hidden_states, params["q_proj_w"], params["q_proj_b"]) * scaling
    k = linear(kv_in, params["k_proj_w"])
    v = linear(kv_in, params["v_proj_w"], params["v_proj_b"])

    def shape(t, length):
        return t.reshape(bsz, length, num_heads, head_dim).transpose(0, 2, 1, 3)

    q, k, v = shape(q, tgt_len), shape(k, src_len), shape(v, src_len)    # (B, H, L, D)
    scores = jnp.einsum("bhtd,bhsd->bhts", q, k)
    if attention_mask is not None:
        scores = scores + attention_mask
    probs = jax.nn.softmax(scores, axis=-1)
    ctx = jnp.einsum("bhts,bhsd->bhtd", probs, v)
    ctx = ctx.transpose(0, 2, 1, 3).reshape(bsz, tgt_len, embed_dim)
    return linear(ctx, params["out_proj_w"], params["out_proj_b"])


if __name__ == "__main__":
    key = jax.random.PRNGKey(0)
    bsz, tgt_len, embed_dim, num_heads = 2, 16, 32, 4
    cross_src_len = 24

    keys = jax.random.split(key, 12)
    params = {
        "q_proj_w": 0.05 * jax.random.normal(keys[0], (embed_dim, embed_dim), jnp.float32),
        "q_proj_b": 0.05 * jax.random.normal(keys[1], (embed_dim,), jnp.float32),
        "k_proj_w": 0.05 * jax.random.normal(keys[2], (embed_dim, embed_dim), jnp.float32),
        "v_proj_w": 0.05 * jax.random.normal(keys[3], (embed_dim, embed_dim), jnp.float32),
        "v_proj_b": 0.05 * jax.random.normal(keys[4], (embed_dim,), jnp.float32),
        "out_proj_w": 0.05 * jax.random.normal(keys[5], (embed_dim, embed_dim), jnp.float32),
        "out_proj_b": 0.05 * jax.random.normal(keys[6], (embed_dim,), jnp.float32),
    }

    hidden_states = jax.random.normal(keys[7], (bsz, tgt_len, embed_dim), jnp.float32)

    # Causal additive mask, shape (bsz, 1, tgt_len, src_len) as the PyTorch module expects.
    causal = jnp.where(
        jnp.arange(tgt_len)[:, None] >= jnp.arange(tgt_len)[None, :], 0.0, -1e9
    ).astype(jnp.float32)
    attention_mask = jnp.broadcast_to(causal, (bsz, 1, tgt_len, tgt_len))

    ref = unitrec_attention_ref(hidden_states, attention_mask, params, num_heads=num_heads)

    # 1) Default path: bf16 compute / bf16 mask stream, auto tiling.
    out = unitrec_attention(hidden_states, attention_mask, params, num_heads=num_heads)
    out = jax.block_until_ready(out)
    assert out.shape == (bsz, tgt_len, embed_dim)
    assert jnp.allclose(out, ref, atol=5e-2, rtol=5e-2), "bf16 self-attn mismatch"

    # 2) f32 exact-parity path with forced multi query-tile + multi head-group grid
    #    (exercises the cross-group output accumulation and KV-scratch reuse).
    out_tiled = unitrec_attention(
        hidden_states, attention_mask, params, num_heads=num_heads,
        compute_dtype=jnp.float32, mask_dtype=jnp.float32, q_tile=8, head_chunk=2)
    out_tiled = jax.block_until_ready(out_tiled)
    assert jnp.allclose(out_tiled, ref, atol=5e-3, rtol=5e-3), "f32 tiled self-attn mismatch"

    # 3) Cross-attention (key_value_states provided, src_len != tgt_len), bf16, tiled.
    kv_states = jax.random.normal(keys[8], (bsz, cross_src_len, embed_dim), jnp.float32)
    cross_mask = jnp.zeros((bsz, 1, tgt_len, cross_src_len), jnp.float32)
    out_x = unitrec_attention(hidden_states, cross_mask, params, num_heads=num_heads,
                              key_value_states=kv_states, q_tile=8, head_chunk=2)
    out_x = jax.block_until_ready(out_x)
    ref_x = unitrec_attention_ref(hidden_states, cross_mask, params, num_heads=num_heads,
                                  key_value_states=kv_states)
    assert jnp.allclose(out_x, ref_x, atol=5e-2, rtol=5e-2), "cross-attn mismatch"

    print("KERNEL_OK")
</pallas_src>

<mosaic_0001>
module attributes {stable_mosaic.version = 11 : i64} {
  func.func @_attn_kernel(%arg0: i32, %arg1: i32, %arg2: i32, %arg3: memref<1x16x32xbf16, #tpu.memory_space<vmem>>, %arg4: memref<1x16x32xbf16, #tpu.memory_space<vmem>>, %arg5: memref<1x1x16x16xbf16, #tpu.memory_space<vmem>>, %arg6: memref<1x32x32xbf16, #tpu.memory_space<vmem>>, %arg7: memref<1x1x32xf32, #tpu.memory_space<vmem>>, %arg8: memref<1x32x64xbf16, #tpu.memory_space<vmem>>, %arg9: memref<1x1x64xf32, #tpu.memory_space<vmem>>, %arg10: memref<1x4x8x32xbf16, #tpu.memory_space<vmem>>, %arg11: memref<1x32xf32, #tpu.memory_space<vmem>>, %arg12: memref<1x16x32xf32, #tpu.memory_space<vmem>>, %arg13: memref<4x8x16xbf16, #tpu.memory_space<vmem>>, %arg14: memref<4x16x8xbf16, #tpu.memory_space<vmem>>, %arg15: memref<16x32xf32, #tpu.memory_space<vmem>>) attributes {dimension_semantics = [#tpu.dimension_semantics<parallel>, #tpu.dimension_semantics<arbitrary>, #tpu.dimension_semantics<arbitrary>], iteration_bounds = array<i64: 2, 1, 1>, scalar_prefetch = 0 : i64, scratch_operands = 3 : i64, tpu.core_type = #tpu.core_type<tc>, window_params = [{transform_indices = @transform_0, window_bounds = array<i64: 1, 16, 32>}, {pipeline_mode = #tpu.pipeline_mode<synchronous>, transform_indices = @transform_1, window_bounds = array<i64: 1, 16, 32>}, {transform_indices = @transform_2, window_bounds = array<i64: 1, 1, 16, 16>}, {pipeline_mode = #tpu.pipeline_mode<synchronous>, transform_indices = @transform_3, window_bounds = array<i64: 1, 32, 32>}, {pipeline_mode = #tpu.pipeline_mode<synchronous>, transform_indices = @transform_4, window_bounds = array<i64: 1, 1, 32>}, {pipeline_mode = #tpu.pipeline_mode<synchronous>, transform_indices = @transform_5, window_bounds = array<i64: 1, 32, 64>}, {pipeline_mode = #tpu.pipeline_mode<synchronous>, transform_indices = @transform_6, window_bounds = array<i64: 1, 1, 64>}, {pipeline_mode = #tpu.pipeline_mode<synchronous>, transform_indices = @transform_7, window_bounds = array<i64: 1, 4, 8, 32>}, {pipeline_mode = #tpu.pipeline_mode<synchronous>, transform_indices = @transform_8, window_bounds = array<i64: 1, 32>}, {transform_indices = @transform_9, window_bounds = array<i64: 1, 16, 32>}]} {
    %c4_i32 = arith.constant 4 : i32
    %0 = arith.muli %arg2, %c4_i32 : i32
    %1 = tpu.assume_multiple %0, 4 : i32
    %c0_i32 = arith.constant 0 : i32
    %2 = arith.cmpi eq, %arg1, %c0_i32 : i32
    %3 = arith.extui %2 : i1 to i32
    %c0_i32_0 = arith.constant 0 : i32
    %4 = arith.cmpi ne, %3, %c0_i32_0 : i32
    scf.if %4 {
      %c0_32 = arith.constant 0 : index
      %c0_33 = arith.constant 0 : index
      %c0_34 = arith.constant 0 : index
      %57 = vector.load %arg4[%c0_32, %c0_33, %c0_34] : memref<1x16x32xbf16, #tpu.memory_space<vmem>>, vector<1x16x32xbf16>
      %58 = vector.shape_cast %57 : vector<1x16x32xbf16> to vector<16x32xbf16>
      %59 = arith.index_cast %arg2 : i32 to index
      %c0_35 = arith.constant 0 : index
      %c0_36 = arith.constant 0 : index
      %60 = vector.load %arg8[%59, %c0_35, %c0_36] : memref<1x32x64xbf16, #tpu.memory_space<vmem>>, vector<1x32x64xbf16>
      %61 = vector.shape_cast %60 : vector<1x32x64xbf16> to vector<32x64xbf16>
      %cst_37 = arith.constant dense<0.000000e+00> : vector<16x64xf32>
      %62 = tpu.matmul %58, %61, %cst_37 {dimension_numbers = #tpu.dot_dimension_numbers<[1], [0], [0], [1], [0, 0, 1, 1], [], []>} : vector<16x32xbf16>, vector<32x64xbf16>, vector<16x64xf32> -> vector<16x64xf32>
      %63 = arith.index_cast %arg2 : i32 to index
      %c0_38 = arith.constant 0 : index
      %c0_39 = arith.constant 0 : index
      %64 = vector.load %arg9[%63, %c0_38, %c0_39] : memref<1x1x64xf32, #tpu.memory_space<vmem>>, vector<1x1x64xf32>
      %65 = vector.shape_cast %64 : vector<1x1x64xf32> to vector<1x64xf32>
      %66 = vector.broadcast %65 : vector<1x64xf32> to vector<16x64xf32>
      %67 = arith.addf %62, %66 : vector<16x64xf32>
      %68 = vector.extract_strided_slice %67 {offsets = [0, 0], sizes = [16, 32], strides = [1, 1]} : vector<16x64xf32> to vector<16x32xf32>
      %69 = vector.shape_cast %68 : vector<16x32xf32> to vector<16x4x8xf32>
      %70 = tpu.transpose %69, [1, 0, 2] : vector<16x4x8xf32> -> vector<4x16x8xf32>
      %71 = vector.extract_strided_slice %67 {offsets = [0, 32], sizes = [16, 32], strides = [1, 1]} : vector<16x64xf32> to vector<16x32xf32>
      %72 = vector.shape_cast %71 : vector<16x32xf32> to vector<16x4x8xf32>
      %73 = tpu.transpose %72, [1, 0, 2] : vector<16x4x8xf32> -> vector<4x16x8xf32>
      %74 = tpu.transpose %70, [0, 2, 1] : vector<4x16x8xf32> -> vector<4x8x16xf32>
      %75 = arith.truncf %74 : vector<4x8x16xf32> to vector<4x8x16xbf16>
      %76 = arith.index_cast %1 : i32 to index
      %c0_40 = arith.constant 0 : index
      %c0_41 = arith.constant 0 : index
      %77 = vector.load %arg13[%76, %c0_40, %c0_41] : memref<4x8x16xbf16, #tpu.memory_space<vmem>>, vector<4x8x16xbf16>
      tpu.vector_store %arg13[%76, %c0_40, %c0_41], %75 {strides = array<i32>} : memref<4x8x16xbf16, #tpu.memory_space<vmem>>, vector<4x8x16xbf16>,
      %78 = arith.truncf %73 : vector<4x16x8xf32> to vector<4x16x8xbf16>
      %79 = arith.index_cast %1 : i32 to index
      %c0_42 = arith.constant 0 : index
      %c0_43 = arith.constant 0 : index
      %80 = vector.load %arg14[%79, %c0_42, %c0_43] : memref<4x16x8xbf16, #tpu.memory_space<vmem>>, vector<4x16x8xbf16>
      tpu.vector_store %arg14[%79, %c0_42, %c0_43], %78 {strides = array<i32>} : memref<4x16x8xbf16, #tpu.memory_space<vmem>>, vector<4x16x8xbf16>,
    } else {
    }
    %c0 = arith.constant 0 : index
    %c0_1 = arith.constant 0 : index
    %c0_2 = arith.constant 0 : index
    %5 = vector.load %arg3[%c0, %c0_1, %c0_2] : memref<1x16x32xbf16, #tpu.memory_space<vmem>>, vector<1x16x32xbf16>
    %6 = vector.shape_cast %5 : vector<1x16x32xbf16> to vector<16x32xbf16>
    %7 = arith.index_cast %arg2 : i32 to index
    %c0_3 = arith.constant 0 : index
    %c0_4 = arith.constant 0 : index
    %8 = vector.load %arg6[%7, %c0_3, %c0_4] : memref<1x32x32xbf16, #tpu.memory_space<vmem>>, vector<1x32x32xbf16>
    %9 = vector.shape_cast %8 : vector<1x32x32xbf16> to vector<32x32xbf16>
    %cst = arith.constant dense<0.000000e+00> : vector<16x32xf32>
    %10 = tpu.matmul %6, %9, %cst {dimension_numbers = #tpu.dot_dimension_numbers<[1], [0], [0], [1], [0, 0, 1, 1], [], []>} : vector<16x32xbf16>, vector<32x32xbf16>, vector<16x32xf32> -> vector<16x32xf32>
    %11 = arith.index_cast %arg2 : i32 to index
    %c0_5 = arith.constant 0 : index
    %c0_6 = arith.constant 0 : index
    %12 = vector.load %arg7[%11, %c0_5, %c0_6] : memref<1x1x32xf32, #tpu.memory_space<vmem>>, vector<1x1x32xf32>
    %13 = vector.shape_cast %12 : vector<1x1x32xf32> to vector<1x32xf32>
    %14 = vector.broadcast %13 : vector<1x32xf32> to vector<16x32xf32>
    %15 = arith.addf %10, %14 : vector<16x32xf32>
    %16 = vector.shape_cast %15 : vector<16x32xf32> to vector<16x4x8xf32>
    %17 = tpu.transpose %16, [1, 0, 2] : vector<16x4x8xf32> -> vector<4x16x8xf32>
    %18 = arith.truncf %17 : vector<4x16x8xf32> to vector<4x16x8xbf16>
    %19 = arith.index_cast %1 : i32 to index
    %c0_7 = arith.constant 0 : index
    %c0_8 = arith.constant 0 : index
    %20 = vector.load %arg13[%19, %c0_7, %c0_8] : memref<4x8x16xbf16, #tpu.memory_space<vmem>>, vector<4x8x16xbf16>
    "tpu.trace_start"() <{level = 10 : i32, message = "htd,hds->hts"}> : () -> ()
    %cst_9 = arith.constant dense<0.000000e+00> : vector<4x16x16xf32>
    %21 = tpu.matmul %18, %20, %cst_9 {dimension_numbers = #tpu.dot_dimension_numbers<[2], [1], [1], [2], [0, 0, 0, 1, 1, 2], [0], [0]>} : vector<4x16x8xbf16>, vector<4x8x16xbf16>, vector<4x16x16xf32> -> vector<4x16x16xf32>
    "tpu.trace_stop"() : () -> ()
    %c0_10 = arith.constant 0 : index
    %c0_11 = arith.constant 0 : index
    %c0_12 = arith.constant 0 : index
    %c0_13 = arith.constant 0 : index
    %22 = vector.load %arg5[%c0_10, %c0_11, %c0_12, %c0_13] : memref<1x1x16x16xbf16, #tpu.memory_space<vmem>>, vector<1x1x16x16xbf16>
    %23 = vector.shape_cast %22 : vector<1x1x16x16xbf16> to vector<16x16xbf16>
    %24 = arith.extf %23 : vector<16x16xbf16> to vector<16x16xf32>
    %25 = vector.shape_cast %24 : vector<16x16xf32> to vector<1x16x16xf32>
    %26 = vector.broadcast %25 : vector<1x16x16xf32> to vector<4x16x16xf32>
    %27 = arith.addf %21, %26 : vector<4x16x16xf32>
    %cst_14 = arith.constant dense<0xFF800000> : vector<4x16xf32>
    %28 = vector.multi_reduction <maximumf>, %27, %cst_14 [2] : vector<4x16x16xf32> to vector<4x16xf32>
    %29 = vector.shape_cast %28 : vector<4x16xf32> to vector<4x16x1xf32>
    %30 = vector.broadcast %29 : vector<4x16x1xf32> to vector<4x16x16xf32>
    %31 = arith.subf %27, %30 : vector<4x16x16xf32>
    %32 = math.exp %31 : vector<4x16x16xf32>
    %cst_15 = arith.constant dense<0.000000e+00> : vector<4x16xf32>
    %33 = vector.multi_reduction <add>, %32, %cst_15 [2] : vector<4x16x16xf32> to vector<4x16xf32>
    %34 = vector.shape_cast %33 : vector<4x16xf32> to vector<4x16x1xf32>
    %35 = tpu.reciprocal %34 {approx = true} : vector<4x16x1xf32> -> vector<4x16x1xf32>
    %36 = arith.index_cast %1 : i32 to index
    %c0_16 = arith.constant 0 : index
    %c0_17 = arith.constant 0 : index
    %37 = vector.load %arg14[%36, %c0_16, %c0_17] : memref<4x16x8xbf16, #tpu.memory_space<vmem>>, vector<4x16x8xbf16>
    %38 = arith.truncf %32 : vector<4x16x16xf32> to vector<4x16x16xbf16>
    "tpu.trace_start"() <{level = 10 : i32, message = "hts,hsd->htd"}> : () -> ()
    %cst_18 = arith.constant dense<0.000000e+00> : vector<4x16x8xf32>
    %39 = tpu.matmul %38, %37, %cst_18 {dimension_numbers = #tpu.dot_dimension_numbers<[2], [1], [1], [2], [0, 0, 0, 1, 1, 2], [0], [0]>} : vector<4x16x16xbf16>, vector<4x16x8xbf16>, vector<4x16x8xf32> -> vector<4x16x8xf32>
    "tpu.trace_stop"() : () -> ()
    %40 = vector.broadcast %35 : vector<4x16x1xf32> to vector<4x16x8xf32>
    %41 = arith.mulf %39, %40 : vector<4x16x8xf32>
    %42 = arith.truncf %41 : vector<4x16x8xf32> to vector<4x16x8xbf16>
    %43 = arith.index_cast %arg2 : i32 to index
    %c0_19 = arith.constant 0 : index
    %c0_20 = arith.constant 0 : index
    %c0_21 = arith.constant 0 : index
    %44 = vector.load %arg10[%43, %c0_19, %c0_20, %c0_21] : memref<1x4x8x32xbf16, #tpu.memory_space<vmem>>, vector<1x4x8x32xbf16>
    %45 = vector.shape_cast %44 : vector<1x4x8x32xbf16> to vector<4x8x32xbf16>
    "tpu.trace_start"() <{level = 10 : i32, message = "htd,hde->hte"}> : () -> ()
    %cst_22 = arith.constant dense<0.000000e+00> : vector<4x16x32xf32>
    %46 = tpu.matmul %42, %45, %cst_22 {dimension_numbers = #tpu.dot_dimension_numbers<[2], [1], [1], [2], [0, 0, 0, 1, 1, 2], [0], [0]>} : vector<4x16x8xbf16>, vector<4x8x32xbf16>, vector<4x16x32xf32> -> vector<4x16x32xf32>
    "tpu.trace_stop"() : () -> ()
    %cst_23 = arith.constant dense<0.000000e+00> : vector<16x32xf32>
    %47 = vector.multi_reduction <add>, %46, %cst_23 [0] : vector<4x16x32xf32> to vector<16x32xf32>
    %c0_i32_24 = arith.constant 0 : i32
    %48 = arith.cmpi eq, %arg2, %c0_i32_24 : i32
    %49 = arith.extui %48 : i1 to i32
    %c0_i32_25 = arith.constant 0 : i32
    %50 = arith.cmpi ne, %49, %c0_i32_25 : i32
    scf.if %50 {
      %cst_32 = arith.constant 0.000000e+00 : f32
      %57 = vector.broadcast %cst_32 : f32 to vector<16x32xf32>
      %c0_33 = arith.constant 0 : index
      %c0_34 = arith.constant 0 : index
      %58 = vector.load %arg15[%c0_33, %c0_34] : memref<16x32xf32, #tpu.memory_space<vmem>>, vector<16x32xf32>
      tpu.vector_store %arg15[%c0_33, %c0_34], %57 {strides = array<i32>} : memref<16x32xf32, #tpu.memory_space<vmem>>, vector<16x32xf32>,
    } else {
    }
    %c0_26 = arith.constant 0 : index
    %c0_27 = arith.constant 0 : index
    %51 = vector.load %arg15[%c0_26, %c0_27] : memref<16x32xf32, #tpu.memory_space<vmem>>, vector<16x32xf32>
    %52 = arith.addf %51, %47 : vector<16x32xf32>
    %c0_28 = arith.constant 0 : index
    %c0_29 = arith.constant 0 : index
    %53 = vector.load %arg15[%c0_28, %c0_29] : memref<16x32xf32, #tpu.memory_space<vmem>>, vector<16x32xf32>
    tpu.vector_store %arg15[%c0_28, %c0_29], %52 {strides = array<i32>} : memref<16x32xf32, #tpu.memory_space<vmem>>, vector<16x32xf32>,
    %c0_i32_30 = arith.constant 0 : i32
    %54 = arith.cmpi eq, %arg2, %c0_i32_30 : i32
    %55 = arith.extui %54 : i1 to i32
    %c0_i32_31 = arith.constant 0 : i32
    %56 = arith.cmpi ne, %55, %c0_i32_31 : i32
    scf.if %56 {
      %c0_32 = arith.constant 0 : index
      %c0_33 = arith.constant 0 : index
      %57 = vector.load %arg15[%c0_32, %c0_33] : memref<16x32xf32, #tpu.memory_space<vmem>>, vector<16x32xf32>
      %c0_34 = arith.constant 0 : index
      %c0_35 = arith.constant 0 : index
      %58 = vector.load %arg11[%c0_34, %c0_35] : memref<1x32xf32, #tpu.memory_space<vmem>>, vector<1x32xf32>
      %59 = vector.broadcast %58 : vector<1x32xf32> to vector<16x32xf32>
      %60 = arith.addf %57, %59 : vector<16x32xf32>
      %c0_36 = arith.constant 0 : index
      %c0_37 = arith.constant 0 : index
      %c0_38 = arith.constant 0 : index
      %61 = vector.load %arg12[%c0_36, %c0_37, %c0_38] : memref<1x16x32xf32, #tpu.memory_space<vmem>>, vector<1x16x32xf32>
      %62 = vector.shape_cast %61 : vector<1x16x32xf32> to vector<16x32xf32>
      %63 = vector.shape_cast %60 : vector<16x32xf32> to vector<1x16x32xf32>
      tpu.vector_store %arg12[%c0_36, %c0_37, %c0_38], %63 {strides = array<i32>} : memref<1x16x32xf32, #tpu.memory_space<vmem>>, vector<1x16x32xf32>,
    } else {
    }
    return
  }
  func.func @transform_0(%arg0: i32, %arg1: i32, %arg2: i32) -> (i32, i32, i32) {
    %c0_i32 = arith.constant 0 : i32
    %c0_i32_0 = arith.constant 0 : i32
    return %arg0, %arg1, %c0_i32 : i32, i32, i32
  }
  func.func @transform_1(%arg0: i32, %arg1: i32, %arg2: i32) -> (i32, i32, i32) {
    %c0_i32 = arith.constant 0 : i32
    %c0_i32_0 = arith.constant 0 : i32
    %c0_i32_1 = arith.constant 0 : i32
    return %arg0, %c0_i32, %c0_i32_0 : i32, i32, i32
  }
  func.func @transform_2(%arg0: i32, %arg1: i32, %arg2: i32) -> (i32, i32, i32, i32) {
    %c0_i32 = arith.constant 0 : i32
    %c0_i32_0 = arith.constant 0 : i32
    %c0_i32_1 = arith.constant 0 : i32
    return %arg0, %c0_i32, %arg1, %c0_i32_0 : i32, i32, i32, i32
  }
  func.func @transform_3(%arg0: i32, %arg1: i32, %arg2: i32) -> (i32, i32, i32) {
    %c0_i32 = arith.constant 0 : i32
    %c0_i32_0 = arith.constant 0 : i32
    %c0_i32_1 = arith.constant 0 : i32
    %c0_i32_2 = arith.constant 0 : i32
    return %c0_i32, %c0_i32_0, %c0_i32_1 : i32, i32, i32
  }
  func.func @transform_4(%arg0: i32, %arg1: i32, %arg2: i32) -> (i32, i32, i32) {
    %c0_i32 = arith.constant 0 : i32
    %c0_i32_0 = arith.constant 0 : i32
    %c0_i32_1 = arith.constant 0 : i32
    %c0_i32_2 = arith.constant 0 : i32
    return %c0_i32, %c0_i32_0, %c0_i32_1 : i32, i32, i32
  }
  func.func @transform_5(%arg0: i32, %arg1: i32, %arg2: i32) -> (i32, i32, i32) {
    %c0_i32 = arith.constant 0 : i32
    %c0_i32_0 = arith.constant 0 : i32
    %c0_i32_1 = arith.constant 0 : i32
    %c0_i32_2 = arith.constant 0 : i32
    return %c0_i32, %c0_i32_0, %c0_i32_1 : i32, i32, i32
  }
  func.func @transform_6(%arg0: i32, %arg1: i32, %arg2: i32) -> (i32, i32, i32) {
    %c0_i32 = arith.constant 0 : i32
    %c0_i32_0 = arith.constant 0 : i32
    %c0_i32_1 = arith.constant 0 : i32
    %c0_i32_2 = arith.constant 0 : i32
    return %c0_i32, %c0_i32_0, %c0_i32_1 : i32, i32, i32
  }
  func.func @transform_7(%arg0: i32, %arg1: i32, %arg2: i32) -> (i32, i32, i32, i32) {
    %c0_i32 = arith.constant 0 : i32
    %c0_i32_0 = arith.constant 0 : i32
    %c0_i32_1 = arith.constant 0 : i32
    %c0_i32_2 = arith.constant 0 : i32
    %c0_i32_3 = arith.constant 0 : i32
    return %c0_i32, %c0_i32_0, %c0_i32_1, %c0_i32_2 : i32, i32, i32, i32
  }
  func.func @transform_8(%arg0: i32, %arg1: i32, %arg2: i32) -> (i32, i32) {
    %c0_i32 = arith.constant 0 : i32
    %c0_i32_0 = arith.constant 0 : i32
    %c0_i32_1 = arith.constant 0 : i32
    return %c0_i32, %c0_i32_0 : i32, i32
  }
  func.func @transform_9(%arg0: i32, %arg1: i32, %arg2: i32) -> (i32, i32, i32) {
    %c0_i32 = arith.constant 0 : i32
    %c0_i32_0 = arith.constant 0 : i32
    return %arg0, %arg1, %c0_i32 : i32, i32, i32
  }
}

module attributes {stable_mosaic.version = 11 : i64} {
  func.func @_attn_kernel(%arg0: i32, %arg1: i32, %arg2: i32, %arg3: memref<1x16x32xbf16, #tpu.memory_space<vmem>>, %arg4: memref<1x16x32xbf16, #tpu.memory_space<vmem>>, %arg5: memref<1x1x16x16xbf16, #tpu.memory_space<vmem>>, %arg6: memref<1x32x32xbf16, #tpu.memory_space<vmem>>, %arg7: memref<1x1x32xf32, #tpu.memory_space<vmem>>, %arg8: memref<1x32x64xbf16, #tpu.memory_space<vmem>>, %arg9: memref<1x1x64xf32, #tpu.memory_space<vmem>>, %arg10: memref<1x4x8x32xbf16, #tpu.memory_space<vmem>>, %arg11: memref<1x32xf32, #tpu.memory_space<vmem>>, %arg12: memref<1x16x32xf32, #tpu.memory_space<vmem>>, %arg13: memref<4x8x16xbf16, #tpu.memory_space<vmem>>, %arg14: memref<4x16x8xbf16, #tpu.memory_space<vmem>>, %arg15: memref<16x32xf32, #tpu.memory_space<vmem>>) attributes {dimension_semantics = [#tpu.dimension_semantics<parallel>, #tpu.dimension_semantics<arbitrary>, #tpu.dimension_semantics<arbitrary>], iteration_bounds = array<i64: 2, 1, 1>, scalar_prefetch = 0 : i64, scratch_operands = 3 : i64, tpu.core_type = #tpu.core_type<tc>, window_params = [{transform_indices = @transform_0, window_bounds = array<i64: 1, 16, 32>}, {transform_indices = @transform_1, window_bounds = array<i64: 1, 16, 32>}, {transform_indices = @transform_2, window_bounds = array<i64: 1, 1, 16, 16>}, {pipeline_mode = #tpu.pipeline_mode<synchronous>, transform_indices = @transform_3, window_bounds = array<i64: 1, 32, 32>}, {pipeline_mode = #tpu.pipeline_mode<synchronous>, transform_indices = @transform_4, window_bounds = array<i64: 1, 1, 32>}, {pipeline_mode = #tpu.pipeline_mode<synchronous>, transform_indices = @transform_5, window_bounds = array<i64: 1, 32, 64>}, {pipeline_mode = #tpu.pipeline_mode<synchronous>, transform_indices = @transform_6, window_bounds = array<i64: 1, 1, 64>}, {pipeline_mode = #tpu.pipeline_mode<synchronous>, transform_indices = @transform_7, window_bounds = array<i64: 1, 4, 8, 32>}, {pipeline_mode = #tpu.pipeline_mode<synchronous>, transform_indices = @transform_8, window_bounds = array<i64: 1, 32>}, {transform_indices = @transform_9, window_bounds = array<i64: 1, 16, 32>}]} {
    %c4_i32 = arith.constant 4 : i32
    %0 = arith.muli %arg2, %c4_i32 : i32
    %1 = tpu.assume_multiple %0, 4 : i32
    %c0_i32 = arith.constant 0 : i32
    %2 = arith.cmpi eq, %arg1, %c0_i32 : i32
    %3 = arith.extui %2 : i1 to i32
    %c0_i32_0 = arith.constant 0 : i32
    %4 = arith.cmpi ne, %3, %c0_i32_0 : i32
    scf.if %4 {
      %c0_32 = arith.constant 0 : index
      %c0_33 = arith.constant 0 : index
      %c0_34 = arith.constant 0 : index
      %57 = vector.load %arg4[%c0_32, %c0_33, %c0_34] : memref<1x16x32xbf16, #tpu.memory_space<vmem>>, vector<1x16x32xbf16>
      %58 = vector.shape_cast %57 : vector<1x16x32xbf16> to vector<16x32xbf16>
      %59 = arith.index_cast %arg2 : i32 to index
      %c0_35 = arith.constant 0 : index
      %c0_36 = arith.constant 0 : index
      %60 = vector.load %arg8[%59, %c0_35, %c0_36] : memref<1x32x64xbf16, #tpu.memory_space<vmem>>, vector<1x32x64xbf16>
      %61 = vector.shape_cast %60 : vector<1x32x64xbf16> to vector<32x64xbf16>
      %cst_37 = arith.constant dense<0.000000e+00> : vector<16x64xf32>
      %62 = tpu.matmul %58, %61, %cst_37 {dimension_numbers = #tpu.dot_dimension_numbers<[1], [0], [0], [1], [0, 0, 1, 1], [], []>} : vector<16x32xbf16>, vector<32x64xbf16>, vector<16x64xf32> -> vector<16x64xf32>
      %63 = arith.index_cast %arg2 : i32 to index
      %c0_38 = arith.constant 0 : index
      %c0_39 = arith.constant 0 : index
      %64 = vector.load %arg9[%63, %c0_38, %c0_39] : memref<1x1x64xf32, #tpu.memory_space<vmem>>, vector<1x1x64xf32>
      %65 = vector.shape_cast %64 : vector<1x1x64xf32> to vector<1x64xf32>
      %66 = vector.broadcast %65 : vector<1x64xf32> to vector<16x64xf32>
      %67 = arith.addf %62, %66 : vector<16x64xf32>
      %68 = vector.extract_strided_slice %67 {offsets = [0, 0], sizes = [16, 32], strides = [1, 1]} : vector<16x64xf32> to vector<16x32xf32>
      %69 = vector.shape_cast %68 : vector<16x32xf32> to vector<16x4x8xf32>
      %70 = tpu.transpose %69, [1, 0, 2] : vector<16x4x8xf32> -> vector<4x16x8xf32>
      %71 = vector.extract_strided_slice %67 {offsets = [0, 32], sizes = [16, 32], strides = [1, 1]} : vector<16x64xf32> to vector<16x32xf32>
      %72 = vector.shape_cast %71 : vector<16x32xf32> to vector<16x4x8xf32>
      %73 = tpu.transpose %72, [1, 0, 2] : vector<16x4x8xf32> -> vector<4x16x8xf32>
      %74 = tpu.transpose %70, [0, 2, 1] : vector<4x16x8xf32> -> vector<4x8x16xf32>
      %75 = arith.truncf %74 : vector<4x8x16xf32> to vector<4x8x16xbf16>
      %76 = arith.index_cast %1 : i32 to index
      %c0_40 = arith.constant 0 : index
      %c0_41 = arith.constant 0 : index
      %77 = vector.load %arg13[%76, %c0_40, %c0_41] : memref<4x8x16xbf16, #tpu.memory_space<vmem>>, vector<4x8x16xbf16>
      tpu.vector_store %arg13[%76, %c0_40, %c0_41], %75 {strides = array<i32>} : memref<4x8x16xbf16, #tpu.memory_space<vmem>>, vector<4x8x16xbf16>,
      %78 = arith.truncf %73 : vector<4x16x8xf32> to vector<4x16x8xbf16>
      %79 = arith.index_cast %1 : i32 to index
      %c0_42 = arith.constant 0 : index
      %c0_43 = arith.constant 0 : index
      %80 = vector.load %arg14[%79, %c0_42, %c0_43] : memref<4x16x8xbf16, #tpu.memory_space<vmem>>, vector<4x16x8xbf16>
      tpu.vector_store %arg14[%79, %c0_42, %c0_43], %78 {strides = array<i32>} : memref<4x16x8xbf16, #tpu.memory_space<vmem>>, vector<4x16x8xbf16>,
    } else {
    }
    %c0 = arith.constant 0 : index
    %c0_1 = arith.constant 0 : index
    %c0_2 = arith.constant 0 : index
    %5 = vector.load %arg3[%c0, %c0_1, %c0_2] : memref<1x16x32xbf16, #tpu.memory_space<vmem>>, vector<1x16x32xbf16>
    %6 = vector.shape_cast %5 : vector<1x16x32xbf16> to vector<16x32xbf16>
    %7 = arith.index_cast %arg2 : i32 to index
    %c0_3 = arith.constant 0 : index
    %c0_4 = arith.constant 0 : index
    %8 = vector.load %arg6[%7, %c0_3, %c0_4] : memref<1x32x32xbf16, #tpu.memory_space<vmem>>, vector<1x32x32xbf16>
    %9 = vector.shape_cast %8 : vector<1x32x32xbf16> to vector<32x32xbf16>
    %cst = arith.constant dense<0.000000e+00> : vector<16x32xf32>
    %10 = tpu.matmul %6, %9, %cst {dimension_numbers = #tpu.dot_dimension_numbers<[1], [0], [0], [1], [0, 0, 1, 1], [], []>} : vector<16x32xbf16>, vector<32x32xbf16>, vector<16x32xf32> -> vector<16x32xf32>
    %11 = arith.index_cast %arg2 : i32 to index
    %c0_5 = arith.constant 0 : index
    %c0_6 = arith.constant 0 : index
    %12 = vector.load %arg7[%11, %c0_5, %c0_6] : memref<1x1x32xf32, #tpu.memory_space<vmem>>, vector<1x1x32xf32>
    %13 = vector.shape_cast %12 : vector<1x1x32xf32> to vector<1x32xf32>
    %14 = vector.broadcast %13 : vector<1x32xf32> to vector<16x32xf32>
    %15 = arith.addf %10, %14 : vector<16x32xf32>
    %16 = vector.shape_cast %15 : vector<16x32xf32> to vector<16x4x8xf32>
    %17 = tpu.transpose %16, [1, 0, 2] : vector<16x4x8xf32> -> vector<4x16x8xf32>
    %18 = arith.truncf %17 : vector<4x16x8xf32> to vector<4x16x8xbf16>
    %19 = arith.index_cast %1 : i32 to index
    %c0_7 = arith.constant 0 : index
    %c0_8 = arith.constant 0 : index
    %20 = vector.load %arg13[%19, %c0_7, %c0_8] : memref<4x8x16xbf16, #tpu.memory_space<vmem>>, vector<4x8x16xbf16>
    "tpu.trace_start"() <{level = 10 : i32, message = "htd,hds->hts"}> : () -> ()
    %cst_9 = arith.constant dense<0.000000e+00> : vector<4x16x16xf32>
    %21 = tpu.matmul %18, %20, %cst_9 {dimension_numbers = #tpu.dot_dimension_numbers<[2], [1], [1], [2], [0, 0, 0, 1, 1, 2], [0], [0]>} : vector<4x16x8xbf16>, vector<4x8x16xbf16>, vector<4x16x16xf32> -> vector<4x16x16xf32>
    "tpu.trace_stop"() : () -> ()
    %c0_10 = arith.constant 0 : index
    %c0_11 = arith.constant 0 : index
    %c0_12 = arith.constant 0 : index
    %c0_13 = arith.constant 0 : index
    %22 = vector.load %arg5[%c0_10, %c0_11, %c0_12, %c0_13] : memref<1x1x16x16xbf16, #tpu.memory_space<vmem>>, vector<1x1x16x16xbf16>
    %23 = vector.shape_cast %22 : vector<1x1x16x16xbf16> to vector<16x16xbf16>
    %24 = arith.extf %23 : vector<16x16xbf16> to vector<16x16xf32>
    %25 = vector.shape_cast %24 : vector<16x16xf32> to vector<1x16x16xf32>
    %26 = vector.broadcast %25 : vector<1x16x16xf32> to vector<4x16x16xf32>
    %27 = arith.addf %21, %26 : vector<4x16x16xf32>
    %cst_14 = arith.constant dense<0xFF800000> : vector<4x16xf32>
    %28 = vector.multi_reduction <maximumf>, %27, %cst_14 [2] : vector<4x16x16xf32> to vector<4x16xf32>
    %29 = vector.shape_cast %28 : vector<4x16xf32> to vector<4x16x1xf32>
    %30 = vector.broadcast %29 : vector<4x16x1xf32> to vector<4x16x16xf32>
    %31 = arith.subf %27, %30 : vector<4x16x16xf32>
    %32 = math.exp %31 : vector<4x16x16xf32>
    %cst_15 = arith.constant dense<0.000000e+00> : vector<4x16xf32>
    %33 = vector.multi_reduction <add>, %32, %cst_15 [2] : vector<4x16x16xf32> to vector<4x16xf32>
    %34 = vector.shape_cast %33 : vector<4x16xf32> to vector<4x16x1xf32>
    %35 = tpu.reciprocal %34 {approx = true} : vector<4x16x1xf32> -> vector<4x16x1xf32>
    %36 = arith.index_cast %1 : i32 to index
    %c0_16 = arith.constant 0 : index
    %c0_17 = arith.constant 0 : index
    %37 = vector.load %arg14[%36, %c0_16, %c0_17] : memref<4x16x8xbf16, #tpu.memory_space<vmem>>, vector<4x16x8xbf16>
    %38 = arith.truncf %32 : vector<4x16x16xf32> to vector<4x16x16xbf16>
    "tpu.trace_start"() <{level = 10 : i32, message = "hts,hsd->htd"}> : () -> ()
    %cst_18 = arith.constant dense<0.000000e+00> : vector<4x16x8xf32>
    %39 = tpu.matmul %38, %37, %cst_18 {dimension_numbers = #tpu.dot_dimension_numbers<[2], [1], [1], [2], [0, 0, 0, 1, 1, 2], [0], [0]>} : vector<4x16x16xbf16>, vector<4x16x8xbf16>, vector<4x16x8xf32> -> vector<4x16x8xf32>
    "tpu.trace_stop"() : () -> ()
    %40 = vector.broadcast %35 : vector<4x16x1xf32> to vector<4x16x8xf32>
    %41 = arith.mulf %39, %40 : vector<4x16x8xf32>
    %42 = arith.truncf %41 : vector<4x16x8xf32> to vector<4x16x8xbf16>
    %43 = arith.index_cast %arg2 : i32 to index
    %c0_19 = arith.constant 0 : index
    %c0_20 = arith.constant 0 : index
    %c0_21 = arith.constant 0 : index
    %44 = vector.load %arg10[%43, %c0_19, %c0_20, %c0_21] : memref<1x4x8x32xbf16, #tpu.memory_space<vmem>>, vector<1x4x8x32xbf16>
    %45 = vector.shape_cast %44 : vector<1x4x8x32xbf16> to vector<4x8x32xbf16>
    "tpu.trace_start"() <{level = 10 : i32, message = "htd,hde->hte"}> : () -> ()
    %cst_22 = arith.constant dense<0.000000e+00> : vector<4x16x32xf32>
    %46 = tpu.matmul %42, %45, %cst_22 {dimension_numbers = #tpu.dot_dimension_numbers<[2], [1], [1], [2], [0, 0, 0, 1, 1, 2], [0], [0]>} : vector<4x16x8xbf16>, vector<4x8x32xbf16>, vector<4x16x32xf32> -> vector<4x16x32xf32>
    "tpu.trace_stop"() : () -> ()
    %cst_23 = arith.constant dense<0.000000e+00> : vector<16x32xf32>
    %47 = vector.multi_reduction <add>, %46, %cst_23 [0] : vector<4x16x32xf32> to vector<16x32xf32>
    %c0_i32_24 = arith.constant 0 : i32
    %48 = arith.cmpi eq, %arg2, %c0_i32_24 : i32
    %49 = arith.extui %48 : i1 to i32
    %c0_i32_25 = arith.constant 0 : i32
    %50 = arith.cmpi ne, %49, %c0_i32_25 : i32
    scf.if %50 {
      %cst_32 = arith.constant 0.000000e+00 : f32
      %57 = vector.broadcast %cst_32 : f32 to vector<16x32xf32>
      %c0_33 = arith.constant 0 : index
      %c0_34 = arith.constant 0 : index
      %58 = vector.load %arg15[%c0_33, %c0_34] : memref<16x32xf32, #tpu.memory_space<vmem>>, vector<16x32xf32>
      tpu.vector_store %arg15[%c0_33, %c0_34], %57 {strides = array<i32>} : memref<16x32xf32, #tpu.memory_space<vmem>>, vector<16x32xf32>,
    } else {
    }
    %c0_26 = arith.constant 0 : index
    %c0_27 = arith.constant 0 : index
    %51 = vector.load %arg15[%c0_26, %c0_27] : memref<16x32xf32, #tpu.memory_space<vmem>>, vector<16x32xf32>
    %52 = arith.addf %51, %47 : vector<16x32xf32>
    %c0_28 = arith.constant 0 : index
    %c0_29 = arith.constant 0 : index
    %53 = vector.load %arg15[%c0_28, %c0_29] : memref<16x32xf32, #tpu.memory_space<vmem>>, vector<16x32xf32>
    tpu.vector_store %arg15[%c0_28, %c0_29], %52 {strides = array<i32>} : memref<16x32xf32, #tpu.memory_space<vmem>>, vector<16x32xf32>,
    %c0_i32_30 = arith.constant 0 : i32
    %54 = arith.cmpi eq, %arg2, %c0_i32_30 : i32
    %55 = arith.extui %54 : i1 to i32
    %c0_i32_31 = arith.constant 0 : i32
    %56 = arith.cmpi ne, %55, %c0_i32_31 : i32
    scf.if %56 {
      %c0_32 = arith.constant 0 : index
      %c0_33 = arith.constant 0 : index
      %57 = vector.load %arg15[%c0_32, %c0_33] : memref<16x32xf32, #tpu.memory_space<vmem>>, vector<16x32xf32>
      %c0_34 = arith.constant 0 : index
      %c0_35 = arith.constant 0 : index
      %58 = vector.load %arg11[%c0_34, %c0_35] : memref<1x32xf32, #tpu.memory_space<vmem>>, vector<1x32xf32>
      %59 = vector.broadcast %58 : vector<1x32xf32> to vector<16x32xf32>
      %60 = arith.addf %57, %59 : vector<16x32xf32>
      %c0_36 = arith.constant 0 : index
      %c0_37 = arith.constant 0 : index
      %c0_38 = arith.constant 0 : index
      %61 = vector.load %arg12[%c0_36, %c0_37, %c0_38] : memref<1x16x32xf32, #tpu.memory_space<vmem>>, vector<1x16x32xf32>
      %62 = vector.shape_cast %61 : vector<1x16x32xf32> to vector<16x32xf32>
      %63 = vector.shape_cast %60 : vector<16x32xf32> to vector<1x16x32xf32>
      tpu.vector_store %arg12[%c0_36, %c0_37, %c0_38], %63 {strides = array<i32>} : memref<1x16x32xf32, #tpu.memory_space<vmem>>, vector<1x16x32xf32>,
    } else {
    }
    return
  }
  func.func @transform_0(%arg0: i32, %arg1: i32, %arg2: i32) -> (i32, i32, i32) {
    %c0_i32 = arith.constant 0 : i32
    %c0_i32_0 = arith.constant 0 : i32
    return %arg0, %arg1, %c0_i32 : i32, i32, i32
  }
  func.func @transform_1(%arg0: i32, %arg1: i32, %arg2: i32) -> (i32, i32, i32) {
    %c0_i32 = arith.constant 0 : i32
    %c0_i32_0 = arith.constant 0 : i32
    %c0_i32_1 = arith.constant 0 : i32
    return %arg0, %c0_i32, %c0_i32_0 : i32, i32, i32
  }
  func.func @transform_2(%arg0: i32, %arg1: i32, %arg2: i32) -> (i32, i32, i32, i32) {
    %c0_i32 = arith.constant 0 : i32
    %c0_i32_0 = arith.constant 0 : i32
    %c0_i32_1 = arith.constant 0 : i32
    return %arg0, %c0_i32, %arg1, %c0_i32_0 : i32, i32, i32, i32
  }
  func.func @transform_3(%arg0: i32, %arg1: i32, %arg2: i32) -> (i32, i32, i32) {
    %c0_i32 = arith.constant 0 : i32
    %c0_i32_0 = arith.constant 0 : i32
    %c0_i32_1 = arith.constant 0 : i32
    %c0_i32_2 = arith.constant 0 : i32
    return %c0_i32, %c0_i32_0, %c0_i32_1 : i32, i32, i32
  }
  func.func @transform_4(%arg0: i32, %arg1: i32, %arg2: i32) -> (i32, i32, i32) {
    %c0_i32 = arith.constant 0 : i32
    %c0_i32_0 = arith.constant 0 : i32
    %c0_i32_1 = arith.constant 0 : i32
    %c0_i32_2 = arith.constant 0 : i32
    return %c0_i32, %c0_i32_0, %c0_i32_1 : i32, i32, i32
  }
  func.func @transform_5(%arg0: i32, %arg1: i32, %arg2: i32) -> (i32, i32, i32) {
    %c0_i32 = arith.constant 0 : i32
    %c0_i32_0 = arith.constant 0 : i32
    %c0_i32_1 = arith.constant 0 : i32
    %c0_i32_2 = arith.constant 0 : i32
    return %c0_i32, %c0_i32_0, %c0_i32_1 : i32, i32, i32
  }
  func.func @transform_6(%arg0: i32, %arg1: i32, %arg2: i32) -> (i32, i32, i32) {
    %c0_i32 = arith.constant 0 : i32
    %c0_i32_0 = arith.constant 0 : i32
    %c0_i32_1 = arith.constant 0 : i32
    %c0_i32_2 = arith.constant 0 : i32
    return %c0_i32, %c0_i32_0, %c0_i32_1 : i32, i32, i32
  }
  func.func @transform_7(%arg0: i32, %arg1: i32, %arg2: i32) -> (i32, i32, i32, i32) {
    %c0_i32 = arith.constant 0 : i32
    %c0_i32_0 = arith.constant 0 : i32
    %c0_i32_1 = arith.constant 0 : i32
    %c0_i32_2 = arith.constant 0 : i32
    %c0_i32_3 = arith.constant 0 : i32
    return %c0_i32, %c0_i32_0, %c0_i32_1, %c0_i32_2 : i32, i32, i32, i32
  }
  func.func @transform_8(%arg0: i32, %arg1: i32, %arg2: i32) -> (i32, i32) {
    %c0_i32 = arith.constant 0 : i32
    %c0_i32_0 = arith.constant 0 : i32
    %c0_i32_1 = arith.constant 0 : i32
    return %c0_i32, %c0_i32_0 : i32, i32
  }
  func.func @transform_9(%arg0: i32, %arg1: i32, %arg2: i32) -> (i32, i32, i32) {
    %c0_i32 = arith.constant 0 : i32
    %c0_i32_0 = arith.constant 0 : i32
    return %arg0, %arg1, %c0_i32 : i32, i32, i32
  }
}

</mosaic_0001>

<llo_original>
// kernel: tpu_custom_call.1
$region0: #{tpu_custom_call.1}
  #allocation0 [shape = 'u32[]', space=smem, size = 0x4, offset = 0x4, fixed_abs, tag = 'smem constant byte address 0x4 - core index']
  #allocation1 [shape = 'u32[144,128]{1,0:T(1,128)}', space=vmem, size = 0x12000, scoped, tag = 'internal scratch']
  #allocation2 [shape = 'bf16[4,8,16]{2,1,0:T(8,128)(2,1)}', space=vmem, size = 0x2000, scoped, tag = 'scratch operand']
  #allocation3 [shape = 'bf16[4,16,8]{2,1,0:T(8,128)(2,1)}', space=vmem, size = 0x4000, scoped, tag = 'scratch operand']
  #allocation4 [shape = 'f32[16,32]{1,0:T(8,128)}', space=vmem, size = 0x2000, scoped, tag = 'scratch operand']
  %s0 = inlined_call_operand.hbm [shape: bf16[2,16,32], index: 0, kind: input, shape index: {}]
  %s1 = inlined_call_operand.hbm [shape: bf16[2,16,32], index: 1, kind: input, shape index: {}]
  %s2 = inlined_call_operand.hbm [shape: bf16[2,1,16,16], index: 2, kind: input, shape index: {}]
  %s3 = inlined_call_operand.hbm [shape: bf16[1,32,32], index: 3, kind: input, shape index: {}]
  %s4 = inlined_call_operand.vmem [shape: f32[1,1,32], index: 4, kind: input, shape index: {}]
  %s5 = inlined_call_operand.hbm [shape: bf16[1,32,64], index: 5, kind: input, shape index: {}]
  %s6 = inlined_call_operand.vmem [shape: f32[1,1,64], index: 6, kind: input, shape index: {}]
  %s7 = inlined_call_operand.hbm [shape: bf16[1,4,8,32], index: 7, kind: input, shape index: {}]
  %s8 = inlined_call_operand.vmem [shape: f32[1,32], index: 8, kind: input, shape index: {}]
  %s9 = inlined_call_operand.hbm [shape: f32[2,16,32], index: 9, kind: output, shape index: {}]
  %s10 = sld [smem:[#allocation0]]
  $region105: #{tpu_custom_call.1} parent=0
    _
  %s12 = ssub.s32 1, %s10
  %s13 = scalar_select 0, %s12, %s10
  $region1: #{tpu_custom_call.1} parent=0
    #allocation5 [shape = 'u8[8192]{0}', space=vmem, size = 0x2000, scoped, tag = 'input window, operand 0']
    #allocation6 [shape = 's32[2]{0}', space=sflag, size = 0x8, scoped, tag = 'scoped memory for tpu_custom_call.1']
    #allocation7 [shape = 's32[2]{0}', space=sflag, size = 0x8, scoped, tag = 'scoped memory for tpu_custom_call.1']
    #allocation8 [shape = 'u8[4096]{0}', space=vmem, size = 0x1000, scoped, tag = 'input window, operand 1, single buffered']
    #allocation9 [shape = 's32[1]{0}', space=sflag, size = 0x4, scoped, tag = 'scoped memory for tpu_custom_call.1']
    #allocation10 [shape = 'u8[8192]{0}', space=vmem, size = 0x2000, scoped, tag = 'input window, operand 2']
    #allocation11 [shape = 'u8[8192]{0}', space=vmem, size = 0x2000, scoped, tag = 'input window, operand 3, single buffered']
    #allocation12 [shape = 'u8[8192]{0}', space=vmem, size = 0x2000, scoped, tag = 'input window, operand 5, single buffered']
    #allocation13 [shape = 's32[1]{0}', space=sflag, size = 0x4, scoped, tag = 'scoped memory for tpu_custom_call.1']
    #allocation14 [shape = 'u8[8192]{0}', space=vmem, size = 0x2000, scoped, tag = 'input window, operand 7, single buffered']
    #allocation15 [shape = 'u8[16384]{0}', space=vmem, size = 0x4000, scoped, tag = 'output window, operand 0']
    %14 = vsyncpa [#allocation6], 0
    %s15 = scalar_lea.sflag [#allocation6], 1
    %16 = vsyncpa %s15, 0
    %17 = vsyncpa [#allocation9], 0
    %18 = vsyncpa [#allocation13], 0
    %19 = vsyncpa [#allocation7], 0
    %s20 = scalar_lea.sflag [#allocation7], 1
    %21 = vsyncpa %s20, 0
    loop: start=0, step=1, limit=4
    $region2: #{tpu_custom_call.1} parent=1 // loop_pre_header
      _
    $region3: #{tpu_custom_call.1} parent=1 // loop_header
      %s23 = sphi 0, %s27
      %p24 = scmp.ge.s32.totalorder %s23, 4
      %s30 = sphi 0, %s49
      %s31 = sphi 0, %s45
      %s32 = sphi 0, %s41
      %s33 = sphi 0, %s30
      %s34 = sphi 0, %s31
      %s35 = sphi 0, %s32
      %s36 = sphi 0, %s33
      %s37 = sphi 0, %s34
      %s38 = sphi 0, %s35
      %s54 = sphi 0, %s56
      %s57 = sphi 0, %s54
      %s58 = sphi 0, %s57
      %s74 = sphi 0, %s58
      %s80 = sphi 0, %s82
      %s83 = sphi 0, %s80
      %s84 = sphi 0, %s83
      %s100 = sphi 0, %s84
      %s108 = sphi 0, %s110
      %s111 = sphi 0, %s108
      %s112 = sphi 0, %s111
      %s128 = sphi 0, %s112
      %s132 = sphi 0, %s132
      %s134 = sphi 0, %s132
      %s135 = sphi 0, %s134
      %s149 = sphi 0, %s135
      %s153 = sphi 0, %s153
      %s155 = sphi 0, %s153
      %s156 = sphi 0, %s155
      %s170 = sphi 0, %s156
      %s174 = sphi 0, %s174
      %s176 = sphi 0, %s174
      %s177 = sphi 0, %s176
      %s191 = sphi 0, %s177
      %s195 = sphi 0, %s195
      %s197 = sphi 0, %s195
      %s198 = sphi 0, %s197
      %s212 = sphi 0, %s198
      %s216 = sphi 0, %s216
      %s218 = sphi 0, %s216
      %s219 = sphi 0, %s218
      %s233 = sphi 0, %s219
      %s237 = sphi 0, %s237
      %s239 = sphi 0, %s237
      %s240 = sphi 0, %s239
      %s254 = sphi 0, %s240
      %s262 = sphi 0, %s264
      %s265 = sphi 0, %s262
      %s266 = sphi 0, %s265
      %s282 = sphi 0, %s266
    $region4: #{tpu_custom_call.1} parent=1 // loop_header_branch
      %26 = sbr.rel (%p24) target = $region8
    $region5: #{tpu_custom_call.1} parent=1 // loop_body
      %s28 = ssub.s32 %s23, 1
      %s29 = ssub.s32 %s23, 2
      %s39 = sadd.s32 1, %s32
      %p40 = scmp.ge.s32.totalorder %s39, 1
      %s41 = scalar_select %p40, 0, %s39
      %s42 = sadd.s32 1, %s31
      %s43 = scalar_select %p40, %s42, %s31
      %p44 = scmp.ge.s32.totalorder %s43, 1
      %s45 = scalar_select %p44, 0, %s43
      %s46 = sadd.s32 1, %s30
      %s47 = scalar_select %p44, %s46, %s30
      %p48 = scmp.ge.s32.totalorder %s47, 2
      %s49 = scalar_select %p48, 0, %s47
      %s50 = ssub.s32 %s30, %s49
      %s51 = ssub.s32 %s31, %s45
      %s52 = sor.u32 %s50, %s51
      %p53 = scmp.eq.s32.totalorder %s52, 0
      %s55 = sadd.s32 %s54, 1
      %s56 = scalar_select %p53, %s54, %s55
      %p59 = pneg %p53
      %p60 = scmp.eq.s32.totalorder %s23, 1
      %p61 = por %p59, %p60
      %p62 = scmp.ne.s32.totalorder %s54, %s57
      %p63 = scmp.eq.s32.totalorder %s23, 0
      %p64 = por %p62, %p63
      %p65 = scmp.ne.s32.totalorder %s54, %s57
      %p66 = scmp.eq.s32.totalorder %s28, 1
      %p67 = por %p65, %p66
      %p68 = scmp.ne.s32.totalorder %s57, %s58
      %p69 = scmp.eq.s32.totalorder %s28, 0
      %p70 = por %p68, %p69
      %p71 = scmp.ne.s32.totalorder %s57, %s58
      %p72 = scmp.eq.s32.totalorder %s29, 1
      %p73 = por %p71, %p72
      %p75 = scmp.ne.s32.totalorder %s58, %s74
      %p76 = scmp.eq.s32.totalorder %s29, 0
      %p77 = por %p75, %p76
      %s78 = ssub.s32 %s30, %s49
      %p79 = scmp.eq.s32.totalorder %s78, 0
      %s81 = sadd.s32 %s80, 1
      %s82 = scalar_select %p79, %s80, %s81
      %p85 = pneg %p79
      %p86 = scmp.eq.s32.totalorder %s23, 1
      %p87 = por %p85, %p86
      %p88 = scmp.ne.s32.totalorder %s80, %s83
      %p89 = scmp.eq.s32.totalorder %s23, 0
      %p90 = por %p88, %p89
      %p91 = scmp.ne.s32.totalorder %s80, %s83
      %p92 = scmp.eq.s32.totalorder %s28, 1
      %p93 = por %p91, %p92
      %p94 = scmp.ne.s32.totalorder %s83, %s84
      %p95 = scmp.eq.s32.totalorder %s28, 0
      %p96 = por %p94, %p95
      %p97 = scmp.ne.s32.totalorder %s83, %s84
      %p98 = scmp.eq.s32.totalorder %s29, 1
      %p99 = por %p97, %p98
      %p101 = scmp.ne.s32.totalorder %s84, %s100
      %p102 = scmp.eq.s32.totalorder %s29, 0
      %p103 = por %p101, %p102
      %s104 = ssub.s32 %s30, %s49
      %s105 = ssub.s32 %s31, %s45
      %s106 = sor.u32 %s104, %s105
      %p107 = scmp.eq.s32.totalorder %s106, 0
      %s109 = sadd.s32 %s108, 1
      %s110 = scalar_select %p107, %s108, %s109
      %p113 = pneg %p107
      %p114 = scmp.eq.s32.totalorder %s23, 1
      %p115 = por %p113, %p114
      %p116 = scmp.ne.s32.totalorder %s108, %s111
      %p117 = scmp.eq.s32.totalorder %s23, 0
      %p118 = por %p116, %p117
      %p119 = scmp.ne.s32.totalorder %s108, %s111
      %p120 = scmp.eq.s32.totalorder %s28, 1
      %p121 = por %p119, %p120
      %p122 = scmp.ne.s32.totalorder %s111, %s112
      %p123 = scmp.eq.s32.totalorder %s28, 0
      %p124 = por %p122, %p123
      %p125 = scmp.ne.s32.totalorder %s111, %s112
      %p126 = scmp.eq.s32.totalorder %s29, 1
      %p127 = por %p125, %p126
      %p129 = scmp.ne.s32.totalorder %s112, %s128
      %p130 = scmp.eq.s32.totalorder %s29, 0
      %p131 = por %p129, %p130
      %s133 = sadd.s32 %s132, 1
      %p136 = scmp.eq.s32.totalorder %s23, 1
      %p137 = scmp.ne.s32.totalorder %s132, %s134
      %p138 = scmp.eq.s32.totalorder %s23, 0
      %p139 = por %p137, %p138
      %p140 = scmp.ne.s32.totalorder %s132, %s134
      %p141 = scmp.eq.s32.totalorder %s28, 1
      %p142 = por %p140, %p141
      %p143 = scmp.ne.s32.totalorder %s134, %s135
      %p144 = scmp.eq.s32.totalorder %s28, 0
      %p145 = por %p143, %p144
      %p146 = scmp.ne.s32.totalorder %s134, %s135
      %p147 = scmp.eq.s32.totalorder %s29, 1
      %p148 = por %p146, %p147
      %p150 = scmp.ne.s32.totalorder %s135, %s149
      %p151 = scmp.eq.s32.totalorder %s29, 0
      %p152 = por %p150, %p151
      %s154 = sadd.s32 %s153, 1
      %p157 = scmp.eq.s32.totalorder %s23, 1
      %p158 = scmp.ne.s32.totalorder %s153, %s155
      %p159 = scmp.eq.s32.totalorder %s23, 0
      %p160 = por %p158, %p159
      %p161 = scmp.ne.s32.totalorder %s153, %s155
      %p162 = scmp.eq.s32.totalorder %s28, 1
      %p163 = por %p161, %p162
      %p164 = scmp.ne.s32.totalorder %s155, %s156
      %p165 = scmp.eq.s32.totalorder %s28, 0
      %p166 = por %p164, %p165
      %p167 = scmp.ne.s32.totalorder %s155, %s156
      %p168 = scmp.eq.s32.totalorder %s29, 1
      %p169 = por %p167, %p168
      %p171 = scmp.ne.s32.totalorder %s156, %s170
      %p172 = scmp.eq.s32.totalorder %s29, 0
      %p173 = por %p171, %p172
      %s175 = sadd.s32 %s174, 1
      %p178 = scmp.eq.s32.totalorder %s23, 1
      %p179 = scmp.ne.s32.totalorder %s174, %s176
      %p180 = scmp.eq.s32.totalorder %s23, 0
      %p181 = por %p179, %p180
      %p182 = scmp.ne.s32.totalorder %s174, %s176
      %p183 = scmp.eq.s32.totalorder %s28, 1
      %p184 = por %p182, %p183
      %p185 = scmp.ne.s32.totalorder %s176, %s177
      %p186 = scmp.eq.s32.totalorder %s28, 0
      %p187 = por %p185, %p186
      %p188 = scmp.ne.s32.totalorder %s176, %s177
      %p189 = scmp.eq.s32.totalorder %s29, 1
      %p190 = por %p188, %p189
      %p192 = scmp.ne.s32.totalorder %s177, %s191
      %p193 = scmp.eq.s32.totalorder %s29, 0
      %p194 = por %p192, %p193
      %s196 = sadd.s32 %s195, 1
      %p199 = scmp.eq.s32.totalorder %s23, 1
      %p200 = scmp.ne.s32.totalorder %s195, %s197
      %p201 = scmp.eq.s32.totalorder %s23, 0
      %p202 = por %p200, %p201
      %p203 = scmp.ne.s32.totalorder %s195, %s197
      %p204 = scmp.eq.s32.totalorder %s28, 1
      %p205 = por %p203, %p204
      %p206 = scmp.ne.s32.totalorder %s197, %s198
      %p207 = scmp.eq.s32.totalorder %s28, 0
      %p208 = por %p206, %p207
      %p209 = scmp.ne.s32.totalorder %s197, %s198
      %p210 = scmp.eq.s32.totalorder %s29, 1
      %p211 = por %p209, %p210
      %p213 = scmp.ne.s32.totalorder %s198, %s212
      %p214 = scmp.eq.s32.totalorder %s29, 0
      %p215 = por %p213, %p214
      %s217 = sadd.s32 %s216, 1
      %p220 = scmp.eq.s32.totalorder %s23, 1
      %p221 = scmp.ne.s32.totalorder %s216, %s218
      %p222 = scmp.eq.s32.totalorder %s23, 0
      %p223 = por %p221, %p222
      %p224 = scmp.ne.s32.totalorder %s216, %s218
      %p225 = scmp.eq.s32.totalorder %s28, 1
      %p226 = por %p224, %p225
      %p227 = scmp.ne.s32.totalorder %s218, %s219
      %p228 = scmp.eq.s32.totalorder %s28, 0
      %p229 = por %p227, %p228
      %p230 = scmp.ne.s32.totalorder %s218, %s219
      %p231 = scmp.eq.s32.totalorder %s29, 1
      %p232 = por %p230, %p231
      %p234 = scmp.ne.s32.totalorder %s219, %s233
      %p235 = scmp.eq.s32.totalorder %s29, 0
      %p236 = por %p234, %p235
      %s238 = sadd.s32 %s237, 1
      %p241 = scmp.eq.s32.totalorder %s23, 1
      %p242 = scmp.ne.s32.totalorder %s237, %s239
      %p243 = scmp.eq.s32.totalorder %s23, 0
      %p244 = por %p242, %p243
      %p245 = scmp.ne.s32.totalorder %s237, %s239
      %p246 = scmp.eq.s32.totalorder %s28, 1
      %p247 = por %p245, %p246
      %p248 = scmp.ne.s32.totalorder %s239, %s240
      %p249 = scmp.eq.s32.totalorder %s28, 0
      %p250 = por %p248, %p249
      %p251 = scmp.ne.s32.totalorder %s239, %s240
      %p252 = scmp.eq.s32.totalorder %s29, 1
      %p253 = por %p251, %p252
      %p255 = scmp.ne.s32.totalorder %s240, %s254
      %p256 = scmp.eq.s32.totalorder %s29, 0
      %p257 = por %p255, %p256
      %s258 = ssub.s32 %s30, %s49
      %s259 = ssub.s32 %s31, %s45
      %s260 = sor.u32 %s258, %s259
      %p261 = scmp.eq.s32.totalorder %s260, 0
      %s263 = sadd.s32 %s262, 1
      %s264 = scalar_select %p261, %s262, %s263
      %p267 = pneg %p261
      %p268 = scmp.eq.s32.totalorder %s23, 1
      %p269 = por %p267, %p268
      %p270 = scmp.ne.s32.totalorder %s262, %s265
      %p271 = scmp.eq.s32.totalorder %s23, 0
      %p272 = por %p270, %p271
      %p273 = scmp.ne.s32.totalorder %s262, %s265
      %p274 = scmp.eq.s32.totalorder %s28, 1
      %p275 = por %p273, %p274
      %p276 = scmp.ne.s32.totalorder %s265, %s266
      %p277 = scmp.eq.s32.totalorder %s28, 0
      %p278 = por %p276, %p277
      %p279 = scmp.ne.s32.totalorder %s265, %s266
      %p280 = scmp.eq.s32.totalorder %s29, 1
      %p281 = por %p279, %p280
      %p283 = scmp.ne.s32.totalorder %s266, %s282
      %p284 = scmp.eq.s32.totalorder %s29, 0
      %p285 = por %p283, %p284
      %p286 = scmp.le.s32.totalorder 1, %s23
      %p287 = scmp.lt.s32.totalorder %s23, 3
      %p288 = pnand %p286, %p287
      %p289 = pneg %p288
      // Predicated region
      $region9: #{tpu_custom_call.1} parent=5 // pred_check
        _
      $region10: #{tpu_custom_call.1} parent=5 // pred_check_branch
        %291 = sbr.rel (%p288) target = $region12
      $region11: #{tpu_custom_call.1} parent=5 // pred_region
        %s292 = ssub.s32 %s23, 1
        // Predicated region
        $region13: #{tpu_custom_call.1} parent=11 // pred_check
          %p293 = pneg %p96
        $region14: #{tpu_custom_call.1} parent=11 // pred_check_branch
          %295 = sbr.rel (%p293) target = $region16
        $region15: #{tpu_custom_call.1} parent=11 // pred_region
          %s297 = ssub.s32 128, 128
          %298 = vsyncadd [#allocation9], %s297
          %s299 = smul.addr %s33, 2
          %s300 = smul.addr %s299, 64
          %s301 = scalar_lea.hbm %s1, %s300
          %s302 = sshll.u32 [#allocation8], 4
          %s303 = int_to_ptr.vmem [resolvable:$true] %s302
          %308 = dma.hbm_to_vmem [thread:$0]  %s301, 128, %s303, [#allocation9], 64, 64, 4
        $region16: #{tpu_custom_call.1} parent=11 // pred_fallthru
          _
        // Predicated region
        $region17: #{tpu_custom_call.1} parent=11 // pred_check
          %p309 = pneg %p145
        $region18: #{tpu_custom_call.1} parent=11 // pred_check_branch
          %311 = sbr.rel (%p309) target = $region20
        $region19: #{tpu_custom_call.1} parent=11 // pred_region
          %s313 = ssub.s32 256, 256
          %314 = vsyncadd [#allocation9], %s313
          %s315 = sshll.u32 [#allocation11], 4
          %s316 = int_to_ptr.vmem [resolvable:$true] %s315
          %321 = dma.hbm_to_vmem [thread:$0]  %s3, 256, %s316, [#allocation9], 64, 64, 4
        $region20: #{tpu_custom_call.1} parent=11 // pred_fallthru
          _
        // Predicated region
        $region21: #{tpu_custom_call.1} parent=11 // pred_check
          %p322 = pneg %p166
        $region22: #{tpu_custom_call.1} parent=11 // pred_check_branch
          %324 = sbr.rel (%p322) target = $region24
        $region23: #{tpu_custom_call.1} parent=11 // pred_region
          _
        $region24: #{tpu_custom_call.1} parent=11 // pred_fallthru
          _
        // Predicated region
        $region25: #{tpu_custom_call.1} parent=11 // pred_check
          %p325 = pneg %p187
        $region26: #{tpu_custom_call.1} parent=11 // pred_check_branch
          %327 = sbr.rel (%p325) target = $region28
        $region27: #{tpu_custom_call.1} parent=11 // pred_region
          %s329 = ssub.s32 256, 256
          %330 = vsyncadd [#allocation13], %s329
          %s331 = sshll.u32 [#allocation12], 4
          %s332 = int_to_ptr.vmem [resolvable:$true] %s331
          %337 = dma.hbm_to_vmem [thread:$0]  %s5, 256, %s332, [#allocation13], 64, 64, 4
        $region28: #{tpu_custom_call.1} parent=11 // pred_fallthru
          _
        // Predicated region
        $region29: #{tpu_custom_call.1} parent=11 // pred_check
          %p338 = pneg %p208
        $region30: #{tpu_custom_call.1} parent=11 // pred_check_branch
          %340 = sbr.rel (%p338) target = $region32
        $region31: #{tpu_custom_call.1} parent=11 // pred_region
          _
        $region32: #{tpu_custom_call.1} parent=11 // pred_fallthru
          _
        // Predicated region
        $region33: #{tpu_custom_call.1} parent=11 // pred_check
          %p341 = pneg %p229
        $region34: #{tpu_custom_call.1} parent=11 // pred_check_branch
          %343 = sbr.rel (%p341) target = $region36
        $region35: #{tpu_custom_call.1} parent=11 // pred_region
          %s345 = ssub.s32 256, 256
          %346 = vsyncadd [#allocation13], %s345
          %s347 = sshll.u32 [#allocation14], 4
          %s348 = int_to_ptr.vmem [resolvable:$true] %s347
          %353 = dma.hbm_to_vmem [thread:$0]  %s7, 256, %s348, [#allocation13], 64, 64, 4
        $region36: #{tpu_custom_call.1} parent=11 // pred_fallthru
          _
        // Predicated region
        $region37: #{tpu_custom_call.1} parent=11 // pred_check
          %p354 = pneg %p250
        $region38: #{tpu_custom_call.1} parent=11 // pred_check_branch
          %356 = sbr.rel (%p354) target = $region40
        $region39: #{tpu_custom_call.1} parent=11 // pred_region
          _
        $region40: #{tpu_custom_call.1} parent=11 // pred_fallthru
          _
      $region12: #{tpu_custom_call.1} parent=5 // pred_fallthru
        _
      %p357 = scmp.lt.s32.totalorder %s23, 2
      // Predicated region
      $region41: #{tpu_custom_call.1} parent=5 // pred_check
        %p358 = pneg %p357
      $region42: #{tpu_custom_call.1} parent=5 // pred_check_branch
        %360 = sbr.rel (%p358) target = $region44
      $region43: #{tpu_custom_call.1} parent=5 // pred_region
        // Predicated region
        $region45: #{tpu_custom_call.1} parent=43 // pred_check
          %p361 = pneg %p64
        $region46: #{tpu_custom_call.1} parent=43 // pred_check_branch
          %363 = sbr.rel (%p361) target = $region48
        $region47: #{tpu_custom_call.1} parent=43 // pred_region
          %s364 = sand.u32 %s23, 1
          %s365 = scalar_lea.sflag [#allocation6], %s364
          %s366 = sand.u32 %s54, 1
          %s367 = smul.addr %s366, 8
          %s368 = scalar_lea.vmem [#allocation5], %s367
          %s369 = smul.u32 2, %s31
          %s371 = ssub.s32 128, 128
          %372 = vsyncadd %s365, %s371
          %s373 = smul.addr %s30, 2
          %s374 = sadd.s32 %s369, %s373
          %s375 = smul.addr %s374, 64
          %s376 = scalar_lea.hbm %s0, %s375
          %s377 = sshll.u32 %s368, 4
          %s378 = int_to_ptr.vmem [resolvable:$true] %s377
          %383 = dma.hbm_to_vmem [thread:$0]  %s376, 128, %s378, %s365, 64, 64, 4
        $region48: #{tpu_custom_call.1} parent=43 // pred_fallthru
          _
        // Predicated region
        $region49: #{tpu_custom_call.1} parent=43 // pred_check
          %p384 = pneg %p118
        $region50: #{tpu_custom_call.1} parent=43 // pred_check_branch
          %386 = sbr.rel (%p384) target = $region52
        $region51: #{tpu_custom_call.1} parent=43 // pred_region
          %s387 = sand.u32 %s23, 1
          %s388 = scalar_lea.sflag [#allocation6], %s387
          %s389 = sand.u32 %s108, 1
          %s390 = smul.addr %s389, 8
          %s391 = scalar_lea.vmem [#allocation10], %s390
          %s392 = smul.u32 2, %s31
          %s394 = ssub.s32 128, 128
          %395 = vsyncadd %s388, %s394
          %s396 = smul.addr %s30, 2
          %s397 = sadd.s32 %s392, %s396
          %s398 = smul.addr %s397, 64
          %s399 = scalar_lea.hbm %s2, %s398
          %s400 = sshll.u32 %s391, 4
          %s401 = int_to_ptr.vmem [resolvable:$true] %s400
          %406 = dma.hbm_to_vmem [thread:$0]  %s399, 128, %s401, %s388, 64, 64, 4
        $region52: #{tpu_custom_call.1} parent=43 // pred_fallthru
          _
      $region44: #{tpu_custom_call.1} parent=5 // pred_fallthru
        _
      %p407 = scmp.le.s32.totalorder 1, %s23
      %p408 = scmp.lt.s32.totalorder %s23, 3
      %p409 = pnand %p407, %p408
      %p410 = pneg %p409
      // Predicated region
      $region53: #{tpu_custom_call.1} parent=5 // pred_check
        _
      $region54: #{tpu_custom_call.1} parent=5 // pred_check_branch
        %412 = sbr.rel (%p409) target = $region56
      $region55: #{tpu_custom_call.1} parent=5 // pred_region
        %s413 = ssub.s32 %s23, 1
        %s414 = sand.u32 %s28, 1
        %s415 = scalar_lea.sflag [#allocation6], %s414
        %s416 = sand.u32 %s57, 1
        %s417 = smul.addr %s416, 8
        %s418 = scalar_lea.vmem [#allocation5], %s417
        // Predicated region
        $region57: #{tpu_custom_call.1} parent=55 // pred_check
          %p419 = pneg %p70
        $region58: #{tpu_custom_call.1} parent=55 // pred_check_branch
          %421 = sbr.rel (%p419) target = $region60
        $region59: #{tpu_custom_call.1} parent=55 // pred_region
          %422 = dma.done %s415, 128
        $region60: #{tpu_custom_call.1} parent=55 // pred_fallthru
          _
        // Predicated region
        $region61: #{tpu_custom_call.1} parent=55 // pred_check
          %p423 = pneg %p96
        $region62: #{tpu_custom_call.1} parent=55 // pred_check_branch
          %425 = sbr.rel (%p423) target = $region64
        $region63: #{tpu_custom_call.1} parent=55 // pred_region
          %426 = dma.done [#allocation9], 128
        $region64: #{tpu_custom_call.1} parent=55 // pred_fallthru
          _
        %s427 = sand.u32 %s28, 1
        %s428 = scalar_lea.sflag [#allocation6], %s427
        %s429 = sand.u32 %s111, 1
        %s430 = smul.addr %s429, 8
        %s431 = scalar_lea.vmem [#allocation10], %s430
        // Predicated region
        $region65: #{tpu_custom_call.1} parent=55 // pred_check
          %p432 = pneg %p124
        $region66: #{tpu_custom_call.1} parent=55 // pred_check_branch
          %434 = sbr.rel (%p432) target = $region68
        $region67: #{tpu_custom_call.1} parent=55 // pred_region
          %435 = dma.done %s428, 128
        $region68: #{tpu_custom_call.1} parent=55 // pred_fallthru
          _
        // Predicated region
        $region69: #{tpu_custom_call.1} parent=55 // pred_check
          %p436 = pneg %p145
        $region70: #{tpu_custom_call.1} parent=55 // pred_check_branch
          %438 = sbr.rel (%p436) target = $region72
        $region71: #{tpu_custom_call.1} parent=55 // pred_region
          %439 = dma.done [#allocation9], 256
        $region72: #{tpu_custom_call.1} parent=55 // pred_fallthru
          _
        // Predicated region
        $region73: #{tpu_custom_call.1} parent=55 // pred_check
          %p440 = pneg %p187
        $region74: #{tpu_custom_call.1} parent=55 // pred_check_branch
          %442 = sbr.rel (%p440) target = $region76
        $region75: #{tpu_custom_call.1} parent=55 // pred_region
          %443 = dma.done [#allocation13], 256
        $region76: #{tpu_custom_call.1} parent=55 // pred_fallthru
          _
        // Predicated region
        $region77: #{tpu_custom_call.1} parent=55 // pred_check
          %p444 = pneg %p229
        $region78: #{tpu_custom_call.1} parent=55 // pred_check_branch
          %446 = sbr.rel (%p444) target = $region80
        $region79: #{tpu_custom_call.1} parent=55 // pred_region
          %447 = dma.done [#allocation13], 256
        $region80: #{tpu_custom_call.1} parent=55 // pred_fallthru
          _
        %s448 = sand.u32 %s28, 1
        %s449 = scalar_lea.sflag [#allocation6], %s448
        %s450 = sand.u32 %s57, 1
        %s451 = smul.addr %s450, 8
        %s452 = scalar_lea.vmem [#allocation5], %s451
        %p453 = pneg %p70
        %p454 = pneg %p67
        %p455 = pneg %p96
        %p456 = pneg %p93
        %s457 = sand.u32 %s28, 1
        %s458 = scalar_lea.sflag [#allocation6], %s457
        %s459 = sand.u32 %s111, 1
        %s460 = smul.addr %s459, 8
        %s461 = scalar_lea.vmem [#allocation10], %s460
        %p462 = pneg %p124
        %p463 = pneg %p121
        %p464 = pneg %p145
        %p465 = pneg %p142
        %p466 = pneg %p166
        %p467 = pneg %p163
        %p468 = pneg %p187
        %p469 = pneg %p184
        %p470 = pneg %p208
        %p471 = pneg %p205
        %p472 = pneg %p229
        %p473 = pneg %p226
        %p474 = pneg %p250
        %p475 = pneg %p247
        %p476 = pneg %p278
        %p477 = pneg %p275
        %s478 = sand.u32 %s265, 1
        %s479 = scalar_lea.sflag [#allocation7], %s478
        %s480 = sand.u32 %s265, 1
        %s481 = smul.addr %s480, 16
        %s482 = scalar_lea.vmem [#allocation15], %s481
        %s483 = smul.u32 2, %s34
        %s484 = smul.u32 2, %s34
        %s485 = smul.u32 2, %s34
        %s487 = smul.u32 %s35, 4
        %p488 = scmp.eq.s32.totalorder %s34, 0
        // Predicated region
        $region81: #{tpu_custom_call.1} parent=55 // pred_check
          %p489 = pneg %p488
        $region82: #{tpu_custom_call.1} parent=55 // pred_check_branch
          %491 = sbr.rel (%p489) target = $region84
        $region83: #{tpu_custom_call.1} parent=55 // pred_region
          %v492 = vld [vmem:[#allocation8] sm:$0xf]
          %v493 = vld [vmem:[#allocation8 + $0x4] sm:$0xf]
          %s494 = smul.addr %s487, 4
          %s495 = scalar_lea.vmem [#allocation12], %s494
          %v496 = vld [vmem:[%s495] sm:$0xf]
          %v497 = vld [vmem:[%s495 + $0x4] sm:$0xf]
          %v498 = vld [vmem:[%s495 + $0x8] sm:$0xf]
          %v499 = vld [vmem:[%s495 + $0xc] sm:$0xf]
          %s500 = scalar_lea.vmem %s6, %s35
          %v501 = vld [vmem:[%s500] sm:$0x1]
          %v503 = vlaneseq
          %v504 = vshrl.u32 %v503, 7
          %v505 = vsub.s32 0, %v504
          %v506 = vrot.slane %v501, %v505
          %v510 = vunpack.c.l.b16 %v492
          %v511 = vunpack.c.l.b16 %v493
          %v512 = vpack.c.b16 %v511, %v510
          %v517 = vunpack.c.l.b16 %v496
          %v518 = vunpack.c.l.b16 %v497
          %v519 = vunpack.c.l.b16 %v498
          %v520 = vunpack.c.l.b16 %v499
          %v521 = vpack.c.b16 %v518, %v517
          %v522 = vpack.c.b16 %v520, %v519
          %vm525 = vcmask 261120
          %v527 = vsel %vm525, %v512, 0
          %529 = vmatprep.subr.bf16.mxu0 0
          %530 = vmatpush1.bf16.msra.mxu0 0
          %531 = vmatprep.subr.bf16.mxu0 0
          %532 = vmatpush1.bf16.msra.mxu0 0
          %533 = vmatprep.subr.bf16.mxu0 0
          %534 = vmatpush1.bf16.msra.mxu0 0
          %535 = vmatprep.subr.bf16.mxu0 0
          %536 = vmatpush1.bf16.msra.mxu0 0
          %537 = vmatprep.subr.bf16.mxu0 0
          %538 = vmatpush1.bf16.msra.mxu0 0
          %539 = vmatprep.subr.bf16.mxu0 0
          %540 = vmatpush1.bf16.msra.mxu0 0
          %541 = vmatprep.subr.bf16.mxu0 0
          %542 = vmatpush1.bf16.msra.mxu0 %v522
          %543 = vmatprep.subr.bf16.mxu0 0
          %544 = vmatpush1.bf16.msra.mxu0 %v521
          %545 = vmatprep.subr.bf16.mxu0 0
          %546 = vmatpush2.bf16.msra.mxu0 0
          %547 = vmatprep.subr.bf16.mxu0 0
          %548 = vmatpush2.bf16.msra.mxu0 0
          %549 = vmatprep.subr.bf16.mxu0 0
          %550 = vmatpush2.bf16.msra.mxu0 0
          %551 = vmatprep.subr.bf16.mxu0 0
          %552 = vmatpush2.bf16.msra.mxu0 0
          %553 = vmatprep.subr.bf16.mxu0 0
          %554 = vmatpush2.bf16.msra.mxu0 0
          %555 = vmatprep.subr.bf16.mxu0 0
          %556 = vmatpush2.bf16.msra.mxu0 0
          %557 = vmatprep.subr.bf16.mxu0 0
          %558 = vmatpush2.bf16.msra.mxu0 0
          %559 = vmatprep.subr.bf16.mxu0 0
          %560 = vmatpush2.bf16.msra.mxu0 0
          %561 = vmatprep.mubr.bf16.mxu0 0
          %562 = vmatmul.mubr.bf16.gmra.mxu0 %v527
          %v563 = vpop.f32.mrf.mxu0
          %v564 = vadd.f32 %v506, %v563
          %v565 = vpop.f32.mrf.mxu0
          %v566 = vpop.f32.mrf.mxu0
          %v567 = vadd.f32 %v506, %v566
          %v568 = vpop.f32.mrf.mxu0
          %569 = vdwg.mxu0
          %572 = vrot.lane.b32.xlu0 %v564, 120
          %v573 = vpop.permute.xlu0 %572
          %574 = vrot.lane.b32.xlu0 %v567, 120
          %v575 = vpop.permute.xlu0 %574
          %578 = vrot.lane.b32.xlu0 %v564, 112
          %v579 = vpop.permute.xlu0 %578
          %580 = vrot.lane.b32.xlu0 %v567, 112
          %v581 = vpop.permute.xlu0 %580
          %584 = vrot.lane.b32.xlu0 %v564, 104
          %v585 = vpop.permute.xlu0 %584
          %586 = vrot.lane.b32.xlu0 %v567, 104
          %v587 = vpop.permute.xlu0 %586
          %v590 = vcombine.low %v564, %v579
          %v591 = vcombine.high %v564, %v579
          %v593 = vunpack.c.l.s4 1983009808
          %v594 = vunpack.c.0.s8 %v593
          %v595 = vlaneseq
          %v596 = vshrl.u32 %v595, 7
          %v597 = vsub.s32 %v594, %v596
          %v598 = vrot.slane %v590, %v597
          %v600 = vunpack.c.l.s4 1983009808
          %v601 = vunpack.c.0.s8 %v600
          %v602 = vlaneseq
          %v603 = vshrl.u32 %v602, 7
          %v604 = vsub.s32 %v601, %v603
          %v605 = vrot.slane %v591, %v604
          %v606 = vcombine.low %v573, %v585
          %v607 = vcombine.high %v573, %v585
          %v609 = vunpack.c.l.s4 1983009808
          %v610 = vunpack.c.0.s8 %v609
          %v611 = vlaneseq
          %v612 = vshrl.u32 %v611, 7
          %v613 = vsub.s32 %v610, %v612
          %v614 = vrot.slane %v606, %v613
          %v616 = vunpack.c.l.s4 1983009808
          %v617 = vunpack.c.0.s8 %v616
          %v618 = vlaneseq
          %v619 = vshrl.u32 %v618, 7
          %v620 = vsub.s32 %v617, %v619
          %v621 = vrot.slane %v607, %v620
          %v622 = vcombine.low %v598, %v614
          %v623 = vcombine.high %v598, %v614
          %v625 = vunpack.c.l.s4 1934713408
          %v626 = vunpack.c.0.s8 %v625
          %v627 = vlaneseq
          %v628 = vshrl.u32 %v627, 7
          %v629 = vsub.s32 %v626, %v628
          %v630 = vrot.slane %v622, %v629
          %v632 = vunpack.c.l.s4 1934713408
          %v633 = vunpack.c.0.s8 %v632
          %v634 = vlaneseq
          %v635 = vshrl.u32 %v634, 7
          %v636 = vsub.s32 %v633, %v635
          %v637 = vrot.slane %v623, %v636
          %v638 = vcombine.low %v605, %v621
          %v639 = vcombine.high %v605, %v621
          %v641 = vunpack.c.l.s4 1934713408
          %v642 = vunpack.c.0.s8 %v641
          %v643 = vlaneseq
          %v644 = vshrl.u32 %v643, 7
          %v645 = vsub.s32 %v642, %v644
          %v646 = vrot.slane %v638, %v645
          %v648 = vunpack.c.l.s4 1934713408
          %v649 = vunpack.c.0.s8 %v648
          %v650 = vlaneseq
          %v651 = vshrl.u32 %v650, 7
          %v652 = vsub.s32 %v649, %v651
          %v653 = vrot.slane %v639, %v652
          %v654 = vcombine.high %v630, 0.0
          %v655 = vcombine.high %v637, 0.0
          %v656 = vcombine.high %v646, 0.0
          %v657 = vcombine.high %v653, 0.0
          %v658 = vcombine.low %v567, %v581
          %v659 = vcombine.high %v567, %v581
          %v661 = vunpack.c.l.s4 1983009808
          %v662 = vunpack.c.0.s8 %v661
          %v663 = vlaneseq
          %v664 = vshrl.u32 %v663, 7
          %v665 = vsub.s32 %v662, %v664
          %v666 = vrot.slane %v658, %v665
          %v668 = vunpack.c.l.s4 1983009808
          %v669 = vunpack.c.0.s8 %v668
          %v670 = vlaneseq
          %v671 = vshrl.u32 %v670, 7
          %v672 = vsub.s32 %v669, %v671
          %v673 = vrot.slane %v659, %v672
          %v674 = vcombine.low %v575, %v587
          %v675 = vcombine.high %v575, %v587
          %v677 = vunpack.c.l.s4 1983009808
          %v678 = vunpack.c.0.s8 %v677
          %v679 = vlaneseq
          %v680 = vshrl.u32 %v679, 7
          %v681 = vsub.s32 %v678, %v680
          %v682 = vrot.slane %v674, %v681
          %v684 = vunpack.c.l.s4 1983009808
          %v685 = vunpack.c.0.s8 %v684
          %v686 = vlaneseq
          %v687 = vshrl.u32 %v686, 7
          %v688 = vsub.s32 %v685, %v687
          %v689 = vrot.slane %v675, %v688
          %v690 = vcombine.low %v666, %v682
          %v691 = vcombine.high %v666, %v682
          %v693 = vunpack.c.l.s4 1934713408
          %v694 = vunpack.c.0.s8 %v693
          %v695 = vlaneseq
          %v696 = vshrl.u32 %v695, 7
          %v697 = vsub.s32 %v694, %v696
          %v698 = vrot.slane %v690, %v697
          %v700 = vunpack.c.l.s4 1934713408
          %v701 = vunpack.c.0.s8 %v700
          %v702 = vlaneseq
          %v703 = vshrl.u32 %v702, 7
          %v704 = vsub.s32 %v701, %v703
          %v705 = vrot.slane %v691, %v704
          %v706 = vcombine.low %v673, %v689
          %v707 = vcombine.high %v673, %v689
          %v709 = vunpack.c.l.s4 1934713408
          %v710 = vunpack.c.0.s8 %v709
          %v711 = vlaneseq
          %v712 = vshrl.u32 %v711, 7
          %v713 = vsub.s32 %v710, %v712
          %v714 = vrot.slane %v706, %v713
          %v716 = vunpack.c.l.s4 1934713408
          %v717 = vunpack.c.0.s8 %v716
          %v718 = vlaneseq
          %v719 = vshrl.u32 %v718, 7
          %v720 = vsub.s32 %v717, %v719
          %v721 = vrot.slane %v707, %v720
          %v722 = vcombine.high %v698, 0.0
          %v723 = vcombine.high %v705, 0.0
          %v724 = vcombine.high %v714, 0.0
          %v725 = vcombine.high %v721, 0.0
          %v726 = vcombine.low %v630, %v637
          %v728 = vunpack.c.l.s4 1983009808
          %v729 = vunpack.c.0.s8 %v728
          %v730 = vlaneseq
          %v731 = vshrl.u32 %v730, 7
          %v732 = vsub.s32 %v729, %v731
          %v733 = vrot.slane %v726, %v732
          %v734 = vcombine.low %v654, %v655
          %v736 = vunpack.c.l.s4 1983009808
          %v737 = vunpack.c.0.s8 %v736
          %v738 = vlaneseq
          %v739 = vshrl.u32 %v738, 7
          %v740 = vsub.s32 %v737, %v739
          %v741 = vrot.slane %v734, %v740
          %v742 = vcombine.low %v646, %v653
          %v744 = vunpack.c.l.s4 1983009808
          %v745 = vunpack.c.0.s8 %v744
          %v746 = vlaneseq
          %v747 = vshrl.u32 %v746, 7
          %v748 = vsub.s32 %v745, %v747
          %v749 = vrot.slane %v742, %v748
          %v750 = vcombine.low %v656, %v657
          %v752 = vunpack.c.l.s4 1983009808
          %v753 = vunpack.c.0.s8 %v752
          %v754 = vlaneseq
          %v755 = vshrl.u32 %v754, 7
          %v756 = vsub.s32 %v753, %v755
          %v757 = vrot.slane %v750, %v756
          %v758 = vcombine.low %v733, %v741
          %v759 = vcombine.high %v733, %v741
          %v761 = vunpack.c.l.s4 1934713408
          %v762 = vunpack.c.0.s8 %v761
          %v763 = vlaneseq
          %v764 = vshrl.u32 %v763, 7
          %v765 = vsub.s32 %v762, %v764
          %v766 = vrot.slane %v758, %v765
          %v768 = vunpack.c.l.s4 1934713408
          %v769 = vunpack.c.0.s8 %v768
          %v770 = vlaneseq
          %v771 = vshrl.u32 %v770, 7
          %v772 = vsub.s32 %v769, %v771
          %v773 = vrot.slane %v759, %v772
          %v774 = vcombine.low %v749, %v757
          %v775 = vcombine.high %v749, %v757
          %v777 = vunpack.c.l.s4 1934713408
          %v778 = vunpack.c.0.s8 %v777
          %v779 = vlaneseq
          %v780 = vshrl.u32 %v779, 7
          %v781 = vsub.s32 %v778, %v780
          %v782 = vrot.slane %v774, %v781
          %v784 = vunpack.c.l.s4 1934713408
          %v785 = vunpack.c.0.s8 %v784
          %v786 = vlaneseq
          %v787 = vshrl.u32 %v786, 7
          %v788 = vsub.s32 %v785, %v787
          %v789 = vrot.slane %v775, %v788
          %v790 = vcombine.low %v766, %v782
          %v791 = vcombine.high %v766, %v782
          %v792 = vcombine.low %v773, %v789
          %v793 = vcombine.high %v773, %v789
          %v794 = vcombine.low %v698, %v705
          %v796 = vunpack.c.l.s4 1983009808
          %v797 = vunpack.c.0.s8 %v796
          %v798 = vlaneseq
          %v799 = vshrl.u32 %v798, 7
          %v800 = vsub.s32 %v797, %v799
          %v801 = vrot.slane %v794, %v800
          %v802 = vcombine.low %v722, %v723
          %v804 = vunpack.c.l.s4 1983009808
          %v805 = vunpack.c.0.s8 %v804
          %v806 = vlaneseq
          %v807 = vshrl.u32 %v806, 7
          %v808 = vsub.s32 %v805, %v807
          %v809 = vrot.slane %v802, %v808
          %v810 = vcombine.low %v714, %v721
          %v812 = vunpack.c.l.s4 1983009808
          %v813 = vunpack.c.0.s8 %v812
          %v814 = vlaneseq
          %v815 = vshrl.u32 %v814, 7
          %v816 = vsub.s32 %v813, %v815
          %v817 = vrot.slane %v810, %v816
          %v818 = vcombine.low %v724, %v725
          %v820 = vunpack.c.l.s4 1983009808
          %v821 = vunpack.c.0.s8 %v820
          %v822 = vlaneseq
          %v823 = vshrl.u32 %v822, 7
          %v824 = vsub.s32 %v821, %v823
          %v825 = vrot.slane %v818, %v824
          %v826 = vcombine.low %v801, %v809
          %v827 = vcombine.high %v801, %v809
          %v829 = vunpack.c.l.s4 1934713408
          %v830 = vunpack.c.0.s8 %v829
          %v831 = vlaneseq
          %v832 = vshrl.u32 %v831, 7
          %v833 = vsub.s32 %v830, %v832
          %v834 = vrot.slane %v826, %v833
          %v836 = vunpack.c.l.s4 1934713408
          %v837 = vunpack.c.0.s8 %v836
          %v838 = vlaneseq
          %v839 = vshrl.u32 %v838, 7
          %v840 = vsub.s32 %v837, %v839
          %v841 = vrot.slane %v827, %v840
          %v842 = vcombine.low %v817, %v825
          %v843 = vcombine.high %v817, %v825
          %v845 = vunpack.c.l.s4 1934713408
          %v846 = vunpack.c.0.s8 %v845
          %v847 = vlaneseq
          %v848 = vshrl.u32 %v847, 7
          %v849 = vsub.s32 %v846, %v848
          %v850 = vrot.slane %v842, %v849
          %v852 = vunpack.c.l.s4 1934713408
          %v853 = vunpack.c.0.s8 %v852
          %v854 = vlaneseq
          %v855 = vshrl.u32 %v854, 7
          %v856 = vsub.s32 %v853, %v855
          %v857 = vrot.slane %v843, %v856
          %v858 = vcombine.low %v834, %v850
          %v859 = vcombine.high %v834, %v850
          %v860 = vcombine.low %v841, %v857
          %v861 = vcombine.high %v841, %v857
          %862 = vrot.lane.b32.xlu0 %v564, 96
          %v863 = vpop.permute.xlu0 %862
          %864 = vrot.lane.b32.xlu0 %v567, 96
          %v865 = vpop.permute.xlu0 %864
          %866 = vrot.lane.b32.xlu0 %v573, 96
          %v867 = vpop.permute.xlu0 %866
          %868 = vrot.lane.b32.xlu0 %v575, 96
          %v869 = vpop.permute.xlu0 %868
          %870 = vrot.lane.b32.xlu0 %v579, 96
          %v871 = vpop.permute.xlu0 %870
          %872 = vrot.lane.b32.xlu0 %v581, 96
          %v873 = vpop.permute.xlu0 %872
          %874 = vrot.lane.b32.xlu0 %v585, 96
          %v875 = vpop.permute.xlu0 %874
          %876 = vrot.lane.b32.xlu0 %v587, 96
          %v877 = vpop.permute.xlu0 %876
          %v886 = vcombine.low %v863, %v871
          %v887 = vcombine.high %v863, %v871
          %v889 = vunpack.c.l.s4 1983009808
          %v890 = vunpack.c.0.s8 %v889
          %v891 = vlaneseq
          %v892 = vshrl.u32 %v891, 7
          %v893 = vsub.s32 %v890, %v892
          %v894 = vrot.slane %v886, %v893
          %v896 = vunpack.c.l.s4 1983009808
          %v897 = vunpack.c.0.s8 %v896
          %v898 = vlaneseq
          %v899 = vshrl.u32 %v898, 7
          %v900 = vsub.s32 %v897, %v899
          %v901 = vrot.slane %v887, %v900
          %v902 = vcombine.low %v867, %v875
          %v903 = vcombine.high %v867, %v875
          %v905 = vunpack.c.l.s4 1983009808
          %v906 = vunpack.c.0.s8 %v905
          %v907 = vlaneseq
          %v908 = vshrl.u32 %v907, 7
          %v909 = vsub.s32 %v906, %v908
          %v910 = vrot.slane %v902, %v909
          %v912 = vunpack.c.l.s4 1983009808
          %v913 = vunpack.c.0.s8 %v912
          %v914 = vlaneseq
          %v915 = vshrl.u32 %v914, 7
          %v916 = vsub.s32 %v913, %v915
          %v917 = vrot.slane %v903, %v916
          %v918 = vcombine.low %v894, %v910
          %v919 = vcombine.high %v894, %v910
          %v921 = vunpack.c.l.s4 1934713408
          %v922 = vunpack.c.0.s8 %v921
          %v923 = vlaneseq
          %v924 = vshrl.u32 %v923, 7
          %v925 = vsub.s32 %v922, %v924
          %v926 = vrot.slane %v918, %v925
          %v928 = vunpack.c.l.s4 1934713408
          %v929 = vunpack.c.0.s8 %v928
          %v930 = vlaneseq
          %v931 = vshrl.u32 %v930, 7
          %v932 = vsub.s32 %v929, %v931
          %v933 = vrot.slane %v919, %v932
          %v934 = vcombine.low %v901, %v917
          %v935 = vcombine.high %v901, %v917
          %v937 = vunpack.c.l.s4 1934713408
          %v938 = vunpack.c.0.s8 %v937
          %v939 = vlaneseq
          %v940 = vshrl.u32 %v939, 7
          %v941 = vsub.s32 %v938, %v940
          %v942 = vrot.slane %v934, %v941
          %v944 = vunpack.c.l.s4 1934713408
          %v945 = vunpack.c.0.s8 %v944
          %v946 = vlaneseq
          %v947 = vshrl.u32 %v946, 7
          %v948 = vsub.s32 %v945, %v947
          %v949 = vrot.slane %v935, %v948
          %v950 = vcombine.high %v926, 0.0
          %v951 = vcombine.high %v933, 0.0
          %v952 = vcombine.high %v942, 0.0
          %v953 = vcombine.high %v949, 0.0
          %v954 = vcombine.low %v865, %v873
          %v955 = vcombine.high %v865, %v873
          %v957 = vunpack.c.l.s4 1983009808
          %v958 = vunpack.c.0.s8 %v957
          %v959 = vlaneseq
          %v960 = vshrl.u32 %v959, 7
          %v961 = vsub.s32 %v958, %v960
          %v962 = vrot.slane %v954, %v961
          %v964 = vunpack.c.l.s4 1983009808
          %v965 = vunpack.c.0.s8 %v964
          %v966 = vlaneseq
          %v967 = vshrl.u32 %v966, 7
          %v968 = vsub.s32 %v965, %v967
          %v969 = vrot.slane %v955, %v968
          %v970 = vcombine.low %v869, %v877
          %v971 = vcombine.high %v869, %v877
          %v973 = vunpack.c.l.s4 1983009808
          %v974 = vunpack.c.0.s8 %v973
          %v975 = vlaneseq
          %v976 = vshrl.u32 %v975, 7
          %v977 = vsub.s32 %v974, %v976
          %v978 = vrot.slane %v970, %v977
          %v980 = vunpack.c.l.s4 1983009808
          %v981 = vunpack.c.0.s8 %v980
          %v982 = vlaneseq
          %v983 = vshrl.u32 %v982, 7
          %v984 = vsub.s32 %v981, %v983
          %v985 = vrot.slane %v971, %v984
          %v986 = vcombine.low %v962, %v978
          %v987 = vcombine.high %v962, %v978
          %v989 = vunpack.c.l.s4 1934713408
          %v990 = vunpack.c.0.s8 %v989
          %v991 = vlaneseq
          %v992 = vshrl.u32 %v991, 7
          %v993 = vsub.s32 %v990, %v992
          %v994 = vrot.slane %v986, %v993
          %v996 = vunpack.c.l.s4 1934713408
          %v997 = vunpack.c.0.s8 %v996
          %v998 = vlaneseq
          %v999 = vshrl.u32 %v998, 7
          %v1000 = vsub.s32 %v997, %v999
          %v1001 = vrot.slane %v987, %v1000
          %v1002 = vcombine.low %v969, %v985
          %v1003 = vcombine.high %v969, %v985
          %v1005 = vunpack.c.l.s4 1934713408
          %v1006 = vunpack.c.0.s8 %v1005
          %v1007 = vlaneseq
          %v1008 = vshrl.u32 %v1007, 7
          %v1009 = vsub.s32 %v1006, %v1008
          %v1010 = vrot.slane %v1002, %v1009
          %v1012 = vunpack.c.l.s4 1934713408
          %v1013 = vunpack.c.0.s8 %v1012
          %v1014 = vlaneseq
          %v1015 = vshrl.u32 %v1014, 7
          %v1016 = vsub.s32 %v1013, %v1015
          %v1017 = vrot.slane %v1003, %v1016
          %v1018 = vcombine.high %v994, 0.0
          %v1019 = vcombine.high %v1001, 0.0
          %v1020 = vcombine.high %v1010, 0.0
          %v1021 = vcombine.high %v1017, 0.0
          %v1022 = vcombine.low %v926, %v933
          %v1024 = vunpack.c.l.s4 1983009808
          %v1025 = vunpack.c.0.s8 %v1024
          %v1026 = vlaneseq
          %v1027 = vshrl.u32 %v1026, 7
          %v1028 = vsub.s32 %v1025, %v1027
          %v1029 = vrot.slane %v1022, %v1028
          %v1030 = vcombine.low %v950, %v951
          %v1032 = vunpack.c.l.s4 1983009808
          %v1033 = vunpack.c.0.s8 %v1032
          %v1034 = vlaneseq
          %v1035 = vshrl.u32 %v1034, 7
          %v1036 = vsub.s32 %v1033, %v1035
          %v1037 = vrot.slane %v1030, %v1036
          %v1038 = vcombine.low %v942, %v949
          %v1040 = vunpack.c.l.s4 1983009808
          %v1041 = vunpack.c.0.s8 %v1040
          %v1042 = vlaneseq
          %v1043 = vshrl.u32 %v1042, 7
          %v1044 = vsub.s32 %v1041, %v1043
          %v1045 = vrot.slane %v1038, %v1044
          %v1046 = vcombine.low %v952, %v953
          %v1048 = vunpack.c.l.s4 1983009808
          %v1049 = vunpack.c.0.s8 %v1048
          %v1050 = vlaneseq
          %v1051 = vshrl.u32 %v1050, 7
          %v1052 = vsub.s32 %v1049, %v1051
          %v1053 = vrot.slane %v1046, %v1052
          %v1054 = vcombine.low %v1029, %v1037
          %v1055 = vcombine.high %v1029, %v1037
          %v1057 = vunpack.c.l.s4 1934713408
          %v1058 = vunpack.c.0.s8 %v1057
          %v1059 = vlaneseq
          %v1060 = vshrl.u32 %v1059, 7
          %v1061 = vsub.s32 %v1058, %v1060
          %v1062 = vrot.slane %v1054, %v1061
          %v1064 = vunpack.c.l.s4 1934713408
          %v1065 = vunpack.c.0.s8 %v1064
          %v1066 = vlaneseq
          %v1067 = vshrl.u32 %v1066, 7
          %v1068 = vsub.s32 %v1065, %v1067
          %v1069 = vrot.slane %v1055, %v1068
          %v1070 = vcombine.low %v1045, %v1053
          %v1071 = vcombine.high %v1045, %v1053
          %v1073 = vunpack.c.l.s4 1934713408
          %v1074 = vunpack.c.0.s8 %v1073
          %v1075 = vlaneseq
          %v1076 = vshrl.u32 %v1075, 7
          %v1077 = vsub.s32 %v1074, %v1076
          %v1078 = vrot.slane %v1070, %v1077
          %v1080 = vunpack.c.l.s4 1934713408
          %v1081 = vunpack.c.0.s8 %v1080
          %v1082 = vlaneseq
          %v1083 = vshrl.u32 %v1082, 7
          %v1084 = vsub.s32 %v1081, %v1083
          %v1085 = vrot.slane %v1071, %v1084
          %v1086 = vcombine.low %v1062, %v1078
          %v1087 = vcombine.high %v1062, %v1078
          %v1088 = vcombine.low %v1069, %v1085
          %v1089 = vcombine.high %v1069, %v1085
          %v1090 = vcombine.low %v994, %v1001
          %v1092 = vunpack.c.l.s4 1983009808
          %v1093 = vunpack.c.0.s8 %v1092
          %v1094 = vlaneseq
          %v1095 = vshrl.u32 %v1094, 7
          %v1096 = vsub.s32 %v1093, %v1095
          %v1097 = vrot.slane %v1090, %v1096
          %v1098 = vcombine.low %v1018, %v1019
          %v1100 = vunpack.c.l.s4 1983009808
          %v1101 = vunpack.c.0.s8 %v1100
          %v1102 = vlaneseq
          %v1103 = vshrl.u32 %v1102, 7
          %v1104 = vsub.s32 %v1101, %v1103
          %v1105 = vrot.slane %v1098, %v1104
          %v1106 = vcombine.low %v1010, %v1017
          %v1108 = vunpack.c.l.s4 1983009808
          %v1109 = vunpack.c.0.s8 %v1108
          %v1110 = vlaneseq
          %v1111 = vshrl.u32 %v1110, 7
          %v1112 = vsub.s32 %v1109, %v1111
          %v1113 = vrot.slane %v1106, %v1112
          %v1114 = vcombine.low %v1020, %v1021
          %v1116 = vunpack.c.l.s4 1983009808
          %v1117 = vunpack.c.0.s8 %v1116
          %v1118 = vlaneseq
          %v1119 = vshrl.u32 %v1118, 7
          %v1120 = vsub.s32 %v1117, %v1119
          %v1121 = vrot.slane %v1114, %v1120
          %v1122 = vcombine.low %v1097, %v1105
          %v1123 = vcombine.high %v1097, %v1105
          %v1125 = vunpack.c.l.s4 1934713408
          %v1126 = vunpack.c.0.s8 %v1125
          %v1127 = vlaneseq
          %v1128 = vshrl.u32 %v1127, 7
          %v1129 = vsub.s32 %v1126, %v1128
          %v1130 = vrot.slane %v1122, %v1129
          %v1132 = vunpack.c.l.s4 1934713408
          %v1133 = vunpack.c.0.s8 %v1132
          %v1134 = vlaneseq
          %v1135 = vshrl.u32 %v1134, 7
          %v1136 = vsub.s32 %v1133, %v1135
          %v1137 = vrot.slane %v1123, %v1136
          %v1138 = vcombine.low %v1113, %v1121
          %v1139 = vcombine.high %v1113, %v1121
          %v1141 = vunpack.c.l.s4 1934713408
          %v1142 = vunpack.c.0.s8 %v1141
          %v1143 = vlaneseq
          %v1144 = vshrl.u32 %v1143, 7
          %v1145 = vsub.s32 %v1142, %v1144
          %v1146 = vrot.slane %v1138, %v1145
          %v1148 = vunpack.c.l.s4 1934713408
          %v1149 = vunpack.c.0.s8 %v1148
          %v1150 = vlaneseq
          %v1151 = vshrl.u32 %v1150, 7
          %v1152 = vsub.s32 %v1149, %v1151
          %v1153 = vrot.slane %v1139, %v1152
          %v1154 = vcombine.low %v1130, %v1146
          %v1155 = vcombine.high %v1130, %v1146
          %v1156 = vcombine.low %v1137, %v1153
          %v1157 = vcombine.high %v1137, %v1153
          %1158 = vxpose.xlu0.b32.start [1/16] %v790, 128
          %1159 = vxpose.xlu0.b32.cont [2/16] %v858, 128
          %1160 = vxpose.xlu0.b32.cont [3/16] 0.0, 128
          %1161 = vxpose.xlu0.b32.cont [4/16] 0.0, 128
          %1162 = vxpose.xlu0.b32.cont [5/16] 0.0, 128
          %1163 = vxpose.xlu0.b32.cont [6/16] 0.0, 128
          %1164 = vxpose.xlu0.b32.cont [7/16] 0.0, 128
          %1165 = vxpose.xlu0.b32.cont [8/16] 0.0, 128
          %1166 = vxpose.xlu0.b32.cont [9/16] 0.0, 128
          %1167 = vxpose.xlu0.b32.cont [10/16] 0.0, 128
          %1168 = vxpose.xlu0.b32.cont [11/16] 0.0, 128
          %1169 = vxpose.xlu0.b32.cont [12/16] 0.0, 128
          %1170 = vxpose.xlu0.b32.cont [13/16] 0.0, 128
          %1171 = vxpose.xlu0.b32.cont [14/16] 0.0, 128
          %1172 = vxpose.xlu0.b32.cont [15/16] 0.0, 128
          %1173 = vxpose.xlu0.b32.end [16/16] 0.0, 128
          %v1174 = vpop.trf.xlu0
          %v1175 = vpop.trf.xlu0
          %v1176 = vpop.trf.xlu0
          %v1177 = vpop.trf.xlu0
          %v1178 = vpop.trf.xlu0
          %v1179 = vpop.trf.xlu0
          %v1180 = vpop.trf.xlu0
          %v1181 = vpop.trf.xlu0
          %v1182 = vpop.trf.xlu0
          %v1183 = vpop.trf.xlu0
          %v1184 = vpop.trf.xlu0
          %v1185 = vpop.trf.xlu0
          %v1186 = vpop.trf.xlu0
          %v1187 = vpop.trf.xlu0
          %v1188 = vpop.trf.xlu0
          %v1189 = vpop.trf.xlu0
          %1190 = vxpose.xlu0.b32.start [1/16] %v791, 128
          %1191 = vxpose.xlu0.b32.cont [2/16] %v859, 128
          %1192 = vxpose.xlu0.b32.cont [3/16] 0.0, 128
          %1193 = vxpose.xlu0.b32.cont [4/16] 0.0, 128
          %1194 = vxpose.xlu0.b32.cont [5/16] 0.0, 128
          %1195 = vxpose.xlu0.b32.cont [6/16] 0.0, 128
          %1196 = vxpose.xlu0.b32.cont [7/16] 0.0, 128
          %1197 = vxpose.xlu0.b32.cont [8/16] 0.0, 128
          %1198 = vxpose.xlu0.b32.cont [9/16] 0.0, 128
          %1199 = vxpose.xlu0.b32.cont [10/16] 0.0, 128
          %1200 = vxpose.xlu0.b32.cont [11/16] 0.0, 128
          %1201 = vxpose.xlu0.b32.cont [12/16] 0.0, 128
          %1202 = vxpose.xlu0.b32.cont [13/16] 0.0, 128
          %1203 = vxpose.xlu0.b32.cont [14/16] 0.0, 128
          %1204 = vxpose.xlu0.b32.cont [15/16] 0.0, 128
          %1205 = vxpose.xlu0.b32.end [16/16] 0.0, 128
          %v1206 = vpop.trf.xlu0
          %v1207 = vpop.trf.xlu0
          %v1208 = vpop.trf.xlu0
          %v1209 = vpop.trf.xlu0
          %v1210 = vpop.trf.xlu0
          %v1211 = vpop.trf.xlu0
          %v1212 = vpop.trf.xlu0
          %v1213 = vpop.trf.xlu0
          %v1214 = vpop.trf.xlu0
          %v1215 = vpop.trf.xlu0
          %v1216 = vpop.trf.xlu0
          %v1217 = vpop.trf.xlu0
          %v1218 = vpop.trf.xlu0
          %v1219 = vpop.trf.xlu0
          %v1220 = vpop.trf.xlu0
          %v1221 = vpop.trf.xlu0
          %1222 = vxpose.xlu0.b32.start [1/16] %v792, 128
          %1223 = vxpose.xlu0.b32.cont [2/16] %v860, 128
          %1224 = vxpose.xlu0.b32.cont [3/16] 0.0, 128
          %1225 = vxpose.xlu0.b32.cont [4/16] 0.0, 128
          %1226 = vxpose.xlu0.b32.cont [5/16] 0.0, 128
          %1227 = vxpose.xlu0.b32.cont [6/16] 0.0, 128
          %1228 = vxpose.xlu0.b32.cont [7/16] 0.0, 128
          %1229 = vxpose.xlu0.b32.cont [8/16] 0.0, 128
          %1230 = vxpose.xlu0.b32.cont [9/16] 0.0, 128
          %1231 = vxpose.xlu0.b32.cont [10/16] 0.0, 128
          %1232 = vxpose.xlu0.b32.cont [11/16] 0.0, 128
          %1233 = vxpose.xlu0.b32.cont [12/16] 0.0, 128
          %1234 = vxpose.xlu0.b32.cont [13/16] 0.0, 128
          %1235 = vxpose.xlu0.b32.cont [14/16] 0.0, 128
          %1236 = vxpose.xlu0.b32.cont [15/16] 0.0, 128
          %1237 = vxpose.xlu0.b32.end [16/16] 0.0, 128
          %v1238 = vpop.trf.xlu0
          %v1239 = vpop.trf.xlu0
          %v1240 = vpop.trf.xlu0
          %v1241 = vpop.trf.xlu0
          %v1242 = vpop.trf.xlu0
          %v1243 = vpop.trf.xlu0
          %v1244 = vpop.trf.xlu0
          %v1245 = vpop.trf.xlu0
          %v1246 = vpop.trf.xlu0
          %v1247 = vpop.trf.xlu0
          %v1248 = vpop.trf.xlu0
          %v1249 = vpop.trf.xlu0
          %v1250 = vpop.trf.xlu0
          %v1251 = vpop.trf.xlu0
          %v1252 = vpop.trf.xlu0
          %v1253 = vpop.trf.xlu0
          %1254 = vxpose.xlu0.b32.start [1/16] %v793, 128
          %1255 = vxpose.xlu0.b32.cont [2/16] %v861, 128
          %1256 = vxpose.xlu0.b32.cont [3/16] 0.0, 128
          %1257 = vxpose.xlu0.b32.cont [4/16] 0.0, 128
          %1258 = vxpose.xlu0.b32.cont [5/16] 0.0, 128
          %1259 = vxpose.xlu0.b32.cont [6/16] 0.0, 128
          %1260 = vxpose.xlu0.b32.cont [7/16] 0.0, 128
          %1261 = vxpose.xlu0.b32.cont [8/16] 0.0, 128
          %1262 = vxpose.xlu0.b32.cont [9/16] 0.0, 128
          %1263 = vxpose.xlu0.b32.cont [10/16] 0.0, 128
          %1264 = vxpose.xlu0.b32.cont [11/16] 0.0, 128
          %1265 = vxpose.xlu0.b32.cont [12/16] 0.0, 128
          %1266 = vxpose.xlu0.b32.cont [13/16] 0.0, 128
          %1267 = vxpose.xlu0.b32.cont [14/16] 0.0, 128
          %1268 = vxpose.xlu0.b32.cont [15/16] 0.0, 128
          %1269 = vxpose.xlu0.b32.end [16/16] 0.0, 128
          %v1270 = vpop.trf.xlu0
          %v1271 = vpop.trf.xlu0
          %v1272 = vpop.trf.xlu0
          %v1273 = vpop.trf.xlu0
          %v1274 = vpop.trf.xlu0
          %v1275 = vpop.trf.xlu0
          %v1276 = vpop.trf.xlu0
          %v1277 = vpop.trf.xlu0
          %v1278 = vpop.trf.xlu0
          %v1279 = vpop.trf.xlu0
          %v1280 = vpop.trf.xlu0
          %v1281 = vpop.trf.xlu0
          %v1282 = vpop.trf.xlu0
          %v1283 = vpop.trf.xlu0
          %v1284 = vpop.trf.xlu0
          %v1285 = vpop.trf.xlu0
          %v1286 = vpack.c.bf16 %v1174, %v1174
          %v1287 = vpack.c.bf16 %v1206, %v1206
          %v1288 = vpack.c.bf16 %v1238, %v1238
          %v1289 = vpack.c.bf16 %v1270, %v1270
          %s1290 = smul.addr %s487, 4
          %s1291 = scalar_lea.vmem [#allocation2], %s1290
          %vm1292 = vcmask 125952
          %1293 = vst.msk [vmem:[%s1291] sm:$0xf] %vm1292, %v1286
          %1294 = vst.msk [vmem:[%s1291 + $0x4] sm:$0xf] %vm1292, %v1287
          %1295 = vst.msk [vmem:[%s1291 + $0x8] sm:$0xf] %vm1292, %v1288
          %1296 = vst.msk [vmem:[%s1291 + $0xc] sm:$0xf] %vm1292, %v1289
          %v1297 = vpack.c.bf16 %v1154, %v1086
          %v1298 = vpack.c.bf16 %v1155, %v1087
          %v1299 = vpack.c.bf16 %v1156, %v1088
          %v1300 = vpack.c.bf16 %v1157, %v1089
          %v1305 = vunpack.c.l.b16 %v1297
          %v1306 = vunpack.c.h.b16 %v1297
          %v1307 = vunpack.c.l.b16 %v1298
          %v1308 = vunpack.c.h.b16 %v1298
          %v1309 = vunpack.c.l.b16 %v1299
          %v1310 = vunpack.c.h.b16 %v1299
          %v1311 = vunpack.c.l.b16 %v1300
          %v1312 = vunpack.c.h.b16 %v1300
          %v1313 = vpack.c.b16 %v1305, %v1305
          %v1314 = vpack.c.b16 %v1306, %v1306
          %v1315 = vpack.c.b16 %v1307, %v1307
          %v1316 = vpack.c.b16 %v1308, %v1308
          %v1317 = vpack.c.b16 %v1309, %v1309
          %v1318 = vpack.c.b16 %v1310, %v1310
          %v1319 = vpack.c.b16 %v1311, %v1311
          %v1320 = vpack.c.b16 %v1312, %v1312
          %s1329 = smul.u32 %s487, 2
          %s1330 = smul.addr %s1329, 4
          %s1331 = scalar_lea.vmem [#allocation3], %s1330
          %vm1332 = vcmask 60416
          %1333 = vst.msk [vmem:[%s1331] sm:$0xf] %vm1332, %v1313
          %1334 = vst.msk [vmem:[%s1331 + $0x4] sm:$0xf] %vm1332, %v1314
          %1335 = vst.msk [vmem:[%s1331 + $0x8] sm:$0xf] %vm1332, %v1315
          %1336 = vst.msk [vmem:[%s1331 + $0xc] sm:$0xf] %vm1332, %v1316
          %1337 = vst.msk [vmem:[%s1331 + $0x10] sm:$0xf] %vm1332, %v1317
          %1338 = vst.msk [vmem:[%s1331 + $0x14] sm:$0xf] %vm1332, %v1318
          %1339 = vst.msk [vmem:[%s1331 + $0x18] sm:$0xf] %vm1332, %v1319
          %1340 = vst.msk [vmem:[%s1331 + $0x1c] sm:$0xf] %vm1332, %v1320
        $region84: #{tpu_custom_call.1} parent=55 // pred_fallthru
          _
        %v1341 = vld [vmem:[%s418] sm:$0xf]
        %v1342 = vld [vmem:[%s418 + $0x4] sm:$0xf]
        %s1343 = smul.addr %s487, 4
        %s1344 = scalar_lea.vmem [#allocation11], %s1343
        %v1345 = vld [vmem:[%s1344] sm:$0xf]
        %v1346 = vld [vmem:[%s1344 + $0x4] sm:$0xf]
        %v1347 = vld [vmem:[%s1344 + $0x8] sm:$0xf]
        %v1348 = vld [vmem:[%s1344 + $0xc] sm:$0xf]
        %s1349 = scalar_lea.vmem %s4, %s35
        %v1350 = vld [vmem:[%s1349] sm:$0x1]
        %v1352 = vlaneseq
        %v1353 = vshrl.u32 %v1352, 7
        %v1354 = vsub.s32 0, %v1353
        %v1355 = vrot.slane %v1350, %v1354
        %v1359 = vunpack.c.l.b16 %v1341
        %v1360 = vunpack.c.l.b16 %v1342
        %v1361 = vpack.c.b16 %v1360, %v1359
        %v1366 = vunpack.c.l.b16 %v1345
        %v1367 = vunpack.c.l.b16 %v1346
        %v1368 = vunpack.c.l.b16 %v1347
        %v1369 = vunpack.c.l.b16 %v1348
        %v1370 = vpack.c.b16 %v1367, %v1366
        %v1371 = vpack.c.b16 %v1369, %v1368
        %vm1374 = vcmask 261120
        %v1376 = vsel %vm1374, %v1361, 0
        %1378 = vmatprep.subr.bf16.mxu0 0
        %1379 = vmatpush1.bf16.msra.mxu0 0
        %1380 = vmatprep.subr.bf16.mxu0 0
        %1381 = vmatpush1.bf16.msra.mxu0 0
        %1382 = vmatprep.subr.bf16.mxu0 0
        %1383 = vmatpush1.bf16.msra.mxu0 0
        %1384 = vmatprep.subr.bf16.mxu0 0
        %1385 = vmatpush1.bf16.msra.mxu0 0
        %1386 = vmatprep.subr.bf16.mxu0 0
        %1387 = vmatpush1.bf16.msra.mxu0 0
        %1388 = vmatprep.subr.bf16.mxu0 0
        %1389 = vmatpush1.bf16.msra.mxu0 0
        %1390 = vmatprep.subr.bf16.mxu0 0
        %1391 = vmatpush1.bf16.msra.mxu0 %v1371
        %1392 = vmatprep.subr.bf16.mxu0 0
        %1393 = vmatpush1.bf16.msra.mxu0 %v1370
        %1394 = vmatprep.subr.bf16.mxu0 0
        %1395 = vmatpush2.bf16.msra.mxu0 0
        %1396 = vmatprep.subr.bf16.mxu0 0
        %1397 = vmatpush2.bf16.msra.mxu0 0
        %1398 = vmatprep.subr.bf16.mxu0 0
        %1399 = vmatpush2.bf16.msra.mxu0 0
        %1400 = vmatprep.subr.bf16.mxu0 0
        %1401 = vmatpush2.bf16.msra.mxu0 0
        %1402 = vmatprep.subr.bf16.mxu0 0
        %1403 = vmatpush2.bf16.msra.mxu0 0
        %1404 = vmatprep.subr.bf16.mxu0 0
        %1405 = vmatpush2.bf16.msra.mxu0 0
        %1406 = vmatprep.subr.bf16.mxu0 0
        %1407 = vmatpush2.bf16.msra.mxu0 0
        %1408 = vmatprep.subr.bf16.mxu0 0
        %1409 = vmatpush2.bf16.msra.mxu0 0
        %1410 = vmatprep.mubr.bf16.mxu0 0
        %1411 = vmatmul.mubr.bf16.gmra.mxu0 %v1376
        %v1412 = vpop.f32.mrf.mxu0
        %v1413 = vadd.f32 %v1355, %v1412
        %v1414 = vpop.f32.mrf.mxu0
        %v1415 = vpop.f32.mrf.mxu0
        %v1416 = vadd.f32 %v1355, %v1415
        %v1417 = vpop.f32.mrf.mxu0
        %1418 = vdwg.mxu0
        %1421 = vrot.lane.b32.xlu0 %v1413, 120
        %v1422 = vpop.permute.xlu0 %1421
        %1423 = vrot.lane.b32.xlu0 %v1416, 120
        %v1424 = vpop.permute.xlu0 %1423
        %1427 = vrot.lane.b32.xlu0 %v1413, 112
        %v1428 = vpop.permute.xlu0 %1427
        %1429 = vrot.lane.b32.xlu0 %v1416, 112
        %v1430 = vpop.permute.xlu0 %1429
        %1433 = vrot.lane.b32.xlu0 %v1413, 104
        %v1434 = vpop.permute.xlu0 %1433
        %1435 = vrot.lane.b32.xlu0 %v1416, 104
        %v1436 = vpop.permute.xlu0 %1435
        %v1439 = vcombine.low %v1413, %v1428
        %v1440 = vcombine.high %v1413, %v1428
        %v1442 = vunpack.c.l.s4 1983009808
        %v1443 = vunpack.c.0.s8 %v1442
        %v1444 = vlaneseq
        %v1445 = vshrl.u32 %v1444, 7
        %v1446 = vsub.s32 %v1443, %v1445
        %v1447 = vrot.slane %v1439, %v1446
        %v1449 = vunpack.c.l.s4 1983009808
        %v1450 = vunpack.c.0.s8 %v1449
        %v1451 = vlaneseq
        %v1452 = vshrl.u32 %v1451, 7
        %v1453 = vsub.s32 %v1450, %v1452
        %v1454 = vrot.slane %v1440, %v1453
        %v1455 = vcombine.low %v1422, %v1434
        %v1456 = vcombine.high %v1422, %v1434
        %v1458 = vunpack.c.l.s4 1983009808
        %v1459 = vunpack.c.0.s8 %v1458
        %v1460 = vlaneseq
        %v1461 = vshrl.u32 %v1460, 7
        %v1462 = vsub.s32 %v1459, %v1461
        %v1463 = vrot.slane %v1455, %v1462
        %v1465 = vunpack.c.l.s4 1983009808
        %v1466 = vunpack.c.0.s8 %v1465
        %v1467 = vlaneseq
        %v1468 = vshrl.u32 %v1467, 7
        %v1469 = vsub.s32 %v1466, %v1468
        %v1470 = vrot.slane %v1456, %v1469
        %v1471 = vcombine.low %v1447, %v1463
        %v1472 = vcombine.high %v1447, %v1463
        %v1474 = vunpack.c.l.s4 1934713408
        %v1475 = vunpack.c.0.s8 %v1474
        %v1476 = vlaneseq
        %v1477 = vshrl.u32 %v1476, 7
        %v1478 = vsub.s32 %v1475, %v1477
        %v1479 = vrot.slane %v1471, %v1478
        %v1481 = vunpack.c.l.s4 1934713408
        %v1482 = vunpack.c.0.s8 %v1481
        %v1483 = vlaneseq
        %v1484 = vshrl.u32 %v1483, 7
        %v1485 = vsub.s32 %v1482, %v1484
        %v1486 = vrot.slane %v1472, %v1485
        %v1487 = vcombine.low %v1454, %v1470
        %v1488 = vcombine.high %v1454, %v1470
        %v1490 = vunpack.c.l.s4 1934713408
        %v1491 = vunpack.c.0.s8 %v1490
        %v1492 = vlaneseq
        %v1493 = vshrl.u32 %v1492, 7
        %v1494 = vsub.s32 %v1491, %v1493
        %v1495 = vrot.slane %v1487, %v1494
        %v1497 = vunpack.c.l.s4 1934713408
        %v1498 = vunpack.c.0.s8 %v1497
        %v1499 = vlaneseq
        %v1500 = vshrl.u32 %v1499, 7
        %v1501 = vsub.s32 %v1498, %v1500
        %v1502 = vrot.slane %v1488, %v1501
        %v1503 = vcombine.high %v1479, 0.0
        %v1504 = vcombine.high %v1486, 0.0
        %v1505 = vcombine.high %v1495, 0.0
        %v1506 = vcombine.high %v1502, 0.0
        %v1507 = vcombine.low %v1416, %v1430
        %v1508 = vcombine.high %v1416, %v1430
        %v1510 = vunpack.c.l.s4 1983009808
        %v1511 = vunpack.c.0.s8 %v1510
        %v1512 = vlaneseq
        %v1513 = vshrl.u32 %v1512, 7
        %v1514 = vsub.s32 %v1511, %v1513
        %v1515 = vrot.slane %v1507, %v1514
        %v1517 = vunpack.c.l.s4 1983009808
        %v1518 = vunpack.c.0.s8 %v1517
        %v1519 = vlaneseq
        %v1520 = vshrl.u32 %v1519, 7
        %v1521 = vsub.s32 %v1518, %v1520
        %v1522 = vrot.slane %v1508, %v1521
        %v1523 = vcombine.low %v1424, %v1436
        %v1524 = vcombine.high %v1424, %v1436
        %v1526 = vunpack.c.l.s4 1983009808
        %v1527 = vunpack.c.0.s8 %v1526
        %v1528 = vlaneseq
        %v1529 = vshrl.u32 %v1528, 7
        %v1530 = vsub.s32 %v1527, %v1529
        %v1531 = vrot.slane %v1523, %v1530
        %v1533 = vunpack.c.l.s4 1983009808
        %v1534 = vunpack.c.0.s8 %v1533
        %v1535 = vlaneseq
        %v1536 = vshrl.u32 %v1535, 7
        %v1537 = vsub.s32 %v1534, %v1536
        %v1538 = vrot.slane %v1524, %v1537
        %v1539 = vcombine.low %v1515, %v1531
        %v1540 = vcombine.high %v1515, %v1531
        %v1542 = vunpack.c.l.s4 1934713408
        %v1543 = vunpack.c.0.s8 %v1542
        %v1544 = vlaneseq
        %v1545 = vshrl.u32 %v1544, 7
        %v1546 = vsub.s32 %v1543, %v1545
        %v1547 = vrot.slane %v1539, %v1546
        %v1549 = vunpack.c.l.s4 1934713408
        %v1550 = vunpack.c.0.s8 %v1549
        %v1551 = vlaneseq
        %v1552 = vshrl.u32 %v1551, 7
        %v1553 = vsub.s32 %v1550, %v1552
        %v1554 = vrot.slane %v1540, %v1553
        %v1555 = vcombine.low %v1522, %v1538
        %v1556 = vcombine.high %v1522, %v1538
        %v1558 = vunpack.c.l.s4 1934713408
        %v1559 = vunpack.c.0.s8 %v1558
        %v1560 = vlaneseq
        %v1561 = vshrl.u32 %v1560, 7
        %v1562 = vsub.s32 %v1559, %v1561
        %v1563 = vrot.slane %v1555, %v1562
        %v1565 = vunpack.c.l.s4 1934713408
        %v1566 = vunpack.c.0.s8 %v1565
        %v1567 = vlaneseq
        %v1568 = vshrl.u32 %v1567, 7
        %v1569 = vsub.s32 %v1566, %v1568
        %v1570 = vrot.slane %v1556, %v1569
        %v1571 = vcombine.high %v1547, 0.0
        %v1572 = vcombine.high %v1554, 0.0
        %v1573 = vcombine.high %v1563, 0.0
        %v1574 = vcombine.high %v1570, 0.0
        %v1575 = vcombine.low %v1479, %v1486
        %v1577 = vunpack.c.l.s4 1983009808
        %v1578 = vunpack.c.0.s8 %v1577
        %v1579 = vlaneseq
        %v1580 = vshrl.u32 %v1579, 7
        %v1581 = vsub.s32 %v1578, %v1580
        %v1582 = vrot.slane %v1575, %v1581
        %v1583 = vcombine.low %v1503, %v1504
        %v1585 = vunpack.c.l.s4 1983009808
        %v1586 = vunpack.c.0.s8 %v1585
        %v1587 = vlaneseq
        %v1588 = vshrl.u32 %v1587, 7
        %v1589 = vsub.s32 %v1586, %v1588
        %v1590 = vrot.slane %v1583, %v1589
        %v1591 = vcombine.low %v1495, %v1502
        %v1593 = vunpack.c.l.s4 1983009808
        %v1594 = vunpack.c.0.s8 %v1593
        %v1595 = vlaneseq
        %v1596 = vshrl.u32 %v1595, 7
        %v1597 = vsub.s32 %v1594, %v1596
        %v1598 = vrot.slane %v1591, %v1597
        %v1599 = vcombine.low %v1505, %v1506
        %v1601 = vunpack.c.l.s4 1983009808
        %v1602 = vunpack.c.0.s8 %v1601
        %v1603 = vlaneseq
        %v1604 = vshrl.u32 %v1603, 7
        %v1605 = vsub.s32 %v1602, %v1604
        %v1606 = vrot.slane %v1599, %v1605
        %v1607 = vcombine.low %v1582, %v1590
        %v1608 = vcombine.high %v1582, %v1590
        %v1610 = vunpack.c.l.s4 1934713408
        %v1611 = vunpack.c.0.s8 %v1610
        %v1612 = vlaneseq
        %v1613 = vshrl.u32 %v1612, 7
        %v1614 = vsub.s32 %v1611, %v1613
        %v1615 = vrot.slane %v1607, %v1614
        %v1617 = vunpack.c.l.s4 1934713408
        %v1618 = vunpack.c.0.s8 %v1617
        %v1619 = vlaneseq
        %v1620 = vshrl.u32 %v1619, 7
        %v1621 = vsub.s32 %v1618, %v1620
        %v1622 = vrot.slane %v1608, %v1621
        %v1623 = vcombine.low %v1598, %v1606
        %v1624 = vcombine.high %v1598, %v1606
        %v1626 = vunpack.c.l.s4 1934713408
        %v1627 = vunpack.c.0.s8 %v1626
        %v1628 = vlaneseq
        %v1629 = vshrl.u32 %v1628, 7
        %v1630 = vsub.s32 %v1627, %v1629
        %v1631 = vrot.slane %v1623, %v1630
        %v1633 = vunpack.c.l.s4 1934713408
        %v1634 = vunpack.c.0.s8 %v1633
        %v1635 = vlaneseq
        %v1636 = vshrl.u32 %v1635, 7
        %v1637 = vsub.s32 %v1634, %v1636
        %v1638 = vrot.slane %v1624, %v1637
        %v1639 = vcombine.low %v1615, %v1631
        %v1640 = vcombine.high %v1615, %v1631
        %v1641 = vcombine.low %v1622, %v1638
        %v1642 = vcombine.high %v1622, %v1638
        %v1643 = vcombine.low %v1547, %v1554
        %v1645 = vunpack.c.l.s4 1983009808
        %v1646 = vunpack.c.0.s8 %v1645
        %v1647 = vlaneseq
        %v1648 = vshrl.u32 %v1647, 7
        %v1649 = vsub.s32 %v1646, %v1648
        %v1650 = vrot.slane %v1643, %v1649
        %v1651 = vcombine.low %v1571, %v1572
        %v1653 = vunpack.c.l.s4 1983009808
        %v1654 = vunpack.c.0.s8 %v1653
        %v1655 = vlaneseq
        %v1656 = vshrl.u32 %v1655, 7
        %v1657 = vsub.s32 %v1654, %v1656
        %v1658 = vrot.slane %v1651, %v1657
        %v1659 = vcombine.low %v1563, %v1570
        %v1661 = vunpack.c.l.s4 1983009808
        %v1662 = vunpack.c.0.s8 %v1661
        %v1663 = vlaneseq
        %v1664 = vshrl.u32 %v1663, 7
        %v1665 = vsub.s32 %v1662, %v1664
        %v1666 = vrot.slane %v1659, %v1665
        %v1667 = vcombine.low %v1573, %v1574
        %v1669 = vunpack.c.l.s4 1983009808
        %v1670 = vunpack.c.0.s8 %v1669
        %v1671 = vlaneseq
        %v1672 = vshrl.u32 %v1671, 7
        %v1673 = vsub.s32 %v1670, %v1672
        %v1674 = vrot.slane %v1667, %v1673
        %v1675 = vcombine.low %v1650, %v1658
        %v1676 = vcombine.high %v1650, %v1658
        %v1678 = vunpack.c.l.s4 1934713408
        %v1679 = vunpack.c.0.s8 %v1678
        %v1680 = vlaneseq
        %v1681 = vshrl.u32 %v1680, 7
        %v1682 = vsub.s32 %v1679, %v1681
        %v1683 = vrot.slane %v1675, %v1682
        %v1685 = vunpack.c.l.s4 1934713408
        %v1686 = vunpack.c.0.s8 %v1685
        %v1687 = vlaneseq
        %v1688 = vshrl.u32 %v1687, 7
        %v1689 = vsub.s32 %v1686, %v1688
        %v1690 = vrot.slane %v1676, %v1689
        %v1691 = vcombine.low %v1666, %v1674
        %v1692 = vcombine.high %v1666, %v1674
        %v1694 = vunpack.c.l.s4 1934713408
        %v1695 = vunpack.c.0.s8 %v1694
        %v1696 = vlaneseq
        %v1697 = vshrl.u32 %v1696, 7
        %v1698 = vsub.s32 %v1695, %v1697
        %v1699 = vrot.slane %v1691, %v1698
        %v1701 = vunpack.c.l.s4 1934713408
        %v1702 = vunpack.c.0.s8 %v1701
        %v1703 = vlaneseq
        %v1704 = vshrl.u32 %v1703, 7
        %v1705 = vsub.s32 %v1702, %v1704
        %v1706 = vrot.slane %v1692, %v1705
        %v1707 = vcombine.low %v1683, %v1699
        %v1708 = vcombine.high %v1683, %v1699
        %v1709 = vcombine.low %v1690, %v1706
        %v1710 = vcombine.high %v1690, %v1706
        %v1711 = vpack.c.bf16 %v1707, %v1639
        %v1712 = vpack.c.bf16 %v1708, %v1640
        %v1713 = vpack.c.bf16 %v1709, %v1641
        %v1714 = vpack.c.bf16 %v1710, %v1642
        %s1715 = smul.addr %s487, 4
        %s1716 = scalar_lea.vmem [#allocation2], %s1715
        %v1717 = vld [vmem:[%s1716] sm:$0xf]
        %v1718 = vld [vmem:[%s1716 + $0x4] sm:$0xf]
        %v1719 = vld [vmem:[%s1716 + $0x8] sm:$0xf]
        %v1720 = vld [vmem:[%s1716 + $0xc] sm:$0xf]
        %v1721 = vld [vmem:[%s431] sm:$0xf]
        %v1722 = vld [vmem:[%s431 + $0x4] sm:$0xf]
        %v1723 = vunpack.c.l.bf16 %v1721
        %v1724 = vunpack.c.l.bf16 %v1722
        %vm1725 = vcmask 64512
        %v1727 = vsel %vm1725, %v1711, 0
        %vm1729 = vcmask 1043456
        %v1731 = vsel %vm1729, %v1717, 0
        %1733 = vmatprep.subr.bf16.mxu0 0
        %1734 = vmatpush1.bf16.msra.mxu0 0
        %1735 = vmatprep.subr.bf16.mxu0 0
        %1736 = vmatpush1.bf16.msra.mxu0 0
        %1737 = vmatprep.subr.bf16.mxu0 0
        %1738 = vmatpush1.bf16.msra.mxu0 0
        %1739 = vmatprep.subr.bf16.mxu0 0
        %1740 = vmatpush1.bf16.msra.mxu0 0
        %1741 = vmatprep.subr.bf16.mxu0 0
        %1742 = vmatpush1.bf16.msra.mxu0 0
        %1743 = vmatprep.subr.bf16.mxu0 0
        %1744 = vmatpush1.bf16.msra.mxu0 0
        %1745 = vmatprep.subr.bf16.mxu0 0
        %1746 = vmatpush1.bf16.msra.mxu0 0
        %1747 = vmatprep.subr.bf16.mxu0 0
        %1748 = vmatpush1.bf16.msra.mxu0 %v1731
        %1749 = vmatprep.subr.bf16.mxu0 0
        %1750 = vmatpush2.bf16.msra.mxu0 0
        %1751 = vmatprep.subr.bf16.mxu0 0
        %1752 = vmatpush2.bf16.msra.mxu0 0
        %1753 = vmatprep.subr.bf16.mxu0 0
        %1754 = vmatpush2.bf16.msra.mxu0 0
        %1755 = vmatprep.subr.bf16.mxu0 0
        %1756 = vmatpush2.bf16.msra.mxu0 0
        %1757 = vmatprep.subr.bf16.mxu0 0
        %1758 = vmatpush2.bf16.msra.mxu0 0
        %1759 = vmatprep.subr.bf16.mxu0 0
        %1760 = vmatpush2.bf16.msra.mxu0 0
        %1761 = vmatprep.subr.bf16.mxu0 0
        %1762 = vmatpush2.bf16.msra.mxu0 0
        %1763 = vmatprep.subr.bf16.mxu0 0
        %1764 = vmatpush2.bf16.msra.mxu0 0
        %1765 = vmatprep.mubr.bf16.mxu0 0
        %1766 = vmatmul.mubr.bf16.gmra.mxu0 %v1727
        %v1767 = vpop.f32.mrf.mxu0
        %v1768 = vadd.f32 %v1723, %v1767
        %v1769 = vpop.f32.mrf.mxu0
        %v1770 = vpop.f32.mrf.mxu0
        %v1771 = vadd.f32 %v1724, %v1770
        %v1772 = vpop.f32.mrf.mxu0
        %1773 = vdwg.mxu0
        %v1775 = vsel %vm1725, %v1712, 0
        %v1778 = vsel %vm1729, %v1718, 0
        %1780 = vmatprep.subr.bf16.mxu0 0
        %1781 = vmatpush1.bf16.msra.mxu0 0
        %1782 = vmatprep.subr.bf16.mxu0 0
        %1783 = vmatpush1.bf16.msra.mxu0 0
        %1784 = vmatprep.subr.bf16.mxu0 0
        %1785 = vmatpush1.bf16.msra.mxu0 0
        %1786 = vmatprep.subr.bf16.mxu0 0
        %1787 = vmatpush1.bf16.msra.mxu0 0
        %1788 = vmatprep.subr.bf16.mxu0 0
        %1789 = vmatpush1.bf16.msra.mxu0 0
        %1790 = vmatprep.subr.bf16.mxu0 0
        %1791 = vmatpush1.bf16.msra.mxu0 0
        %1792 = vmatprep.subr.bf16.mxu0 0
        %1793 = vmatpush1.bf16.msra.mxu0 0
        %1794 = vmatprep.subr.bf16.mxu0 0
        %1795 = vmatpush1.bf16.msra.mxu0 %v1778
        %1796 = vmatprep.subr.bf16.mxu0 0
        %1797 = vmatpush2.bf16.msra.mxu0 0
        %1798 = vmatprep.subr.bf16.mxu0 0
        %1799 = vmatpush2.bf16.msra.mxu0 0
        %1800 = vmatprep.subr.bf16.mxu0 0
        %1801 = vmatpush2.bf16.msra.mxu0 0
        %1802 = vmatprep.subr.bf16.mxu0 0
        %1803 = vmatpush2.bf16.msra.mxu0 0
        %1804 = vmatprep.subr.bf16.mxu0 0
        %1805 = vmatpush2.bf16.msra.mxu0 0
        %1806 = vmatprep.subr.bf16.mxu0 0
        %1807 = vmatpush2.bf16.msra.mxu0 0
        %1808 = vmatprep.subr.bf16.mxu0 0
        %1809 = vmatpush2.bf16.msra.mxu0 0
        %1810 = vmatprep.subr.bf16.mxu0 0
        %1811 = vmatpush2.bf16.msra.mxu0 0
        %1812 = vmatprep.mubr.bf16.mxu0 0
        %1813 = vmatmul.mubr.bf16.gmra.mxu0 %v1775
        %v1814 = vpop.f32.mrf.mxu0
        %v1815 = vadd.f32 %v1723, %v1814
        %v1816 = vpop.f32.mrf.mxu0
        %v1817 = vpop.f32.mrf.mxu0
        %v1818 = vadd.f32 %v1724, %v1817
        %v1819 = vpop.f32.mrf.mxu0
        %1820 = vdwg.mxu0
        %v1822 = vsel %vm1725, %v1713, 0
        %v1825 = vsel %vm1729, %v1719, 0
        %1827 = vmatprep.subr.bf16.mxu0 0
        %1828 = vmatpush1.bf16.msra.mxu0 0
        %1829 = vmatprep.subr.bf16.mxu0 0
        %1830 = vmatpush1.bf16.msra.mxu0 0
        %1831 = vmatprep.subr.bf16.mxu0 0
        %1832 = vmatpush1.bf16.msra.mxu0 0
        %1833 = vmatprep.subr.bf16.mxu0 0
        %1834 = vmatpush1.bf16.msra.mxu0 0
        %1835 = vmatprep.subr.bf16.mxu0 0
        %1836 = vmatpush1.bf16.msra.mxu0 0
        %1837 = vmatprep.subr.bf16.mxu0 0
        %1838 = vmatpush1.bf16.msra.mxu0 0
        %1839 = vmatprep.subr.bf16.mxu0 0
        %1840 = vmatpush1.bf16.msra.mxu0 0
        %1841 = vmatprep.subr.bf16.mxu0 0
        %1842 = vmatpush1.bf16.msra.mxu0 %v1825
        %1843 = vmatprep.subr.bf16.mxu0 0
        %1844 = vmatpush2.bf16.msra.mxu0 0
        %1845 = vmatprep.subr.bf16.mxu0 0
        %1846 = vmatpush2.bf16.msra.mxu0 0
        %1847 = vmatprep.subr.bf16.mxu0 0
        %1848 = vmatpush2.bf16.msra.mxu0 0
        %1849 = vmatprep.subr.bf16.mxu0 0
        %1850 = vmatpush2.bf16.msra.mxu0 0
        %1851 = vmatprep.subr.bf16.mxu0 0
        %1852 = vmatpush2.bf16.msra.mxu0 0
        %1853 = vmatprep.subr.bf16.mxu0 0
        %1854 = vmatpush2.bf16.msra.mxu0 0
        %1855 = vmatprep.subr.bf16.mxu0 0
        %1856 = vmatpush2.bf16.msra.mxu0 0
        %1857 = vmatprep.subr.bf16.mxu0 0
        %1858 = vmatpush2.bf16.msra.mxu0 0
        %1859 = vmatprep.mubr.bf16.mxu0 0
        %1860 = vmatmul.mubr.bf16.gmra.mxu0 %v1822
        %v1861 = vpop.f32.mrf.mxu0
        %v1862 = vadd.f32 %v1723, %v1861
        %v1863 = vpop.f32.mrf.mxu0
        %v1864 = vpop.f32.mrf.mxu0
        %v1865 = vadd.f32 %v1724, %v1864
        %v1866 = vpop.f32.mrf.mxu0
        %1867 = vdwg.mxu0
        %v1869 = vsel %vm1725, %v1714, 0
        %v1872 = vsel %vm1729, %v1720, 0
        %1874 = vmatprep.subr.bf16.mxu0 0
        %1875 = vmatpush1.bf16.msra.mxu0 0
        %1876 = vmatprep.subr.bf16.mxu0 0
        %1877 = vmatpush1.bf16.msra.mxu0 0
        %1878 = vmatprep.subr.bf16.mxu0 0
        %1879 = vmatpush1.bf16.msra.mxu0 0
        %1880 = vmatprep.subr.bf16.mxu0 0
        %1881 = vmatpush1.bf16.msra.mxu0 0
        %1882 = vmatprep.subr.bf16.mxu0 0
        %1883 = vmatpush1.bf16.msra.mxu0 0
        %1884 = vmatprep.subr.bf16.mxu0 0
        %1885 = vmatpush1.bf16.msra.mxu0 0
        %1886 = vmatprep.subr.bf16.mxu0 0
        %1887 = vmatpush1.bf16.msra.mxu0 0
        %1888 = vmatprep.subr.bf16.mxu0 0
        %1889 = vmatpush1.bf16.msra.mxu0 %v1872
        %1890 = vmatprep.subr.bf16.mxu0 0
        %1891 = vmatpush2.bf16.msra.mxu0 0
        %1892 = vmatprep.subr.bf16.mxu0 0
        %1893 = vmatpush2.bf16.msra.mxu0 0
        %1894 = vmatprep.subr.bf16.mxu0 0
        %1895 = vmatpush2.bf16.msra.mxu0 0
        %1896 = vmatprep.subr.bf16.mxu0 0
        %1897 = vmatpush2.bf16.msra.mxu0 0
        %1898 = vmatprep.subr.bf16.mxu0 0
        %1899 = vmatpush2.bf16.msra.mxu0 0
        %1900 = vmatprep.subr.bf16.mxu0 0
        %1901 = vmatpush2.bf16.msra.mxu0 0
        %1902 = vmatprep.subr.bf16.mxu0 0
        %1903 = vmatpush2.bf16.msra.mxu0 0
        %1904 = vmatprep.subr.bf16.mxu0 0
        %1905 = vmatpush2.bf16.msra.mxu0 0
        %1906 = vmatprep.mubr.bf16.mxu0 0
        %1907 = vmatmul.mubr.bf16.gmra.mxu0 %v1869
        %v1908 = vpop.f32.mrf.mxu0
        %v1909 = vadd.f32 %v1723, %v1908
        %v1910 = vpop.f32.mrf.mxu0
        %v1911 = vpop.f32.mrf.mxu0
        %v1912 = vadd.f32 %v1724, %v1911
        %v1913 = vpop.f32.mrf.mxu0
        %1914 = vdwg.mxu0
        %vm1915 = vcmask 130048
        %v1916 = vsel %vm1915, %v1768, -inf
        %1917 = vmax.xlane.f32.xlu0 %v1916
        %v1918 = vpop.xlane.xlu0 %1917
        %v1919 = vsel %vm1915, %v1771, -inf
        %1920 = vmax.xlane.f32.xlu0 %v1919
        %v1921 = vpop.xlane.xlu0 %1920
        %v1922 = vsel %vm1915, %v1815, -inf
        %1923 = vmax.xlane.f32.xlu0 %v1922
        %v1924 = vpop.xlane.xlu0 %1923
        %v1925 = vsel %vm1915, %v1818, -inf
        %1926 = vmax.xlane.f32.xlu0 %v1925
        %v1927 = vpop.xlane.xlu0 %1926
        %v1928 = vsel %vm1915, %v1862, -inf
        %1929 = vmax.xlane.f32.xlu0 %v1928
        %v1930 = vpop.xlane.xlu0 %1929
        %v1931 = vsel %vm1915, %v1865, -inf
        %1932 = vmax.xlane.f32.xlu0 %v1931
        %v1933 = vpop.xlane.xlu0 %1932
        %v1934 = vsel %vm1915, %v1909, -inf
        %1935 = vmax.xlane.f32.xlu0 %v1934
        %v1936 = vpop.xlane.xlu0 %1935
        %v1937 = vsel %vm1915, %v1912, -inf
        %1938 = vmax.xlane.f32.xlu0 %v1937
        %v1939 = vpop.xlane.xlu0 %1938
        %v1940 = vsub.f32 %v1768, %v1918
        %v1941 = vsub.f32 %v1771, %v1921
        %v1942 = vsub.f32 %v1815, %v1924
        %v1943 = vsub.f32 %v1818, %v1927
        %v1944 = vsub.f32 %v1862, %v1930
        %v1945 = vsub.f32 %v1865, %v1933
        %v1946 = vsub.f32 %v1909, %v1936
        %v1947 = vsub.f32 %v1912, %v1939
        %v1948 = vmul.f32 %v1940, 1.442695
        %v1949 = vpow.pop %v1948
        %v1950 = vmul.f32 %v1941, 1.442695
        %v1951 = vpow.pop %v1950
        %v1952 = vmul.f32 %v1942, 1.442695
        %v1953 = vpow.pop %v1952
        %v1954 = vmul.f32 %v1943, 1.442695
        %v1955 = vpow.pop %v1954
        %v1956 = vmul.f32 %v1944, 1.442695
        %v1957 = vpow.pop %v1956
        %v1958 = vmul.f32 %v1945, 1.442695
        %v1959 = vpow.pop %v1958
        %v1960 = vmul.f32 %v1946, 1.442695
        %v1961 = vpow.pop %v1960
        %v1962 = vmul.f32 %v1947, 1.442695
        %v1963 = vpow.pop %v1962
        %v1964 = vsel %vm1915, %v1949, 0.0
        %1965 = vadd.xlane.f32.xlu0 %v1964
        %v1966 = vpop.xlane.xlu0 %1965
        %v1967 = vsel %vm1915, %v1951, 0.0
        %1968 = vadd.xlane.f32.xlu0 %v1967
        %v1969 = vpop.xlane.xlu0 %1968
        %v1970 = vsel %vm1915, %v1953, 0.0
        %1971 = vadd.xlane.f32.xlu0 %v1970
        %v1972 = vpop.xlane.xlu0 %1971
        %v1973 = vsel %vm1915, %v1955, 0.0
        %1974 = vadd.xlane.f32.xlu0 %v1973
        %v1975 = vpop.xlane.xlu0 %1974
        %v1976 = vsel %vm1915, %v1957, 0.0
        %1977 = vadd.xlane.f32.xlu0 %v1976
        %v1978 = vpop.xlane.xlu0 %1977
        %v1979 = vsel %vm1915, %v1959, 0.0
        %1980 = vadd.xlane.f32.xlu0 %v1979
        %v1981 = vpop.xlane.xlu0 %1980
        %v1982 = vsel %vm1915, %v1961, 0.0
        %1983 = vadd.xlane.f32.xlu0 %v1982
        %v1984 = vpop.xlane.xlu0 %1983
        %v1985 = vsel %vm1915, %v1963, 0.0
        %1986 = vadd.xlane.f32.xlu0 %v1985
        %v1987 = vpop.xlane.xlu0 %1986
        %v1988 = vrcp.pop %v1966
        %v1989 = vrcp.pop %v1969
        %v1990 = vrcp.pop %v1972
        %v1991 = vrcp.pop %v1975
        %v1992 = vrcp.pop %v1978
        %v1993 = vrcp.pop %v1981
        %v1994 = vrcp.pop %v1984
        %v1995 = vrcp.pop %v1987
        %s1996 = smul.u32 %s487, 2
        %s1997 = smul.addr %s1996, 4
        %s1998 = scalar_lea.vmem [#allocation3], %s1997
        %v1999 = vld [vmem:[%s1998] sm:$0xf]
        %v2000 = vld [vmem:[%s1998 + $0x4] sm:$0xf]
        %v2001 = vld [vmem:[%s1998 + $0x8] sm:$0xf]
        %v2002 = vld [vmem:[%s1998 + $0xc] sm:$0xf]
        %v2003 = vld [vmem:[%s1998 + $0x10] sm:$0xf]
        %v2004 = vld [vmem:[%s1998 + $0x14] sm:$0xf]
        %v2005 = vld [vmem:[%s1998 + $0x18] sm:$0xf]
        %v2006 = vld [vmem:[%s1998 + $0x1c] sm:$0xf]
        %v2007 = vpack.c.bf16 %v1951, %v1949
        %v2008 = vpack.c.bf16 %v1955, %v1953
        %v2009 = vpack.c.bf16 %v1959, %v1957
        %v2010 = vpack.c.bf16 %v1963, %v1961
        %v2013 = vunpack.c.l.b16 %v1999
        %v2014 = vunpack.c.l.b16 %v2000
        %v2015 = vpack.c.b16 %v2014, %v2013
        %v2018 = vsel %vm1915, %v2007, 0
        %2020 = vmatprep.subr.bf16.mxu0 0
        %2021 = vmatpush1.bf16.msra.mxu0 0
        %2022 = vmatprep.subr.bf16.mxu0 0
        %2023 = vmatpush1.bf16.msra.mxu0 0
        %2024 = vmatprep.subr.bf16.mxu0 0
        %2025 = vmatpush1.bf16.msra.mxu0 0
        %2026 = vmatprep.subr.bf16.mxu0 0
        %2027 = vmatpush1.bf16.msra.mxu0 0
        %2028 = vmatprep.subr.bf16.mxu0 0
        %2029 = vmatpush1.bf16.msra.mxu0 0
        %2030 = vmatprep.subr.bf16.mxu0 0
        %2031 = vmatpush1.bf16.msra.mxu0 0
        %2032 = vmatprep.subr.bf16.mxu0 0
        %2033 = vmatpush1.bf16.msra.mxu0 0
        %2034 = vmatprep.subr.bf16.mxu0 0
        %2035 = vmatpush1.bf16.msra.mxu0 %v2015
        %2036 = vmatprep.subr.bf16.mxu0 0
        %2037 = vmatpush2.bf16.msra.mxu0 0
        %2038 = vmatprep.subr.bf16.mxu0 0
        %2039 = vmatpush2.bf16.msra.mxu0 0
        %2040 = vmatprep.subr.bf16.mxu0 0
        %2041 = vmatpush2.bf16.msra.mxu0 0
        %2042 = vmatprep.subr.bf16.mxu0 0
        %2043 = vmatpush2.bf16.msra.mxu0 0
        %2044 = vmatprep.subr.bf16.mxu0 0
        %2045 = vmatpush2.bf16.msra.mxu0 0
        %2046 = vmatprep.subr.bf16.mxu0 0
        %2047 = vmatpush2.bf16.msra.mxu0 0
        %2048 = vmatprep.subr.bf16.mxu0 0
        %2049 = vmatpush2.bf16.msra.mxu0 0
        %2050 = vmatprep.subr.bf16.mxu0 0
        %2051 = vmatpush2.bf16.msra.mxu0 0
        %2052 = vmatprep.mubr.bf16.mxu0 0
        %2053 = vmatmul.mubr.bf16.gmra.mxu0 %v2018
        %v2054 = vpop.f32.mrf.mxu0
        %v2055 = vadd.f32 0.0, %v2054
        %v2056 = vpop.f32.mrf.mxu0
        %v2057 = vpop.f32.mrf.mxu0
        %v2058 = vadd.f32 0.0, %v2057
        %v2059 = vpop.f32.mrf.mxu0
        %2060 = vdwg.mxu0
        %v2063 = vunpack.c.l.b16 %v2001
        %v2064 = vunpack.c.l.b16 %v2002
        %v2065 = vpack.c.b16 %v2064, %v2063
        %v2068 = vsel %vm1915, %v2008, 0
        %2070 = vmatprep.subr.bf16.mxu0 0
        %2071 = vmatpush1.bf16.msra.mxu0 0
        %2072 = vmatprep.subr.bf16.mxu0 0
        %2073 = vmatpush1.bf16.msra.mxu0 0
        %2074 = vmatprep.subr.bf16.mxu0 0
        %2075 = vmatpush1.bf16.msra.mxu0 0
        %2076 = vmatprep.subr.bf16.mxu0 0
        %2077 = vmatpush1.bf16.msra.mxu0 0
        %2078 = vmatprep.subr.bf16.mxu0 0
        %2079 = vmatpush1.bf16.msra.mxu0 0
        %2080 = vmatprep.subr.bf16.mxu0 0
        %2081 = vmatpush1.bf16.msra.mxu0 0
        %2082 = vmatprep.subr.bf16.mxu0 0
        %2083 = vmatpush1.bf16.msra.mxu0 0
        %2084 = vmatprep.subr.bf16.mxu0 0
        %2085 = vmatpush1.bf16.msra.mxu0 %v2065
        %2086 = vmatprep.subr.bf16.mxu0 0
        %2087 = vmatpush2.bf16.msra.mxu0 0
        %2088 = vmatprep.subr.bf16.mxu0 0
        %2089 = vmatpush2.bf16.msra.mxu0 0
        %2090 = vmatprep.subr.bf16.mxu0 0
        %2091 = vmatpush2.bf16.msra.mxu0 0
        %2092 = vmatprep.subr.bf16.mxu0 0
        %2093 = vmatpush2.bf16.msra.mxu0 0
        %2094 = vmatprep.subr.bf16.mxu0 0
        %2095 = vmatpush2.bf16.msra.mxu0 0
        %2096 = vmatprep.subr.bf16.mxu0 0
        %2097 = vmatpush2.bf16.msra.mxu0 0
        %2098 = vmatprep.subr.bf16.mxu0 0
        %2099 = vmatpush2.bf16.msra.mxu0 0
        %2100 = vmatprep.subr.bf16.mxu0 0
        %2101 = vmatpush2.bf16.msra.mxu0 0
        %2102 = vmatprep.mubr.bf16.mxu0 0
        %2103 = vmatmul.mubr.bf16.gmra.mxu0 %v2068
        %v2104 = vpop.f32.mrf.mxu0
        %v2105 = vadd.f32 0.0, %v2104
        %v2106 = vpop.f32.mrf.mxu0
        %v2107 = vpop.f32.mrf.mxu0
        %v2108 = vadd.f32 0.0, %v2107
        %v2109 = vpop.f32.mrf.mxu0
        %2110 = vdwg.mxu0
        %v2113 = vunpack.c.l.b16 %v2003
        %v2114 = vunpack.c.l.b16 %v2004
        %v2115 = vpack.c.b16 %v2114, %v2113
        %v2118 = vsel %vm1915, %v2009, 0
        %2120 = vmatprep.subr.bf16.mxu0 0
        %2121 = vmatpush1.bf16.msra.mxu0 0
        %2122 = vmatprep.subr.bf16.mxu0 0
        %2123 = vmatpush1.bf16.msra.mxu0 0
        %2124 = vmatprep.subr.bf16.mxu0 0
        %2125 = vmatpush1.bf16.msra.mxu0 0
        %2126 = vmatprep.subr.bf16.mxu0 0
        %2127 = vmatpush1.bf16.msra.mxu0 0
        %2128 = vmatprep.subr.bf16.mxu0 0
        %2129 = vmatpush1.bf16.msra.mxu0 0
        %2130 = vmatprep.subr.bf16.mxu0 0
        %2131 = vmatpush1.bf16.msra.mxu0 0
        %2132 = vmatprep.subr.bf16.mxu0 0
        %2133 = vmatpush1.bf16.msra.mxu0 0
        %2134 = vmatprep.subr.bf16.mxu0 0
        %2135 = vmatpush1.bf16.msra.mxu0 %v2115
        %2136 = vmatprep.subr.bf16.mxu0 0
        %2137 = vmatpush2.bf16.msra.mxu0 0
        %2138 = vmatprep.subr.bf16.mxu0 0
        %2139 = vmatpush2.bf16.msra.mxu0 0
        %2140 = vmatprep.subr.bf16.mxu0 0
        %2141 = vmatpush2.bf16.msra.mxu0 0
        %2142 = vmatprep.subr.bf16.mxu0 0
        %2143 = vmatpush2.bf16.msra.mxu0 0
        %2144 = vmatprep.subr.bf16.mxu0 0
        %2145 = vmatpush2.bf16.msra.mxu0 0
        %2146 = vmatprep.subr.bf16.mxu0 0
        %2147 = vmatpush2.bf16.msra.mxu0 0
        %2148 = vmatprep.subr.bf16.mxu0 0
        %2149 = vmatpush2.bf16.msra.mxu0 0
        %2150 = vmatprep.subr.bf16.mxu0 0
        %2151 = vmatpush2.bf16.msra.mxu0 0
        %2152 = vmatprep.mubr.bf16.mxu0 0
        %2153 = vmatmul.mubr.bf16.gmra.mxu0 %v2118
        %v2154 = vpop.f32.mrf.mxu0
        %v2155 = vadd.f32 0.0, %v2154
        %v2156 = vpop.f32.mrf.mxu0
        %v2157 = vpop.f32.mrf.mxu0
        %v2158 = vadd.f32 0.0, %v2157
        %v2159 = vpop.f32.mrf.mxu0
        %2160 = vdwg.mxu0
        %v2163 = vunpack.c.l.b16 %v2005
        %v2164 = vunpack.c.l.b16 %v2006
        %v2165 = vpack.c.b16 %v2164, %v2163
        %v2168 = vsel %vm1915, %v2010, 0
        %2170 = vmatprep.subr.bf16.mxu0 0
        %2171 = vmatpush1.bf16.msra.mxu0 0
        %2172 = vmatprep.subr.bf16.mxu0 0
        %2173 = vmatpush1.bf16.msra.mxu0 0
        %2174 = vmatprep.subr.bf16.mxu0 0
        %2175 = vmatpush1.bf16.msra.mxu0 0
        %2176 = vmatprep.subr.bf16.mxu0 0
        %2177 = vmatpush1.bf16.msra.mxu0 0
        %2178 = vmatprep.subr.bf16.mxu0 0
        %2179 = vmatpush1.bf16.msra.mxu0 0
        %2180 = vmatprep.subr.bf16.mxu0 0
        %2181 = vmatpush1.bf16.msra.mxu0 0
        %2182 = vmatprep.subr.bf16.mxu0 0
        %2183 = vmatpush1.bf16.msra.mxu0 0
        %2184 = vmatprep.subr.bf16.mxu0 0
        %2185 = vmatpush1.bf16.msra.mxu0 %v2165
        %2186 = vmatprep.subr.bf16.mxu0 0
        %2187 = vmatpush2.bf16.msra.mxu0 0
        %2188 = vmatprep.subr.bf16.mxu0 0
        %2189 = vmatpush2.bf16.msra.mxu0 0
        %2190 = vmatprep.subr.bf16.mxu0 0
        %2191 = vmatpush2.bf16.msra.mxu0 0
        %2192 = vmatprep.subr.bf16.mxu0 0
        %2193 = vmatpush2.bf16.msra.mxu0 0
        %2194 = vmatprep.subr.bf16.mxu0 0
        %2195 = vmatpush2.bf16.msra.mxu0 0
        %2196 = vmatprep.subr.bf16.mxu0 0
        %2197 = vmatpush2.bf16.msra.mxu0 0
        %2198 = vmatprep.subr.bf16.mxu0 0
        %2199 = vmatpush2.bf16.msra.mxu0 0
        %2200 = vmatprep.subr.bf16.mxu0 0
        %2201 = vmatpush2.bf16.msra.mxu0 0
        %2202 = vmatprep.mubr.bf16.mxu0 0
        %2203 = vmatmul.mubr.bf16.gmra.mxu0 %v2168
        %v2204 = vpop.f32.mrf.mxu0
        %v2205 = vadd.f32 0.0, %v2204
        %v2206 = vpop.f32.mrf.mxu0
        %v2207 = vpop.f32.mrf.mxu0
        %v2208 = vadd.f32 0.0, %v2207
        %v2209 = vpop.f32.mrf.mxu0
        %2210 = vdwg.mxu0
        %v2211 = vmul.f32 %v2055, %v1988
        %v2212 = vmul.f32 %v2058, %v1989
        %v2213 = vmul.f32 %v2105, %v1990
        %v2214 = vmul.f32 %v2108, %v1991
        %v2215 = vmul.f32 %v2155, %v1992
        %v2216 = vmul.f32 %v2158, %v1993
        %v2217 = vmul.f32 %v2205, %v1994
        %v2218 = vmul.f32 %v2208, %v1995
        %v2219 = vpack.c.bf16 %v2212, %v2211
        %v2220 = vpack.c.bf16 %v2214, %v2213
        %v2221 = vpack.c.bf16 %v2216, %v2215
        %v2222 = vpack.c.bf16 %v2218, %v2217
        %s2223 = smul.addr %s487, 4
        %s2224 = scalar_lea.vmem [#allocation14], %s2223
        %v2225 = vld [vmem:[%s2224] sm:$0xf]
        %v2226 = vld [vmem:[%s2224 + $0x4] sm:$0xf]
        %v2227 = vld [vmem:[%s2224 + $0x8] sm:$0xf]
        %v2228 = vld [vmem:[%s2224 + $0xc] sm:$0xf]
        %v2230 = vsel %vm1725, %v2219, 0
        %v2233 = vsel %vm1729, %v2225, 0
        %2235 = vmatprep.subr.bf16.mxu0 0
        %2236 = vmatpush1.bf16.msra.mxu0 0
        %2237 = vmatprep.subr.bf16.mxu0 0
        %2238 = vmatpush1.bf16.msra.mxu0 0
        %2239 = vmatprep.subr.bf16.mxu0 0
        %2240 = vmatpush1.bf16.msra.mxu0 0
        %2241 = vmatprep.subr.bf16.mxu0 0
        %2242 = vmatpush1.bf16.msra.mxu0 0
        %2243 = vmatprep.subr.bf16.mxu0 0
        %2244 = vmatpush1.bf16.msra.mxu0 0
        %2245 = vmatprep.subr.bf16.mxu0 0
        %2246 = vmatpush1.bf16.msra.mxu0 0
        %2247 = vmatprep.subr.bf16.mxu0 0
        %2248 = vmatpush1.bf16.msra.mxu0 0
        %2249 = vmatprep.subr.bf16.mxu0 0
        %2250 = vmatpush1.bf16.msra.mxu0 %v2233
        %2251 = vmatprep.subr.bf16.mxu0 0
        %2252 = vmatpush2.bf16.msra.mxu0 0
        %2253 = vmatprep.subr.bf16.mxu0 0
        %2254 = vmatpush2.bf16.msra.mxu0 0
        %2255 = vmatprep.subr.bf16.mxu0 0
        %2256 = vmatpush2.bf16.msra.mxu0 0
        %2257 = vmatprep.subr.bf16.mxu0 0
        %2258 = vmatpush2.bf16.msra.mxu0 0
        %2259 = vmatprep.subr.bf16.mxu0 0
        %2260 = vmatpush2.bf16.msra.mxu0 0
        %2261 = vmatprep.subr.bf16.mxu0 0
        %2262 = vmatpush2.bf16.msra.mxu0 0
        %2263 = vmatprep.subr.bf16.mxu0 0
        %2264 = vmatpush2.bf16.msra.mxu0 0
        %2265 = vmatprep.subr.bf16.mxu0 0
        %2266 = vmatpush2.bf16.msra.mxu0 0
        %2267 = vmatprep.mubr.bf16.mxu0 0
        %2268 = vmatmul.mubr.bf16.gmra.mxu0 %v2230
        %v2269 = vpop.f32.mrf.mxu0
        %v2270 = vadd.f32 0.0, %v2269
        %v2271 = vpop.f32.mrf.mxu0
        %v2272 = vpop.f32.mrf.mxu0
        %v2273 = vadd.f32 0.0, %v2272
        %v2274 = vpop.f32.mrf.mxu0
        %2275 = vdwg.mxu0
        %v2277 = vsel %vm1725, %v2220, 0
        %v2280 = vsel %vm1729, %v2226, 0
        %2282 = vmatprep.subr.bf16.mxu0 0
        %2283 = vmatpush1.bf16.msra.mxu0 0
        %2284 = vmatprep.subr.bf16.mxu0 0
        %2285 = vmatpush1.bf16.msra.mxu0 0
        %2286 = vmatprep.subr.bf16.mxu0 0
        %2287 = vmatpush1.bf16.msra.mxu0 0
        %2288 = vmatprep.subr.bf16.mxu0 0
        %2289 = vmatpush1.bf16.msra.mxu0 0
        %2290 = vmatprep.subr.bf16.mxu0 0
        %2291 = vmatpush1.bf16.msra.mxu0 0
        %2292 = vmatprep.subr.bf16.mxu0 0
        %2293 = vmatpush1.bf16.msra.mxu0 0
        %2294 = vmatprep.subr.bf16.mxu0 0
        %2295 = vmatpush1.bf16.msra.mxu0 0
        %2296 = vmatprep.subr.bf16.mxu0 0
        %2297 = vmatpush1.bf16.msra.mxu0 %v2280
        %2298 = vmatprep.subr.bf16.mxu0 0
        %2299 = vmatpush2.bf16.msra.mxu0 0
        %2300 = vmatprep.subr.bf16.mxu0 0
        %2301 = vmatpush2.bf16.msra.mxu0 0
        %2302 = vmatprep.subr.bf16.mxu0 0
        %2303 = vmatpush2.bf16.msra.mxu0 0
        %2304 = vmatprep.subr.bf16.mxu0 0
        %2305 = vmatpush2.bf16.msra.mxu0 0
        %2306 = vmatprep.subr.bf16.mxu0 0
        %2307 = vmatpush2.bf16.msra.mxu0 0
        %2308 = vmatprep.subr.bf16.mxu0 0
        %2309 = vmatpush2.bf16.msra.mxu0 0
        %2310 = vmatprep.subr.bf16.mxu0 0
        %2311 = vmatpush2.bf16.msra.mxu0 0
        %2312 = vmatprep.subr.bf16.mxu0 0
        %2313 = vmatpush2.bf16.msra.mxu0 0
        %2314 = vmatprep.mubr.bf16.mxu0 0
        %2315 = vmatmul.mubr.bf16.gmra.mxu0 %v2277
        %v2316 = vpop.f32.mrf.mxu0
        %v2317 = vadd.f32 0.0, %v2316
        %v2318 = vpop.f32.mrf.mxu0
        %v2319 = vpop.f32.mrf.mxu0
        %v2320 = vadd.f32 0.0, %v2319
        %v2321 = vpop.f32.mrf.mxu0
        %2322 = vdwg.mxu0
        %v2324 = vsel %vm1725, %v2221, 0
        %v2327 = vsel %vm1729, %v2227, 0
        %2329 = vmatprep.subr.bf16.mxu0 0
        %2330 = vmatpush1.bf16.msra.mxu0 0
        %2331 = vmatprep.subr.bf16.mxu0 0
        %2332 = vmatpush1.bf16.msra.mxu0 0
        %2333 = vmatprep.subr.bf16.mxu0 0
        %2334 = vmatpush1.bf16.msra.mxu0 0
        %2335 = vmatprep.subr.bf16.mxu0 0
        %2336 = vmatpush1.bf16.msra.mxu0 0
        %2337 = vmatprep.subr.bf16.mxu0 0
        %2338 = vmatpush1.bf16.msra.mxu0 0
        %2339 = vmatprep.subr.bf16.mxu0 0
        %2340 = vmatpush1.bf16.msra.mxu0 0
        %2341 = vmatprep.subr.bf16.mxu0 0
        %2342 = vmatpush1.bf16.msra.mxu0 0
        %2343 = vmatprep.subr.bf16.mxu0 0
        %2344 = vmatpush1.bf16.msra.mxu0 %v2327
        %2345 = vmatprep.subr.bf16.mxu0 0
        %2346 = vmatpush2.bf16.msra.mxu0 0
        %2347 = vmatprep.subr.bf16.mxu0 0
        %2348 = vmatpush2.bf16.msra.mxu0 0
        %2349 = vmatprep.subr.bf16.mxu0 0
        %2350 = vmatpush2.bf16.msra.mxu0 0
        %2351 = vmatprep.subr.bf16.mxu0 0
        %2352 = vmatpush2.bf16.msra.mxu0 0
        %2353 = vmatprep.subr.bf16.mxu0 0
        %2354 = vmatpush2.bf16.msra.mxu0 0
        %2355 = vmatprep.subr.bf16.mxu0 0
        %2356 = vmatpush2.bf16.msra.mxu0 0
        %2357 = vmatprep.subr.bf16.mxu0 0
        %2358 = vmatpush2.bf16.msra.mxu0 0
        %2359 = vmatprep.subr.bf16.mxu0 0
        %2360 = vmatpush2.bf16.msra.mxu0 0
        %2361 = vmatprep.mubr.bf16.mxu0 0
        %2362 = vmatmul.mubr.bf16.gmra.mxu0 %v2324
        %v2363 = vpop.f32.mrf.mxu0
        %v2364 = vadd.f32 0.0, %v2363
        %v2365 = vpop.f32.mrf.mxu0
        %v2366 = vpop.f32.mrf.mxu0
        %v2367 = vadd.f32 0.0, %v2366
        %v2368 = vpop.f32.mrf.mxu0
        %2369 = vdwg.mxu0
        %v2371 = vsel %vm1725, %v2222, 0
        %v2374 = vsel %vm1729, %v2228, 0
        %2376 = vmatprep.subr.bf16.mxu0 0
        %2377 = vmatpush1.bf16.msra.mxu0 0
        %2378 = vmatprep.subr.bf16.mxu0 0
        %2379 = vmatpush1.bf16.msra.mxu0 0
        %2380 = vmatprep.subr.bf16.mxu0 0
        %2381 = vmatpush1.bf16.msra.mxu0 0
        %2382 = vmatprep.subr.bf16.mxu0 0
        %2383 = vmatpush1.bf16.msra.mxu0 0
        %2384 = vmatprep.subr.bf16.mxu0 0
        %2385 = vmatpush1.bf16.msra.mxu0 0
        %2386 = vmatprep.subr.bf16.mxu0 0
        %2387 = vmatpush1.bf16.msra.mxu0 0
        %2388 = vmatprep.subr.bf16.mxu0 0
        %2389 = vmatpush1.bf16.msra.mxu0 0
        %2390 = vmatprep.subr.bf16.mxu0 0
        %2391 = vmatpush1.bf16.msra.mxu0 %v2374
        %2392 = vmatprep.subr.bf16.mxu0 0
        %2393 = vmatpush2.bf16.msra.mxu0 0
        %2394 = vmatprep.subr.bf16.mxu0 0
        %2395 = vmatpush2.bf16.msra.mxu0 0
        %2396 = vmatprep.subr.bf16.mxu0 0
        %2397 = vmatpush2.bf16.msra.mxu0 0
        %2398 = vmatprep.subr.bf16.mxu0 0
        %2399 = vmatpush2.bf16.msra.mxu0 0
        %2400 = vmatprep.subr.bf16.mxu0 0
        %2401 = vmatpush2.bf16.msra.mxu0 0
        %2402 = vmatprep.subr.bf16.mxu0 0
        %2403 = vmatpush2.bf16.msra.mxu0 0
        %2404 = vmatprep.subr.bf16.mxu0 0
        %2405 = vmatpush2.bf16.msra.mxu0 0
        %2406 = vmatprep.subr.bf16.mxu0 0
        %2407 = vmatpush2.bf16.msra.mxu0 0
        %2408 = vmatprep.mubr.bf16.mxu0 0
        %2409 = vmatmul.mubr.bf16.gmra.mxu0 %v2371
        %v2410 = vpop.f32.mrf.mxu0
        %v2411 = vadd.f32 0.0, %v2410
        %v2412 = vpop.f32.mrf.mxu0
        %v2413 = vpop.f32.mrf.mxu0
        %v2414 = vadd.f32 0.0, %v2413
        %v2415 = vpop.f32.mrf.mxu0
        %2416 = vdwg.mxu0
        %v2417 = vsel %vm1374, %v2270, 0.0
        %v2418 = vsel %vm1374, %v2317, 0.0
        %v2419 = vadd.f32 %v2417, %v2418
        %v2420 = vsel %vm1374, %v2364, 0.0
        %v2421 = vadd.f32 %v2419, %v2420
        %v2422 = vsel %vm1374, %v2411, 0.0
        %v2423 = vadd.f32 %v2421, %v2422
        %v2424 = vsel %vm1374, %v2273, 0.0
        %v2425 = vsel %vm1374, %v2320, 0.0
        %v2426 = vadd.f32 %v2424, %v2425
        %v2427 = vsel %vm1374, %v2367, 0.0
        %v2428 = vadd.f32 %v2426, %v2427
        %v2429 = vsel %vm1374, %v2414, 0.0
        %v2430 = vadd.f32 %v2428, %v2429
        %p2431 = scmp.eq.s32.totalorder %s35, 0
        // Predicated region
        $region85: #{tpu_custom_call.1} parent=55 // pred_check
          %p2432 = pneg %p2431
        $region86: #{tpu_custom_call.1} parent=55 // pred_check_branch
          %2434 = sbr.rel (%p2432) target = $region88
        $region87: #{tpu_custom_call.1} parent=55 // pred_region
          %2435 = vst.msk [vmem:[#allocation4] sm:$0xff] %vm1374, 0.0
          %2436 = vst.msk [vmem:[#allocation4 + $0x8] sm:$0xff] %vm1374, 0.0
        $region88: #{tpu_custom_call.1} parent=55 // pred_fallthru
          _
        %v2437 = vld [vmem:[#allocation4] sm:$0xff]
        %v2438 = vld [vmem:[#allocation4 + $0x8] sm:$0xff]
        %v2439 = vadd.f32 %v2437, %v2423
        %v2440 = vadd.f32 %v2438, %v2430
        %2441 = vst.msk [vmem:[#allocation4] sm:$0xff] %vm1374, %v2439
        %2442 = vst.msk [vmem:[#allocation4 + $0x8] sm:$0xff] %vm1374, %v2440
        // Predicated region
        $region89: #{tpu_custom_call.1} parent=55 // pred_check
          %p2443 = pneg %p2431
        $region90: #{tpu_custom_call.1} parent=55 // pred_check_branch
          %2445 = sbr.rel (%p2443) target = $region92
        $region91: #{tpu_custom_call.1} parent=55 // pred_region
          %v2446 = vld [vmem:[#allocation4] sm:$0xff]
          %v2447 = vld [vmem:[#allocation4 + $0x8] sm:$0xff]
          %v2448 = vld [vmem:[%s8] sm:$0x1]
          %v2450 = vlaneseq
          %v2451 = vshrl.u32 %v2450, 7
          %v2452 = vsub.s32 0, %v2451
          %v2453 = vrot.slane %v2448, %v2452
          %v2455 = vadd.f32 %v2446, %v2453
          %v2456 = vadd.f32 %v2447, %v2453
          %2457 = vst.msk [vmem:[%s482] sm:$0xff] %vm1374, %v2455
          %2458 = vst.msk [vmem:[%s482 + $0x8] sm:$0xff] %vm1374, %v2456
        $region92: #{tpu_custom_call.1} parent=55 // pred_fallthru
          _
        %s2459 = sand.u32 %s265, 1
        %s2460 = scalar_lea.sflag [#allocation7], %s2459
        %s2461 = sand.u32 %s265, 1
        %s2462 = smul.addr %s2461, 16
        %s2463 = scalar_lea.vmem [#allocation15], %s2462
        // Predicated region
        $region93: #{tpu_custom_call.1} parent=55 // pred_check
          %p2464 = pneg %p275
        $region94: #{tpu_custom_call.1} parent=55 // pred_check_branch
          %2466 = sbr.rel (%p2464) target = $region96
        $region95: #{tpu_custom_call.1} parent=55 // pred_region
          %s2467 = smul.u32 2, %s34
          %s2469 = ssub.s32 256, 256
          %2470 = vsyncadd %s2460, %s2469
          %s2471 = smul.addr %s33, 2
          %s2472 = sadd.s32 %s2467, %s2471
          %s2473 = smul.addr %s2472, 128
          %s2474 = scalar_lea.hbm %s9, %s2473
          %s2475 = sshll.u32 %s2463, 4
          %s2476 = int_to_ptr.vmem [resolvable:$true] %s2475
          %2481 = dma.vmem_to_hbm [thread:$0]  %s2476, 256, %s2474, %s2460, 128, 128, 8
        $region96: #{tpu_custom_call.1} parent=55 // pred_fallthru
          _
      $region56: #{tpu_custom_call.1} parent=5 // pred_fallthru
        _
      %p2482 = scmp.le.s32.totalorder 2, %s23
      // Predicated region
      $region97: #{tpu_custom_call.1} parent=5 // pred_check
        %p2483 = pneg %p2482
      $region98: #{tpu_custom_call.1} parent=5 // pred_check_branch
        %2485 = sbr.rel (%p2483) target = $region100
      $region99: #{tpu_custom_call.1} parent=5 // pred_region
        %s2486 = ssub.s32 %s23, 2
        // Predicated region
        $region101: #{tpu_custom_call.1} parent=99 // pred_check
          %p2487 = pneg %p281
        $region102: #{tpu_custom_call.1} parent=99 // pred_check_branch
          %2489 = sbr.rel (%p2487) target = $region104
        $region103: #{tpu_custom_call.1} parent=99 // pred_region
          %s2490 = sand.u32 %s266, 1
          %s2491 = scalar_lea.sflag [#allocation7], %s2490
          %s2492 = sand.u32 %s266, 1
          %s2493 = smul.addr %s2492, 16
          %s2494 = scalar_lea.vmem [#allocation15], %s2493
          %2495 = dma.done %s2491, 256
        $region104: #{tpu_custom_call.1} parent=99 // pred_fallthru
          _
      $region100: #{tpu_custom_call.1} parent=5 // pred_fallthru
        _
    $region6: #{tpu_custom_call.1} parent=1 // loop_footer
      %s27 = sadd.s32 1, %s23
    $region7: #{tpu_custom_call.1} parent=1 // loop_footer_branch
      %22 = sbr.rel target = $region3
    $region8: #{tpu_custom_call.1} parent=1 // loop_exit
      _
    %2496 = vsyncpa [#allocation6], 1
    %s2497 = scalar_lea.sflag [#allocation6], 1
    %2498 = vsyncpa %s2497, 1
    %2499 = vsyncpa [#allocation9], 1
    %2500 = vsyncpa [#allocation13], 1
    %2501 = vsyncpa [#allocation7], 1
    %s2502 = scalar_lea.sflag [#allocation7], 1
    %2503 = vsyncpa %s2502, 1

// kernel: tpu_custom_call.1
$region0: #{tpu_custom_call.1}
  #allocation0 [shape = 'u32[]', space=smem, size = 0x4, offset = 0x4, fixed_abs, tag = 'smem constant byte address 0x4 - core index']
  #allocation1 [shape = 'u32[144,128]{1,0:T(1,128)}', space=vmem, size = 0x12000, scoped, tag = 'internal scratch']
  #allocation2 [shape = 'bf16[4,8,16]{2,1,0:T(8,128)(2,1)}', space=vmem, size = 0x2000, scoped, tag = 'scratch operand']
  #allocation3 [shape = 'bf16[4,16,8]{2,1,0:T(8,128)(2,1)}', space=vmem, size = 0x4000, scoped, tag = 'scratch operand']
  #allocation4 [shape = 'f32[16,32]{1,0:T(8,128)}', space=vmem, size = 0x2000, scoped, tag = 'scratch operand']
  %s0 = inlined_call_operand.hbm [shape: bf16[2,16,32], index: 0, kind: input, shape index: {}]
  %s1 = inlined_call_operand.hbm [shape: bf16[2,16,32], index: 1, kind: input, shape index: {}]
  %s2 = inlined_call_operand.hbm [shape: bf16[2,1,16,16], index: 2, kind: input, shape index: {}]
  %s3 = inlined_call_operand.hbm [shape: bf16[1,32,32], index: 3, kind: input, shape index: {}]
  %s4 = inlined_call_operand.vmem [shape: f32[1,1,32], index: 4, kind: input, shape index: {}]
  %s5 = inlined_call_operand.hbm [shape: bf16[1,32,64], index: 5, kind: input, shape index: {}]
  %s6 = inlined_call_operand.vmem [shape: f32[1,1,64], index: 6, kind: input, shape index: {}]
  %s7 = inlined_call_operand.hbm [shape: bf16[1,4,8,32], index: 7, kind: input, shape index: {}]
  %s8 = inlined_call_operand.vmem [shape: f32[1,32], index: 8, kind: input, shape index: {}]
  %s9 = inlined_call_operand.hbm [shape: f32[2,16,32], index: 9, kind: output, shape index: {}]
  %s10 = sld [smem:[#allocation0]]
  $region105: #{tpu_custom_call.1} parent=0
    _
  %s12 = ssub.s32 1, %s10
  %s13 = scalar_select 0, %s12, %s10
  $region1: #{tpu_custom_call.1} parent=0
    #allocation5 [shape = 'u8[8192]{0}', space=vmem, size = 0x2000, scoped, tag = 'input window, operand 0']
    #allocation6 [shape = 's32[2]{0}', space=sflag, size = 0x8, scoped, tag = 'scoped memory for tpu_custom_call.1']
    #allocation7 [shape = 's32[2]{0}', space=sflag, size = 0x8, scoped, tag = 'scoped memory for tpu_custom_call.1']
    #allocation8 [shape = 'u8[8192]{0}', space=vmem, size = 0x2000, scoped, tag = 'input window, operand 1']
    #allocation9 [shape = 's32[2]{0}', space=sflag, size = 0x8, scoped, tag = 'scoped memory for tpu_custom_call.1']
    #allocation10 [shape = 'u8[8192]{0}', space=vmem, size = 0x2000, scoped, tag = 'input window, operand 2']
    #allocation11 [shape = 'u8[8192]{0}', space=vmem, size = 0x2000, scoped, tag = 'input window, operand 3, single buffered']
    #allocation12 [shape = 's32[1]{0}', space=sflag, size = 0x4, scoped, tag = 'scoped memory for tpu_custom_call.1']
    #allocation13 [shape = 'u8[8192]{0}', space=vmem, size = 0x2000, scoped, tag = 'input window, operand 5, single buffered']
    #allocation14 [shape = 'u8[8192]{0}', space=vmem, size = 0x2000, scoped, tag = 'input window, operand 7, single buffered']
    #allocation15 [shape = 's32[1]{0}', space=sflag, size = 0x4, scoped, tag = 'scoped memory for tpu_custom_call.1']
    #allocation16 [shape = 'u8[16384]{0}', space=vmem, size = 0x4000, scoped, tag = 'output window, operand 0']
    %14 = vsyncpa [#allocation6], 0
    %s15 = scalar_lea.sflag [#allocation6], 1
    %16 = vsyncpa %s15, 0
    %17 = vsyncpa [#allocation9], 0
    %s18 = scalar_lea.sflag [#allocation9], 1
    %19 = vsyncpa %s18, 0
    %20 = vsyncpa [#allocation12], 0
    %21 = vsyncpa [#allocation15], 0
    %22 = vsyncpa [#allocation7], 0
    %s23 = scalar_lea.sflag [#allocation7], 1
    %24 = vsyncpa %s23, 0
    loop: start=0, step=1, limit=4
    $region2: #{tpu_custom_call.1} parent=1 // loop_pre_header
      _
    $region3: #{tpu_custom_call.1} parent=1 // loop_header
      %s26 = sphi 0, %s30
      %p27 = scmp.ge.s32.totalorder %s26, 4
      %s33 = sphi 0, %s52
      %s34 = sphi 0, %s48
      %s35 = sphi 0, %s44
      %s36 = sphi 0, %s33
      %s37 = sphi 0, %s34
      %s38 = sphi 0, %s35
      %s39 = sphi 0, %s36
      %s40 = sphi 0, %s37
      %s41 = sphi 0, %s38
      %s57 = sphi 0, %s59
      %s60 = sphi 0, %s57
      %s61 = sphi 0, %s60
      %s77 = sphi 0, %s61
      %s83 = sphi 0, %s85
      %s86 = sphi 0, %s83
      %s87 = sphi 0, %s86
      %s103 = sphi 0, %s87
      %s111 = sphi 0, %s113
      %s114 = sphi 0, %s111
      %s115 = sphi 0, %s114
      %s131 = sphi 0, %s115
      %s135 = sphi 0, %s135
      %s137 = sphi 0, %s135
      %s138 = sphi 0, %s137
      %s152 = sphi 0, %s138
      %s156 = sphi 0, %s156
      %s158 = sphi 0, %s156
      %s159 = sphi 0, %s158
      %s173 = sphi 0, %s159
      %s177 = sphi 0, %s177
      %s179 = sphi 0, %s177
      %s180 = sphi 0, %s179
      %s194 = sphi 0, %s180
      %s198 = sphi 0, %s198
      %s200 = sphi 0, %s198
      %s201 = sphi 0, %s200
      %s215 = sphi 0, %s201
      %s219 = sphi 0, %s219
      %s221 = sphi 0, %s219
      %s222 = sphi 0, %s221
      %s236 = sphi 0, %s222
      %s240 = sphi 0, %s240
      %s242 = sphi 0, %s240
      %s243 = sphi 0, %s242
      %s257 = sphi 0, %s243
      %s265 = sphi 0, %s267
      %s268 = sphi 0, %s265
      %s269 = sphi 0, %s268
      %s285 = sphi 0, %s269
    $region4: #{tpu_custom_call.1} parent=1 // loop_header_branch
      %29 = sbr.rel (%p27) target = $region8
    $region5: #{tpu_custom_call.1} parent=1 // loop_body
      %s31 = ssub.s32 %s26, 1
      %s32 = ssub.s32 %s26, 2
      %s42 = sadd.s32 1, %s35
      %p43 = scmp.ge.s32.totalorder %s42, 1
      %s44 = scalar_select %p43, 0, %s42
      %s45 = sadd.s32 1, %s34
      %s46 = scalar_select %p43, %s45, %s34
      %p47 = scmp.ge.s32.totalorder %s46, 1
      %s48 = scalar_select %p47, 0, %s46
      %s49 = sadd.s32 1, %s33
      %s50 = scalar_select %p47, %s49, %s33
      %p51 = scmp.ge.s32.totalorder %s50, 2
      %s52 = scalar_select %p51, 0, %s50
      %s53 = ssub.s32 %s33, %s52
      %s54 = ssub.s32 %s34, %s48
      %s55 = sor.u32 %s53, %s54
      %p56 = scmp.eq.s32.totalorder %s55, 0
      %s58 = sadd.s32 %s57, 1
      %s59 = scalar_select %p56, %s57, %s58
      %p62 = pneg %p56
      %p63 = scmp.eq.s32.totalorder %s26, 1
      %p64 = por %p62, %p63
      %p65 = scmp.ne.s32.totalorder %s57, %s60
      %p66 = scmp.eq.s32.totalorder %s26, 0
      %p67 = por %p65, %p66
      %p68 = scmp.ne.s32.totalorder %s57, %s60
      %p69 = scmp.eq.s32.totalorder %s31, 1
      %p70 = por %p68, %p69
      %p71 = scmp.ne.s32.totalorder %s60, %s61
      %p72 = scmp.eq.s32.totalorder %s31, 0
      %p73 = por %p71, %p72
      %p74 = scmp.ne.s32.totalorder %s60, %s61
      %p75 = scmp.eq.s32.totalorder %s32, 1
      %p76 = por %p74, %p75
      %p78 = scmp.ne.s32.totalorder %s61, %s77
      %p79 = scmp.eq.s32.totalorder %s32, 0
      %p80 = por %p78, %p79
      %s81 = ssub.s32 %s33, %s52
      %p82 = scmp.eq.s32.totalorder %s81, 0
      %s84 = sadd.s32 %s83, 1
      %s85 = scalar_select %p82, %s83, %s84
      %p88 = pneg %p82
      %p89 = scmp.eq.s32.totalorder %s26, 1
      %p90 = por %p88, %p89
      %p91 = scmp.ne.s32.totalorder %s83, %s86
      %p92 = scmp.eq.s32.totalorder %s26, 0
      %p93 = por %p91, %p92
      %p94 = scmp.ne.s32.totalorder %s83, %s86
      %p95 = scmp.eq.s32.totalorder %s31, 1
      %p96 = por %p94, %p95
      %p97 = scmp.ne.s32.totalorder %s86, %s87
      %p98 = scmp.eq.s32.totalorder %s31, 0
      %p99 = por %p97, %p98
      %p100 = scmp.ne.s32.totalorder %s86, %s87
      %p101 = scmp.eq.s32.totalorder %s32, 1
      %p102 = por %p100, %p101
      %p104 = scmp.ne.s32.totalorder %s87, %s103
      %p105 = scmp.eq.s32.totalorder %s32, 0
      %p106 = por %p104, %p105
      %s107 = ssub.s32 %s33, %s52
      %s108 = ssub.s32 %s34, %s48
      %s109 = sor.u32 %s107, %s108
      %p110 = scmp.eq.s32.totalorder %s109, 0
      %s112 = sadd.s32 %s111, 1
      %s113 = scalar_select %p110, %s111, %s112
      %p116 = pneg %p110
      %p117 = scmp.eq.s32.totalorder %s26, 1
      %p118 = por %p116, %p117
      %p119 = scmp.ne.s32.totalorder %s111, %s114
      %p120 = scmp.eq.s32.totalorder %s26, 0
      %p121 = por %p119, %p120
      %p122 = scmp.ne.s32.totalorder %s111, %s114
      %p123 = scmp.eq.s32.totalorder %s31, 1
      %p124 = por %p122, %p123
      %p125 = scmp.ne.s32.totalorder %s114, %s115
      %p126 = scmp.eq.s32.totalorder %s31, 0
      %p127 = por %p125, %p126
      %p128 = scmp.ne.s32.totalorder %s114, %s115
      %p129 = scmp.eq.s32.totalorder %s32, 1
      %p130 = por %p128, %p129
      %p132 = scmp.ne.s32.totalorder %s115, %s131
      %p133 = scmp.eq.s32.totalorder %s32, 0
      %p134 = por %p132, %p133
      %s136 = sadd.s32 %s135, 1
      %p139 = scmp.eq.s32.totalorder %s26, 1
      %p140 = scmp.ne.s32.totalorder %s135, %s137
      %p141 = scmp.eq.s32.totalorder %s26, 0
      %p142 = por %p140, %p141
      %p143 = scmp.ne.s32.totalorder %s135, %s137
      %p144 = scmp.eq.s32.totalorder %s31, 1
      %p145 = por %p143, %p144
      %p146 = scmp.ne.s32.totalorder %s137, %s138
      %p147 = scmp.eq.s32.totalorder %s31, 0
      %p148 = por %p146, %p147
      %p149 = scmp.ne.s32.totalorder %s137, %s138
      %p150 = scmp.eq.s32.totalorder %s32, 1
      %p151 = por %p149, %p150
      %p153 = scmp.ne.s32.totalorder %s138, %s152
      %p154 = scmp.eq.s32.totalorder %s32, 0
      %p155 = por %p153, %p154
      %s157 = sadd.s32 %s156, 1
      %p160 = scmp.eq.s32.totalorder %s26, 1
      %p161 = scmp.ne.s32.totalorder %s156, %s158
      %p162 = scmp.eq.s32.totalorder %s26, 0
      %p163 = por %p161, %p162
      %p164 = scmp.ne.s32.totalorder %s156, %s158
      %p165 = scmp.eq.s32.totalorder %s31, 1
      %p166 = por %p164, %p165
      %p167 = scmp.ne.s32.totalorder %s158, %s159
      %p168 = scmp.eq.s32.totalorder %s31, 0
      %p169 = por %p167, %p168
      %p170 = scmp.ne.s32.totalorder %s158, %s159
      %p171 = scmp.eq.s32.totalorder %s32, 1
      %p172 = por %p170, %p171
      %p174 = scmp.ne.s32.totalorder %s159, %s173
      %p175 = scmp.eq.s32.totalorder %s32, 0
      %p176 = por %p174, %p175
      %s178 = sadd.s32 %s177, 1
      %p181 = scmp.eq.s32.totalorder %s26, 1
      %p182 = scmp.ne.s32.totalorder %s177, %s179
      %p183 = scmp.eq.s32.totalorder %s26, 0
      %p184 = por %p182, %p183
      %p185 = scmp.ne.s32.totalorder %s177, %s179
      %p186 = scmp.eq.s32.totalorder %s31, 1
      %p187 = por %p185, %p186
      %p188 = scmp.ne.s32.totalorder %s179, %s180
      %p189 = scmp.eq.s32.totalorder %s31, 0
      %p190 = por %p188, %p189
      %p191 = scmp.ne.s32.totalorder %s179, %s180
      %p192 = scmp.eq.s32.totalorder %s32, 1
      %p193 = por %p191, %p192
      %p195 = scmp.ne.s32.totalorder %s180, %s194
      %p196 = scmp.eq.s32.totalorder %s32, 0
      %p197 = por %p195, %p196
      %s199 = sadd.s32 %s198, 1
      %p202 = scmp.eq.s32.totalorder %s26, 1
      %p203 = scmp.ne.s32.totalorder %s198, %s200
      %p204 = scmp.eq.s32.totalorder %s26, 0
      %p205 = por %p203, %p204
      %p206 = scmp.ne.s32.totalorder %s198, %s200
      %p207 = scmp.eq.s32.totalorder %s31, 1
      %p208 = por %p206, %p207
      %p209 = scmp.ne.s32.totalorder %s200, %s201
      %p210 = scmp.eq.s32.totalorder %s31, 0
      %p211 = por %p209, %p210
      %p212 = scmp.ne.s32.totalorder %s200, %s201
      %p213 = scmp.eq.s32.totalorder %s32, 1
      %p214 = por %p212, %p213
      %p216 = scmp.ne.s32.totalorder %s201, %s215
      %p217 = scmp.eq.s32.totalorder %s32, 0
      %p218 = por %p216, %p217
      %s220 = sadd.s32 %s219, 1
      %p223 = scmp.eq.s32.totalorder %s26, 1
      %p224 = scmp.ne.s32.totalorder %s219, %s221
      %p225 = scmp.eq.s32.totalorder %s26, 0
      %p226 = por %p224, %p225
      %p227 = scmp.ne.s32.totalorder %s219, %s221
      %p228 = scmp.eq.s32.totalorder %s31, 1
      %p229 = por %p227, %p228
      %p230 = scmp.ne.s32.totalorder %s221, %s222
      %p231 = scmp.eq.s32.totalorder %s31, 0
      %p232 = por %p230, %p231
      %p233 = scmp.ne.s32.totalorder %s221, %s222
      %p234 = scmp.eq.s32.totalorder %s32, 1
      %p235 = por %p233, %p234
      %p237 = scmp.ne.s32.totalorder %s222, %s236
      %p238 = scmp.eq.s32.totalorder %s32, 0
      %p239 = por %p237, %p238
      %s241 = sadd.s32 %s240, 1
      %p244 = scmp.eq.s32.totalorder %s26, 1
      %p245 = scmp.ne.s32.totalorder %s240, %s242
      %p246 = scmp.eq.s32.totalorder %s26, 0
      %p247 = por %p245, %p246
      %p248 = scmp.ne.s32.totalorder %s240, %s242
      %p249 = scmp.eq.s32.totalorder %s31, 1
      %p250 = por %p248, %p249
      %p251 = scmp.ne.s32.totalorder %s242, %s243
      %p252 = scmp.eq.s32.totalorder %s31, 0
      %p253 = por %p251, %p252
      %p254 = scmp.ne.s32.totalorder %s242, %s243
      %p255 = scmp.eq.s32.totalorder %s32, 1
      %p256 = por %p254, %p255
      %p258 = scmp.ne.s32.totalorder %s243, %s257
      %p259 = scmp.eq.s32.totalorder %s32, 0
      %p260 = por %p258, %p259
      %s261 = ssub.s32 %s33, %s52
      %s262 = ssub.s32 %s34, %s48
      %s263 = sor.u32 %s261, %s262
      %p264 = scmp.eq.s32.totalorder %s263, 0
      %s266 = sadd.s32 %s265, 1
      %s267 = scalar_select %p264, %s265, %s266
      %p270 = pneg %p264
      %p271 = scmp.eq.s32.totalorder %s26, 1
      %p272 = por %p270, %p271
      %p273 = scmp.ne.s32.totalorder %s265, %s268
      %p274 = scmp.eq.s32.totalorder %s26, 0
      %p275 = por %p273, %p274
      %p276 = scmp.ne.s32.totalorder %s265, %s268
      %p277 = scmp.eq.s32.totalorder %s31, 1
      %p278 = por %p276, %p277
      %p279 = scmp.ne.s32.totalorder %s268, %s269
      %p280 = scmp.eq.s32.totalorder %s31, 0
      %p281 = por %p279, %p280
      %p282 = scmp.ne.s32.totalorder %s268, %s269
      %p283 = scmp.eq.s32.totalorder %s32, 1
      %p284 = por %p282, %p283
      %p286 = scmp.ne.s32.totalorder %s269, %s285
      %p287 = scmp.eq.s32.totalorder %s32, 0
      %p288 = por %p286, %p287
      %p289 = scmp.le.s32.totalorder 1, %s26
      %p290 = scmp.lt.s32.totalorder %s26, 3
      %p291 = pnand %p289, %p290
      %p292 = pneg %p291
      // Predicated region
      $region9: #{tpu_custom_call.1} parent=5 // pred_check
        _
      $region10: #{tpu_custom_call.1} parent=5 // pred_check_branch
        %294 = sbr.rel (%p291) target = $region12
      $region11: #{tpu_custom_call.1} parent=5 // pred_region
        %s295 = ssub.s32 %s26, 1
        // Predicated region
        $region13: #{tpu_custom_call.1} parent=11 // pred_check
          %p296 = pneg %p148
        $region14: #{tpu_custom_call.1} parent=11 // pred_check_branch
          %298 = sbr.rel (%p296) target = $region16
        $region15: #{tpu_custom_call.1} parent=11 // pred_region
          %s300 = ssub.s32 256, 256
          %301 = vsyncadd [#allocation12], %s300
          %s302 = sshll.u32 [#allocation11], 4
          %s303 = int_to_ptr.vmem [resolvable:$true] %s302
          %308 = dma.hbm_to_vmem [thread:$0]  %s3, 256, %s303, [#allocation12], 64, 64, 4
        $region16: #{tpu_custom_call.1} parent=11 // pred_fallthru
          _
        // Predicated region
        $region17: #{tpu_custom_call.1} parent=11 // pred_check
          %p309 = pneg %p169
        $region18: #{tpu_custom_call.1} parent=11 // pred_check_branch
          %311 = sbr.rel (%p309) target = $region20
        $region19: #{tpu_custom_call.1} parent=11 // pred_region
          _
        $region20: #{tpu_custom_call.1} parent=11 // pred_fallthru
          _
        // Predicated region
        $region21: #{tpu_custom_call.1} parent=11 // pred_check
          %p312 = pneg %p190
        $region22: #{tpu_custom_call.1} parent=11 // pred_check_branch
          %314 = sbr.rel (%p312) target = $region24
        $region23: #{tpu_custom_call.1} parent=11 // pred_region
          %s316 = ssub.s32 256, 256
          %317 = vsyncadd [#allocation12], %s316
          %s318 = sshll.u32 [#allocation13], 4
          %s319 = int_to_ptr.vmem [resolvable:$true] %s318
          %324 = dma.hbm_to_vmem [thread:$0]  %s5, 256, %s319, [#allocation12], 64, 64, 4
        $region24: #{tpu_custom_call.1} parent=11 // pred_fallthru
          _
        // Predicated region
        $region25: #{tpu_custom_call.1} parent=11 // pred_check
          %p325 = pneg %p211
        $region26: #{tpu_custom_call.1} parent=11 // pred_check_branch
          %327 = sbr.rel (%p325) target = $region28
        $region27: #{tpu_custom_call.1} parent=11 // pred_region
          _
        $region28: #{tpu_custom_call.1} parent=11 // pred_fallthru
          _
        // Predicated region
        $region29: #{tpu_custom_call.1} parent=11 // pred_check
          %p328 = pneg %p232
        $region30: #{tpu_custom_call.1} parent=11 // pred_check_branch
          %330 = sbr.rel (%p328) target = $region32
        $region31: #{tpu_custom_call.1} parent=11 // pred_region
          %s332 = ssub.s32 256, 256
          %333 = vsyncadd [#allocation15], %s332
          %s334 = sshll.u32 [#allocation14], 4
          %s335 = int_to_ptr.vmem [resolvable:$true] %s334
          %340 = dma.hbm_to_vmem [thread:$0]  %s7, 256, %s335, [#allocation15], 64, 64, 4
        $region32: #{tpu_custom_call.1} parent=11 // pred_fallthru
          _
        // Predicated region
        $region33: #{tpu_custom_call.1} parent=11 // pred_check
          %p341 = pneg %p253
        $region34: #{tpu_custom_call.1} parent=11 // pred_check_branch
          %343 = sbr.rel (%p341) target = $region36
        $region35: #{tpu_custom_call.1} parent=11 // pred_region
          _
        $region36: #{tpu_custom_call.1} parent=11 // pred_fallthru
          _
      $region12: #{tpu_custom_call.1} parent=5 // pred_fallthru
        _
      %p344 = scmp.lt.s32.totalorder %s26, 2
      // Predicated region
      $region37: #{tpu_custom_call.1} parent=5 // pred_check
        %p345 = pneg %p344
      $region38: #{tpu_custom_call.1} parent=5 // pred_check_branch
        %347 = sbr.rel (%p345) target = $region40
      $region39: #{tpu_custom_call.1} parent=5 // pred_region
        // Predicated region
        $region41: #{tpu_custom_call.1} parent=39 // pred_check
          %p348 = pneg %p67
        $region42: #{tpu_custom_call.1} parent=39 // pred_check_branch
          %350 = sbr.rel (%p348) target = $region44
        $region43: #{tpu_custom_call.1} parent=39 // pred_region
          %s351 = sand.u32 %s57, 1
          %s352 = scalar_lea.sflag [#allocation6], %s351
          %s353 = sand.u32 %s57, 1
          %s354 = smul.addr %s353, 8
          %s355 = scalar_lea.vmem [#allocation5], %s354
          %s356 = smul.u32 2, %s34
          %s358 = ssub.s32 128, 128
          %359 = vsyncadd %s352, %s358
          %s360 = smul.addr %s33, 2
          %s361 = sadd.s32 %s356, %s360
          %s362 = smul.addr %s361, 64
          %s363 = scalar_lea.hbm %s0, %s362
          %s364 = sshll.u32 %s355, 4
          %s365 = int_to_ptr.vmem [resolvable:$true] %s364
          %370 = dma.hbm_to_vmem [thread:$0]  %s363, 128, %s365, %s352, 64, 64, 4
        $region44: #{tpu_custom_call.1} parent=39 // pred_fallthru
          _
        // Predicated region
        $region45: #{tpu_custom_call.1} parent=39 // pred_check
          %p371 = pneg %p93
        $region46: #{tpu_custom_call.1} parent=39 // pred_check_branch
          %373 = sbr.rel (%p371) target = $region48
        $region47: #{tpu_custom_call.1} parent=39 // pred_region
          %s374 = sand.u32 %s26, 1
          %s375 = scalar_lea.sflag [#allocation9], %s374
          %s376 = sand.u32 %s83, 1
          %s377 = smul.addr %s376, 8
          %s378 = scalar_lea.vmem [#allocation8], %s377
          %s380 = ssub.s32 128, 128
          %381 = vsyncadd %s375, %s380
          %s382 = smul.addr %s33, 2
          %s383 = smul.addr %s382, 64
          %s384 = scalar_lea.hbm %s1, %s383
          %s385 = sshll.u32 %s378, 4
          %s386 = int_to_ptr.vmem [resolvable:$true] %s385
          %391 = dma.hbm_to_vmem [thread:$0]  %s384, 128, %s386, %s375, 64, 64, 4
        $region48: #{tpu_custom_call.1} parent=39 // pred_fallthru
          _
        // Predicated region
        $region49: #{tpu_custom_call.1} parent=39 // pred_check
          %p392 = pneg %p121
        $region50: #{tpu_custom_call.1} parent=39 // pred_check_branch
          %394 = sbr.rel (%p392) target = $region52
        $region51: #{tpu_custom_call.1} parent=39 // pred_region
          %s395 = sand.u32 %s26, 1
          %s396 = scalar_lea.sflag [#allocation9], %s395
          %s397 = sand.u32 %s111, 1
          %s398 = smul.addr %s397, 8
          %s399 = scalar_lea.vmem [#allocation10], %s398
          %s400 = smul.u32 2, %s34
          %s402 = ssub.s32 128, 128
          %403 = vsyncadd %s396, %s402
          %s404 = smul.addr %s33, 2
          %s405 = sadd.s32 %s400, %s404
          %s406 = smul.addr %s405, 64
          %s407 = scalar_lea.hbm %s2, %s406
          %s408 = sshll.u32 %s399, 4
          %s409 = int_to_ptr.vmem [resolvable:$true] %s408
          %414 = dma.hbm_to_vmem [thread:$0]  %s407, 128, %s409, %s396, 64, 64, 4
        $region52: #{tpu_custom_call.1} parent=39 // pred_fallthru
          _
      $region40: #{tpu_custom_call.1} parent=5 // pred_fallthru
        _
      %p415 = scmp.le.s32.totalorder 1, %s26
      %p416 = scmp.lt.s32.totalorder %s26, 3
      %p417 = pnand %p415, %p416
      %p418 = pneg %p417
      // Predicated region
      $region53: #{tpu_custom_call.1} parent=5 // pred_check
        _
      $region54: #{tpu_custom_call.1} parent=5 // pred_check_branch
        %420 = sbr.rel (%p417) target = $region56
      $region55: #{tpu_custom_call.1} parent=5 // pred_region
        %s421 = ssub.s32 %s26, 1
        %s422 = sand.u32 %s60, 1
        %s423 = scalar_lea.sflag [#allocation6], %s422
        %s424 = sand.u32 %s60, 1
        %s425 = smul.addr %s424, 8
        %s426 = scalar_lea.vmem [#allocation5], %s425
        // Predicated region
        $region57: #{tpu_custom_call.1} parent=55 // pred_check
          %p427 = pneg %p73
        $region58: #{tpu_custom_call.1} parent=55 // pred_check_branch
          %429 = sbr.rel (%p427) target = $region60
        $region59: #{tpu_custom_call.1} parent=55 // pred_region
          %430 = dma.done %s423, 128
        $region60: #{tpu_custom_call.1} parent=55 // pred_fallthru
          _
        %s431 = sand.u32 %s31, 1
        %s432 = scalar_lea.sflag [#allocation9], %s431
        %s433 = sand.u32 %s86, 1
        %s434 = smul.addr %s433, 8
        %s435 = scalar_lea.vmem [#allocation8], %s434
        // Predicated region
        $region61: #{tpu_custom_call.1} parent=55 // pred_check
          %p436 = pneg %p99
        $region62: #{tpu_custom_call.1} parent=55 // pred_check_branch
          %438 = sbr.rel (%p436) target = $region64
        $region63: #{tpu_custom_call.1} parent=55 // pred_region
          %439 = dma.done %s432, 128
        $region64: #{tpu_custom_call.1} parent=55 // pred_fallthru
          _
        %s440 = sand.u32 %s31, 1
        %s441 = scalar_lea.sflag [#allocation9], %s440
        %s442 = sand.u32 %s114, 1
        %s443 = smul.addr %s442, 8
        %s444 = scalar_lea.vmem [#allocation10], %s443
        // Predicated region
        $region65: #{tpu_custom_call.1} parent=55 // pred_check
          %p445 = pneg %p127
        $region66: #{tpu_custom_call.1} parent=55 // pred_check_branch
          %447 = sbr.rel (%p445) target = $region68
        $region67: #{tpu_custom_call.1} parent=55 // pred_region
          %448 = dma.done %s441, 128
        $region68: #{tpu_custom_call.1} parent=55 // pred_fallthru
          _
        // Predicated region
        $region69: #{tpu_custom_call.1} parent=55 // pred_check
          %p449 = pneg %p148
        $region70: #{tpu_custom_call.1} parent=55 // pred_check_branch
          %451 = sbr.rel (%p449) target = $region72
        $region71: #{tpu_custom_call.1} parent=55 // pred_region
          %452 = dma.done [#allocation12], 256
        $region72: #{tpu_custom_call.1} parent=55 // pred_fallthru
          _
        // Predicated region
        $region73: #{tpu_custom_call.1} parent=55 // pred_check
          %p453 = pneg %p190
        $region74: #{tpu_custom_call.1} parent=55 // pred_check_branch
          %455 = sbr.rel (%p453) target = $region76
        $region75: #{tpu_custom_call.1} parent=55 // pred_region
          %456 = dma.done [#allocation12], 256
        $region76: #{tpu_custom_call.1} parent=55 // pred_fallthru
          _
        // Predicated region
        $region77: #{tpu_custom_call.1} parent=55 // pred_check
          %p457 = pneg %p232
        $region78: #{tpu_custom_call.1} parent=55 // pred_check_branch
          %459 = sbr.rel (%p457) target = $region80
        $region79: #{tpu_custom_call.1} parent=55 // pred_region
          %460 = dma.done [#allocation15], 256
        $region80: #{tpu_custom_call.1} parent=55 // pred_fallthru
          _
        %s461 = sand.u32 %s60, 1
        %s462 = scalar_lea.sflag [#allocation6], %s461
        %s463 = sand.u32 %s60, 1
        %s464 = smul.addr %s463, 8
        %s465 = scalar_lea.vmem [#allocation5], %s464
        %p466 = pneg %p73
        %p467 = pneg %p70
        %s468 = sand.u32 %s31, 1
        %s469 = scalar_lea.sflag [#allocation9], %s468
        %s470 = sand.u32 %s86, 1
        %s471 = smul.addr %s470, 8
        %s472 = scalar_lea.vmem [#allocation8], %s471
        %p473 = pneg %p99
        %p474 = pneg %p96
        %s475 = sand.u32 %s31, 1
        %s476 = scalar_lea.sflag [#allocation9], %s475
        %s477 = sand.u32 %s114, 1
        %s478 = smul.addr %s477, 8
        %s479 = scalar_lea.vmem [#allocation10], %s478
        %p480 = pneg %p127
        %p481 = pneg %p124
        %p482 = pneg %p148
        %p483 = pneg %p145
        %p484 = pneg %p169
        %p485 = pneg %p166
        %p486 = pneg %p190
        %p487 = pneg %p187
        %p488 = pneg %p211
        %p489 = pneg %p208
        %p490 = pneg %p232
        %p491 = pneg %p229
        %p492 = pneg %p253
        %p493 = pneg %p250
        %p494 = pneg %p281
        %p495 = pneg %p278
        %s496 = sand.u32 %s268, 1
        %s497 = scalar_lea.sflag [#allocation7], %s496
        %s498 = sand.u32 %s268, 1
        %s499 = smul.addr %s498, 16
        %s500 = scalar_lea.vmem [#allocation16], %s499
        %s501 = smul.u32 2, %s37
        %s502 = smul.u32 2, %s37
        %s503 = smul.u32 2, %s37
        %s505 = smul.u32 %s38, 4
        %p506 = scmp.eq.s32.totalorder %s37, 0
        // Predicated region
        $region81: #{tpu_custom_call.1} parent=55 // pred_check
          %p507 = pneg %p506
        $region82: #{tpu_custom_call.1} parent=55 // pred_check_branch
          %509 = sbr.rel (%p507) target = $region84
        $region83: #{tpu_custom_call.1} parent=55 // pred_region
          %v510 = vld [vmem:[%s435] sm:$0xf]
          %v511 = vld [vmem:[%s435 + $0x4] sm:$0xf]
          %s512 = smul.addr %s505, 4
          %s513 = scalar_lea.vmem [#allocation13], %s512
          %v514 = vld [vmem:[%s513] sm:$0xf]
          %v515 = vld [vmem:[%s513 + $0x4] sm:$0xf]
          %v516 = vld [vmem:[%s513 + $0x8] sm:$0xf]
          %v517 = vld [vmem:[%s513 + $0xc] sm:$0xf]
          %s518 = scalar_lea.vmem %s6, %s38
          %v519 = vld [vmem:[%s518] sm:$0x1]
          %v521 = vlaneseq
          %v522 = vshrl.u32 %v521, 7
          %v523 = vsub.s32 0, %v522
          %v524 = vrot.slane %v519, %v523
          %v528 = vunpack.c.l.b16 %v510
          %v529 = vunpack.c.l.b16 %v511
          %v530 = vpack.c.b16 %v529, %v528
          %v535 = vunpack.c.l.b16 %v514
          %v536 = vunpack.c.l.b16 %v515
          %v537 = vunpack.c.l.b16 %v516
          %v538 = vunpack.c.l.b16 %v517
          %v539 = vpack.c.b16 %v536, %v535
          %v540 = vpack.c.b16 %v538, %v537
          %vm543 = vcmask 261120
          %v545 = vsel %vm543, %v530, 0
          %547 = vmatprep.subr.bf16.mxu0 0
          %548 = vmatpush1.bf16.msra.mxu0 0
          %549 = vmatprep.subr.bf16.mxu0 0
          %550 = vmatpush1.bf16.msra.mxu0 0
          %551 = vmatprep.subr.bf16.mxu0 0
          %552 = vmatpush1.bf16.msra.mxu0 0
          %553 = vmatprep.subr.bf16.mxu0 0
          %554 = vmatpush1.bf16.msra.mxu0 0
          %555 = vmatprep.subr.bf16.mxu0 0
          %556 = vmatpush1.bf16.msra.mxu0 0
          %557 = vmatprep.subr.bf16.mxu0 0
          %558 = vmatpush1.bf16.msra.mxu0 0
          %559 = vmatprep.subr.bf16.mxu0 0
          %560 = vmatpush1.bf16.msra.mxu0 %v540
          %561 = vmatprep.subr.bf16.mxu0 0
          %562 = vmatpush1.bf16.msra.mxu0 %v539
          %563 = vmatprep.subr.bf16.mxu0 0
          %564 = vmatpush2.bf16.msra.mxu0 0
          %565 = vmatprep.subr.bf16.mxu0 0
          %566 = vmatpush2.bf16.msra.mxu0 0
          %567 = vmatprep.subr.bf16.mxu0 0
          %568 = vmatpush2.bf16.msra.mxu0 0
          %569 = vmatprep.subr.bf16.mxu0 0
          %570 = vmatpush2.bf16.msra.mxu0 0
          %571 = vmatprep.subr.bf16.mxu0 0
          %572 = vmatpush2.bf16.msra.mxu0 0
          %573 = vmatprep.subr.bf16.mxu0 0
          %574 = vmatpush2.bf16.msra.mxu0 0
          %575 = vmatprep.subr.bf16.mxu0 0
          %576 = vmatpush2.bf16.msra.mxu0 0
          %577 = vmatprep.subr.bf16.mxu0 0
          %578 = vmatpush2.bf16.msra.mxu0 0
          %579 = vmatprep.mubr.bf16.mxu0 0
          %580 = vmatmul.mubr.bf16.gmra.mxu0 %v545
          %v581 = vpop.f32.mrf.mxu0
          %v582 = vadd.f32 %v524, %v581
          %v583 = vpop.f32.mrf.mxu0
          %v584 = vpop.f32.mrf.mxu0
          %v585 = vadd.f32 %v524, %v584
          %v586 = vpop.f32.mrf.mxu0
          %587 = vdwg.mxu0
          %590 = vrot.lane.b32.xlu0 %v582, 120
          %v591 = vpop.permute.xlu0 %590
          %592 = vrot.lane.b32.xlu0 %v585, 120
          %v593 = vpop.permute.xlu0 %592
          %596 = vrot.lane.b32.xlu0 %v582, 112
          %v597 = vpop.permute.xlu0 %596
          %598 = vrot.lane.b32.xlu0 %v585, 112
          %v599 = vpop.permute.xlu0 %598
          %602 = vrot.lane.b32.xlu0 %v582, 104
          %v603 = vpop.permute.xlu0 %602
          %604 = vrot.lane.b32.xlu0 %v585, 104
          %v605 = vpop.permute.xlu0 %604
          %v608 = vcombine.low %v582, %v597
          %v609 = vcombine.high %v582, %v597
          %v611 = vunpack.c.l.s4 1983009808
          %v612 = vunpack.c.0.s8 %v611
          %v613 = vlaneseq
          %v614 = vshrl.u32 %v613, 7
          %v615 = vsub.s32 %v612, %v614
          %v616 = vrot.slane %v608, %v615
          %v618 = vunpack.c.l.s4 1983009808
          %v619 = vunpack.c.0.s8 %v618
          %v620 = vlaneseq
          %v621 = vshrl.u32 %v620, 7
          %v622 = vsub.s32 %v619, %v621
          %v623 = vrot.slane %v609, %v622
          %v624 = vcombine.low %v591, %v603
          %v625 = vcombine.high %v591, %v603
          %v627 = vunpack.c.l.s4 1983009808
          %v628 = vunpack.c.0.s8 %v627
          %v629 = vlaneseq
          %v630 = vshrl.u32 %v629, 7
          %v631 = vsub.s32 %v628, %v630
          %v632 = vrot.slane %v624, %v631
          %v634 = vunpack.c.l.s4 1983009808
          %v635 = vunpack.c.0.s8 %v634
          %v636 = vlaneseq
          %v637 = vshrl.u32 %v636, 7
          %v638 = vsub.s32 %v635, %v637
          %v639 = vrot.slane %v625, %v638
          %v640 = vcombine.low %v616, %v632
          %v641 = vcombine.high %v616, %v632
          %v643 = vunpack.c.l.s4 1934713408
          %v644 = vunpack.c.0.s8 %v643
          %v645 = vlaneseq
          %v646 = vshrl.u32 %v645, 7
          %v647 = vsub.s32 %v644, %v646
          %v648 = vrot.slane %v640, %v647
          %v650 = vunpack.c.l.s4 1934713408
          %v651 = vunpack.c.0.s8 %v650
          %v652 = vlaneseq
          %v653 = vshrl.u32 %v652, 7
          %v654 = vsub.s32 %v651, %v653
          %v655 = vrot.slane %v641, %v654
          %v656 = vcombine.low %v623, %v639
          %v657 = vcombine.high %v623, %v639
          %v659 = vunpack.c.l.s4 1934713408
          %v660 = vunpack.c.0.s8 %v659
          %v661 = vlaneseq
          %v662 = vshrl.u32 %v661, 7
          %v663 = vsub.s32 %v660, %v662
          %v664 = vrot.slane %v656, %v663
          %v666 = vunpack.c.l.s4 1934713408
          %v667 = vunpack.c.0.s8 %v666
          %v668 = vlaneseq
          %v669 = vshrl.u32 %v668, 7
          %v670 = vsub.s32 %v667, %v669
          %v671 = vrot.slane %v657, %v670
          %v672 = vcombine.high %v648, 0.0
          %v673 = vcombine.high %v655, 0.0
          %v674 = vcombine.high %v664, 0.0
          %v675 = vcombine.high %v671, 0.0
          %v676 = vcombine.low %v585, %v599
          %v677 = vcombine.high %v585, %v599
          %v679 = vunpack.c.l.s4 1983009808
          %v680 = vunpack.c.0.s8 %v679
          %v681 = vlaneseq
          %v682 = vshrl.u32 %v681, 7
          %v683 = vsub.s32 %v680, %v682
          %v684 = vrot.slane %v676, %v683
          %v686 = vunpack.c.l.s4 1983009808
          %v687 = vunpack.c.0.s8 %v686
          %v688 = vlaneseq
          %v689 = vshrl.u32 %v688, 7
          %v690 = vsub.s32 %v687, %v689
          %v691 = vrot.slane %v677, %v690
          %v692 = vcombine.low %v593, %v605
          %v693 = vcombine.high %v593, %v605
          %v695 = vunpack.c.l.s4 1983009808
          %v696 = vunpack.c.0.s8 %v695
          %v697 = vlaneseq
          %v698 = vshrl.u32 %v697, 7
          %v699 = vsub.s32 %v696, %v698
          %v700 = vrot.slane %v692, %v699
          %v702 = vunpack.c.l.s4 1983009808
          %v703 = vunpack.c.0.s8 %v702
          %v704 = vlaneseq
          %v705 = vshrl.u32 %v704, 7
          %v706 = vsub.s32 %v703, %v705
          %v707 = vrot.slane %v693, %v706
          %v708 = vcombine.low %v684, %v700
          %v709 = vcombine.high %v684, %v700
          %v711 = vunpack.c.l.s4 1934713408
          %v712 = vunpack.c.0.s8 %v711
          %v713 = vlaneseq
          %v714 = vshrl.u32 %v713, 7
          %v715 = vsub.s32 %v712, %v714
          %v716 = vrot.slane %v708, %v715
          %v718 = vunpack.c.l.s4 1934713408
          %v719 = vunpack.c.0.s8 %v718
          %v720 = vlaneseq
          %v721 = vshrl.u32 %v720, 7
          %v722 = vsub.s32 %v719, %v721
          %v723 = vrot.slane %v709, %v722
          %v724 = vcombine.low %v691, %v707
          %v725 = vcombine.high %v691, %v707
          %v727 = vunpack.c.l.s4 1934713408
          %v728 = vunpack.c.0.s8 %v727
          %v729 = vlaneseq
          %v730 = vshrl.u32 %v729, 7
          %v731 = vsub.s32 %v728, %v730
          %v732 = vrot.slane %v724, %v731
          %v734 = vunpack.c.l.s4 1934713408
          %v735 = vunpack.c.0.s8 %v734
          %v736 = vlaneseq
          %v737 = vshrl.u32 %v736, 7
          %v738 = vsub.s32 %v735, %v737
          %v739 = vrot.slane %v725, %v738
          %v740 = vcombine.high %v716, 0.0
          %v741 = vcombine.high %v723, 0.0
          %v742 = vcombine.high %v732, 0.0
          %v743 = vcombine.high %v739, 0.0
          %v744 = vcombine.low %v648, %v655
          %v746 = vunpack.c.l.s4 1983009808
          %v747 = vunpack.c.0.s8 %v746
          %v748 = vlaneseq
          %v749 = vshrl.u32 %v748, 7
          %v750 = vsub.s32 %v747, %v749
          %v751 = vrot.slane %v744, %v750
          %v752 = vcombine.low %v672, %v673
          %v754 = vunpack.c.l.s4 1983009808
          %v755 = vunpack.c.0.s8 %v754
          %v756 = vlaneseq
          %v757 = vshrl.u32 %v756, 7
          %v758 = vsub.s32 %v755, %v757
          %v759 = vrot.slane %v752, %v758
          %v760 = vcombine.low %v664, %v671
          %v762 = vunpack.c.l.s4 1983009808
          %v763 = vunpack.c.0.s8 %v762
          %v764 = vlaneseq
          %v765 = vshrl.u32 %v764, 7
          %v766 = vsub.s32 %v763, %v765
          %v767 = vrot.slane %v760, %v766
          %v768 = vcombine.low %v674, %v675
          %v770 = vunpack.c.l.s4 1983009808
          %v771 = vunpack.c.0.s8 %v770
          %v772 = vlaneseq
          %v773 = vshrl.u32 %v772, 7
          %v774 = vsub.s32 %v771, %v773
          %v775 = vrot.slane %v768, %v774
          %v776 = vcombine.low %v751, %v759
          %v777 = vcombine.high %v751, %v759
          %v779 = vunpack.c.l.s4 1934713408
          %v780 = vunpack.c.0.s8 %v779
          %v781 = vlaneseq
          %v782 = vshrl.u32 %v781, 7
          %v783 = vsub.s32 %v780, %v782
          %v784 = vrot.slane %v776, %v783
          %v786 = vunpack.c.l.s4 1934713408
          %v787 = vunpack.c.0.s8 %v786
          %v788 = vlaneseq
          %v789 = vshrl.u32 %v788, 7
          %v790 = vsub.s32 %v787, %v789
          %v791 = vrot.slane %v777, %v790
          %v792 = vcombine.low %v767, %v775
          %v793 = vcombine.high %v767, %v775
          %v795 = vunpack.c.l.s4 1934713408
          %v796 = vunpack.c.0.s8 %v795
          %v797 = vlaneseq
          %v798 = vshrl.u32 %v797, 7
          %v799 = vsub.s32 %v796, %v798
          %v800 = vrot.slane %v792, %v799
          %v802 = vunpack.c.l.s4 1934713408
          %v803 = vunpack.c.0.s8 %v802
          %v804 = vlaneseq
          %v805 = vshrl.u32 %v804, 7
          %v806 = vsub.s32 %v803, %v805
          %v807 = vrot.slane %v793, %v806
          %v808 = vcombine.low %v784, %v800
          %v809 = vcombine.high %v784, %v800
          %v810 = vcombine.low %v791, %v807
          %v811 = vcombine.high %v791, %v807
          %v812 = vcombine.low %v716, %v723
          %v814 = vunpack.c.l.s4 1983009808
          %v815 = vunpack.c.0.s8 %v814
          %v816 = vlaneseq
          %v817 = vshrl.u32 %v816, 7
          %v818 = vsub.s32 %v815, %v817
          %v819 = vrot.slane %v812, %v818
          %v820 = vcombine.low %v740, %v741
          %v822 = vunpack.c.l.s4 1983009808
          %v823 = vunpack.c.0.s8 %v822
          %v824 = vlaneseq
          %v825 = vshrl.u32 %v824, 7
          %v826 = vsub.s32 %v823, %v825
          %v827 = vrot.slane %v820, %v826
          %v828 = vcombine.low %v732, %v739
          %v830 = vunpack.c.l.s4 1983009808
          %v831 = vunpack.c.0.s8 %v830
          %v832 = vlaneseq
          %v833 = vshrl.u32 %v832, 7
          %v834 = vsub.s32 %v831, %v833
          %v835 = vrot.slane %v828, %v834
          %v836 = vcombine.low %v742, %v743
          %v838 = vunpack.c.l.s4 1983009808
          %v839 = vunpack.c.0.s8 %v838
          %v840 = vlaneseq
          %v841 = vshrl.u32 %v840, 7
          %v842 = vsub.s32 %v839, %v841
          %v843 = vrot.slane %v836, %v842
          %v844 = vcombine.low %v819, %v827
          %v845 = vcombine.high %v819, %v827
          %v847 = vunpack.c.l.s4 1934713408
          %v848 = vunpack.c.0.s8 %v847
          %v849 = vlaneseq
          %v850 = vshrl.u32 %v849, 7
          %v851 = vsub.s32 %v848, %v850
          %v852 = vrot.slane %v844, %v851
          %v854 = vunpack.c.l.s4 1934713408
          %v855 = vunpack.c.0.s8 %v854
          %v856 = vlaneseq
          %v857 = vshrl.u32 %v856, 7
          %v858 = vsub.s32 %v855, %v857
          %v859 = vrot.slane %v845, %v858
          %v860 = vcombine.low %v835, %v843
          %v861 = vcombine.high %v835, %v843
          %v863 = vunpack.c.l.s4 1934713408
          %v864 = vunpack.c.0.s8 %v863
          %v865 = vlaneseq
          %v866 = vshrl.u32 %v865, 7
          %v867 = vsub.s32 %v864, %v866
          %v868 = vrot.slane %v860, %v867
          %v870 = vunpack.c.l.s4 1934713408
          %v871 = vunpack.c.0.s8 %v870
          %v872 = vlaneseq
          %v873 = vshrl.u32 %v872, 7
          %v874 = vsub.s32 %v871, %v873
          %v875 = vrot.slane %v861, %v874
          %v876 = vcombine.low %v852, %v868
          %v877 = vcombine.high %v852, %v868
          %v878 = vcombine.low %v859, %v875
          %v879 = vcombine.high %v859, %v875
          %880 = vrot.lane.b32.xlu0 %v582, 96
          %v881 = vpop.permute.xlu0 %880
          %882 = vrot.lane.b32.xlu0 %v585, 96
          %v883 = vpop.permute.xlu0 %882
          %884 = vrot.lane.b32.xlu0 %v591, 96
          %v885 = vpop.permute.xlu0 %884
          %886 = vrot.lane.b32.xlu0 %v593, 96
          %v887 = vpop.permute.xlu0 %886
          %888 = vrot.lane.b32.xlu0 %v597, 96
          %v889 = vpop.permute.xlu0 %888
          %890 = vrot.lane.b32.xlu0 %v599, 96
          %v891 = vpop.permute.xlu0 %890
          %892 = vrot.lane.b32.xlu0 %v603, 96
          %v893 = vpop.permute.xlu0 %892
          %894 = vrot.lane.b32.xlu0 %v605, 96
          %v895 = vpop.permute.xlu0 %894
          %v904 = vcombine.low %v881, %v889
          %v905 = vcombine.high %v881, %v889
          %v907 = vunpack.c.l.s4 1983009808
          %v908 = vunpack.c.0.s8 %v907
          %v909 = vlaneseq
          %v910 = vshrl.u32 %v909, 7
          %v911 = vsub.s32 %v908, %v910
          %v912 = vrot.slane %v904, %v911
          %v914 = vunpack.c.l.s4 1983009808
          %v915 = vunpack.c.0.s8 %v914
          %v916 = vlaneseq
          %v917 = vshrl.u32 %v916, 7
          %v918 = vsub.s32 %v915, %v917
          %v919 = vrot.slane %v905, %v918
          %v920 = vcombine.low %v885, %v893
          %v921 = vcombine.high %v885, %v893
          %v923 = vunpack.c.l.s4 1983009808
          %v924 = vunpack.c.0.s8 %v923
          %v925 = vlaneseq
          %v926 = vshrl.u32 %v925, 7
          %v927 = vsub.s32 %v924, %v926
          %v928 = vrot.slane %v920, %v927
          %v930 = vunpack.c.l.s4 1983009808
          %v931 = vunpack.c.0.s8 %v930
          %v932 = vlaneseq
          %v933 = vshrl.u32 %v932, 7
          %v934 = vsub.s32 %v931, %v933
          %v935 = vrot.slane %v921, %v934
          %v936 = vcombine.low %v912, %v928
          %v937 = vcombine.high %v912, %v928
          %v939 = vunpack.c.l.s4 1934713408
          %v940 = vunpack.c.0.s8 %v939
          %v941 = vlaneseq
          %v942 = vshrl.u32 %v941, 7
          %v943 = vsub.s32 %v940, %v942
          %v944 = vrot.slane %v936, %v943
          %v946 = vunpack.c.l.s4 1934713408
          %v947 = vunpack.c.0.s8 %v946
          %v948 = vlaneseq
          %v949 = vshrl.u32 %v948, 7
          %v950 = vsub.s32 %v947, %v949
          %v951 = vrot.slane %v937, %v950
          %v952 = vcombine.low %v919, %v935
          %v953 = vcombine.high %v919, %v935
          %v955 = vunpack.c.l.s4 1934713408
          %v956 = vunpack.c.0.s8 %v955
          %v957 = vlaneseq
          %v958 = vshrl.u32 %v957, 7
          %v959 = vsub.s32 %v956, %v958
          %v960 = vrot.slane %v952, %v959
          %v962 = vunpack.c.l.s4 1934713408
          %v963 = vunpack.c.0.s8 %v962
          %v964 = vlaneseq
          %v965 = vshrl.u32 %v964, 7
          %v966 = vsub.s32 %v963, %v965
          %v967 = vrot.slane %v953, %v966
          %v968 = vcombine.high %v944, 0.0
          %v969 = vcombine.high %v951, 0.0
          %v970 = vcombine.high %v960, 0.0
          %v971 = vcombine.high %v967, 0.0
          %v972 = vcombine.low %v883, %v891
          %v973 = vcombine.high %v883, %v891
          %v975 = vunpack.c.l.s4 1983009808
          %v976 = vunpack.c.0.s8 %v975
          %v977 = vlaneseq
          %v978 = vshrl.u32 %v977, 7
          %v979 = vsub.s32 %v976, %v978
          %v980 = vrot.slane %v972, %v979
          %v982 = vunpack.c.l.s4 1983009808
          %v983 = vunpack.c.0.s8 %v982
          %v984 = vlaneseq
          %v985 = vshrl.u32 %v984, 7
          %v986 = vsub.s32 %v983, %v985
          %v987 = vrot.slane %v973, %v986
          %v988 = vcombine.low %v887, %v895
          %v989 = vcombine.high %v887, %v895
          %v991 = vunpack.c.l.s4 1983009808
          %v992 = vunpack.c.0.s8 %v991
          %v993 = vlaneseq
          %v994 = vshrl.u32 %v993, 7
          %v995 = vsub.s32 %v992, %v994
          %v996 = vrot.slane %v988, %v995
          %v998 = vunpack.c.l.s4 1983009808
          %v999 = vunpack.c.0.s8 %v998
          %v1000 = vlaneseq
          %v1001 = vshrl.u32 %v1000, 7
          %v1002 = vsub.s32 %v999, %v1001
          %v1003 = vrot.slane %v989, %v1002
          %v1004 = vcombine.low %v980, %v996
          %v1005 = vcombine.high %v980, %v996
          %v1007 = vunpack.c.l.s4 1934713408
          %v1008 = vunpack.c.0.s8 %v1007
          %v1009 = vlaneseq
          %v1010 = vshrl.u32 %v1009, 7
          %v1011 = vsub.s32 %v1008, %v1010
          %v1012 = vrot.slane %v1004, %v1011
          %v1014 = vunpack.c.l.s4 1934713408
          %v1015 = vunpack.c.0.s8 %v1014
          %v1016 = vlaneseq
          %v1017 = vshrl.u32 %v1016, 7
          %v1018 = vsub.s32 %v1015, %v1017
          %v1019 = vrot.slane %v1005, %v1018
          %v1020 = vcombine.low %v987, %v1003
          %v1021 = vcombine.high %v987, %v1003
          %v1023 = vunpack.c.l.s4 1934713408
          %v1024 = vunpack.c.0.s8 %v1023
          %v1025 = vlaneseq
          %v1026 = vshrl.u32 %v1025, 7
          %v1027 = vsub.s32 %v1024, %v1026
          %v1028 = vrot.slane %v1020, %v1027
          %v1030 = vunpack.c.l.s4 1934713408
          %v1031 = vunpack.c.0.s8 %v1030
          %v1032 = vlaneseq
          %v1033 = vshrl.u32 %v1032, 7
          %v1034 = vsub.s32 %v1031, %v1033
          %v1035 = vrot.slane %v1021, %v1034
          %v1036 = vcombine.high %v1012, 0.0
          %v1037 = vcombine.high %v1019, 0.0
          %v1038 = vcombine.high %v1028, 0.0
          %v1039 = vcombine.high %v1035, 0.0
          %v1040 = vcombine.low %v944, %v951
          %v1042 = vunpack.c.l.s4 1983009808
          %v1043 = vunpack.c.0.s8 %v1042
          %v1044 = vlaneseq
          %v1045 = vshrl.u32 %v1044, 7
          %v1046 = vsub.s32 %v1043, %v1045
          %v1047 = vrot.slane %v1040, %v1046
          %v1048 = vcombine.low %v968, %v969
          %v1050 = vunpack.c.l.s4 1983009808
          %v1051 = vunpack.c.0.s8 %v1050
          %v1052 = vlaneseq
          %v1053 = vshrl.u32 %v1052, 7
          %v1054 = vsub.s32 %v1051, %v1053
          %v1055 = vrot.slane %v1048, %v1054
          %v1056 = vcombine.low %v960, %v967
          %v1058 = vunpack.c.l.s4 1983009808
          %v1059 = vunpack.c.0.s8 %v1058
          %v1060 = vlaneseq
          %v1061 = vshrl.u32 %v1060, 7
          %v1062 = vsub.s32 %v1059, %v1061
          %v1063 = vrot.slane %v1056, %v1062
          %v1064 = vcombine.low %v970, %v971
          %v1066 = vunpack.c.l.s4 1983009808
          %v1067 = vunpack.c.0.s8 %v1066
          %v1068 = vlaneseq
          %v1069 = vshrl.u32 %v1068, 7
          %v1070 = vsub.s32 %v1067, %v1069
          %v1071 = vrot.slane %v1064, %v1070
          %v1072 = vcombine.low %v1047, %v1055
          %v1073 = vcombine.high %v1047, %v1055
          %v1075 = vunpack.c.l.s4 1934713408
          %v1076 = vunpack.c.0.s8 %v1075
          %v1077 = vlaneseq
          %v1078 = vshrl.u32 %v1077, 7
          %v1079 = vsub.s32 %v1076, %v1078
          %v1080 = vrot.slane %v1072, %v1079
          %v1082 = vunpack.c.l.s4 1934713408
          %v1083 = vunpack.c.0.s8 %v1082
          %v1084 = vlaneseq
          %v1085 = vshrl.u32 %v1084, 7
          %v1086 = vsub.s32 %v1083, %v1085
          %v1087 = vrot.slane %v1073, %v1086
          %v1088 = vcombine.low %v1063, %v1071
          %v1089 = vcombine.high %v1063, %v1071
          %v1091 = vunpack.c.l.s4 1934713408
          %v1092 = vunpack.c.0.s8 %v1091
          %v1093 = vlaneseq
          %v1094 = vshrl.u32 %v1093, 7
          %v1095 = vsub.s32 %v1092, %v1094
          %v1096 = vrot.slane %v1088, %v1095
          %v1098 = vunpack.c.l.s4 1934713408
          %v1099 = vunpack.c.0.s8 %v1098
          %v1100 = vlaneseq
          %v1101 = vshrl.u32 %v1100, 7
          %v1102 = vsub.s32 %v1099, %v1101
          %v1103 = vrot.slane %v1089, %v1102
          %v1104 = vcombine.low %v1080, %v1096
          %v1105 = vcombine.high %v1080, %v1096
          %v1106 = vcombine.low %v1087, %v1103
          %v1107 = vcombine.high %v1087, %v1103
          %v1108 = vcombine.low %v1012, %v1019
          %v1110 = vunpack.c.l.s4 1983009808
          %v1111 = vunpack.c.0.s8 %v1110
          %v1112 = vlaneseq
          %v1113 = vshrl.u32 %v1112, 7
          %v1114 = vsub.s32 %v1111, %v1113
          %v1115 = vrot.slane %v1108, %v1114
          %v1116 = vcombine.low %v1036, %v1037
          %v1118 = vunpack.c.l.s4 1983009808
          %v1119 = vunpack.c.0.s8 %v1118
          %v1120 = vlaneseq
          %v1121 = vshrl.u32 %v1120, 7
          %v1122 = vsub.s32 %v1119, %v1121
          %v1123 = vrot.slane %v1116, %v1122
          %v1124 = vcombine.low %v1028, %v1035
          %v1126 = vunpack.c.l.s4 1983009808
          %v1127 = vunpack.c.0.s8 %v1126
          %v1128 = vlaneseq
          %v1129 = vshrl.u32 %v1128, 7
          %v1130 = vsub.s32 %v1127, %v1129
          %v1131 = vrot.slane %v1124, %v1130
          %v1132 = vcombine.low %v1038, %v1039
          %v1134 = vunpack.c.l.s4 1983009808
          %v1135 = vunpack.c.0.s8 %v1134
          %v1136 = vlaneseq
          %v1137 = vshrl.u32 %v1136, 7
          %v1138 = vsub.s32 %v1135, %v1137
          %v1139 = vrot.slane %v1132, %v1138
          %v1140 = vcombine.low %v1115, %v1123
          %v1141 = vcombine.high %v1115, %v1123
          %v1143 = vunpack.c.l.s4 1934713408
          %v1144 = vunpack.c.0.s8 %v1143
          %v1145 = vlaneseq
          %v1146 = vshrl.u32 %v1145, 7
          %v1147 = vsub.s32 %v1144, %v1146
          %v1148 = vrot.slane %v1140, %v1147
          %v1150 = vunpack.c.l.s4 1934713408
          %v1151 = vunpack.c.0.s8 %v1150
          %v1152 = vlaneseq
          %v1153 = vshrl.u32 %v1152, 7
          %v1154 = vsub.s32 %v1151, %v1153
          %v1155 = vrot.slane %v1141, %v1154
          %v1156 = vcombine.low %v1131, %v1139
          %v1157 = vcombine.high %v1131, %v1139
          %v1159 = vunpack.c.l.s4 1934713408
          %v1160 = vunpack.c.0.s8 %v1159
          %v1161 = vlaneseq
          %v1162 = vshrl.u32 %v1161, 7
          %v1163 = vsub.s32 %v1160, %v1162
          %v1164 = vrot.slane %v1156, %v1163
          %v1166 = vunpack.c.l.s4 1934713408
          %v1167 = vunpack.c.0.s8 %v1166
          %v1168 = vlaneseq
          %v1169 = vshrl.u32 %v1168, 7
          %v1170 = vsub.s32 %v1167, %v1169
          %v1171 = vrot.slane %v1157, %v1170
          %v1172 = vcombine.low %v1148, %v1164
          %v1173 = vcombine.high %v1148, %v1164
          %v1174 = vcombine.low %v1155, %v1171
          %v1175 = vcombine.high %v1155, %v1171
          %1176 = vxpose.xlu0.b32.start [1/16] %v808, 128
          %1177 = vxpose.xlu0.b32.cont [2/16] %v876, 128
          %1178 = vxpose.xlu0.b32.cont [3/16] 0.0, 128
          %1179 = vxpose.xlu0.b32.cont [4/16] 0.0, 128
          %1180 = vxpose.xlu0.b32.cont [5/16] 0.0, 128
          %1181 = vxpose.xlu0.b32.cont [6/16] 0.0, 128
          %1182 = vxpose.xlu0.b32.cont [7/16] 0.0, 128
          %1183 = vxpose.xlu0.b32.cont [8/16] 0.0, 128
          %1184 = vxpose.xlu0.b32.cont [9/16] 0.0, 128
          %1185 = vxpose.xlu0.b32.cont [10/16] 0.0, 128
          %1186 = vxpose.xlu0.b32.cont [11/16] 0.0, 128
          %1187 = vxpose.xlu0.b32.cont [12/16] 0.0, 128
          %1188 = vxpose.xlu0.b32.cont [13/16] 0.0, 128
          %1189 = vxpose.xlu0.b32.cont [14/16] 0.0, 128
          %1190 = vxpose.xlu0.b32.cont [15/16] 0.0, 128
          %1191 = vxpose.xlu0.b32.end [16/16] 0.0, 128
          %v1192 = vpop.trf.xlu0
          %v1193 = vpop.trf.xlu0
          %v1194 = vpop.trf.xlu0
          %v1195 = vpop.trf.xlu0
          %v1196 = vpop.trf.xlu0
          %v1197 = vpop.trf.xlu0
          %v1198 = vpop.trf.xlu0
          %v1199 = vpop.trf.xlu0
          %v1200 = vpop.trf.xlu0
          %v1201 = vpop.trf.xlu0
          %v1202 = vpop.trf.xlu0
          %v1203 = vpop.trf.xlu0
          %v1204 = vpop.trf.xlu0
          %v1205 = vpop.trf.xlu0
          %v1206 = vpop.trf.xlu0
          %v1207 = vpop.trf.xlu0
          %1208 = vxpose.xlu0.b32.start [1/16] %v809, 128
          %1209 = vxpose.xlu0.b32.cont [2/16] %v877, 128
          %1210 = vxpose.xlu0.b32.cont [3/16] 0.0, 128
          %1211 = vxpose.xlu0.b32.cont [4/16] 0.0, 128
          %1212 = vxpose.xlu0.b32.cont [5/16] 0.0, 128
          %1213 = vxpose.xlu0.b32.cont [6/16] 0.0, 128
          %1214 = vxpose.xlu0.b32.cont [7/16] 0.0, 128
          %1215 = vxpose.xlu0.b32.cont [8/16] 0.0, 128
          %1216 = vxpose.xlu0.b32.cont [9/16] 0.0, 128
          %1217 = vxpose.xlu0.b32.cont [10/16] 0.0, 128
          %1218 = vxpose.xlu0.b32.cont [11/16] 0.0, 128
          %1219 = vxpose.xlu0.b32.cont [12/16] 0.0, 128
          %1220 = vxpose.xlu0.b32.cont [13/16] 0.0, 128
          %1221 = vxpose.xlu0.b32.cont [14/16] 0.0, 128
          %1222 = vxpose.xlu0.b32.cont [15/16] 0.0, 128
          %1223 = vxpose.xlu0.b32.end [16/16] 0.0, 128
          %v1224 = vpop.trf.xlu0
          %v1225 = vpop.trf.xlu0
          %v1226 = vpop.trf.xlu0
          %v1227 = vpop.trf.xlu0
          %v1228 = vpop.trf.xlu0
          %v1229 = vpop.trf.xlu0
          %v1230 = vpop.trf.xlu0
          %v1231 = vpop.trf.xlu0
          %v1232 = vpop.trf.xlu0
          %v1233 = vpop.trf.xlu0
          %v1234 = vpop.trf.xlu0
          %v1235 = vpop.trf.xlu0
          %v1236 = vpop.trf.xlu0
          %v1237 = vpop.trf.xlu0
          %v1238 = vpop.trf.xlu0
          %v1239 = vpop.trf.xlu0
          %1240 = vxpose.xlu0.b32.start [1/16] %v810, 128
          %1241 = vxpose.xlu0.b32.cont [2/16] %v878, 128
          %1242 = vxpose.xlu0.b32.cont [3/16] 0.0, 128
          %1243 = vxpose.xlu0.b32.cont [4/16] 0.0, 128
          %1244 = vxpose.xlu0.b32.cont [5/16] 0.0, 128
          %1245 = vxpose.xlu0.b32.cont [6/16] 0.0, 128
          %1246 = vxpose.xlu0.b32.cont [7/16] 0.0, 128
          %1247 = vxpose.xlu0.b32.cont [8/16] 0.0, 128
          %1248 = vxpose.xlu0.b32.cont [9/16] 0.0, 128
          %1249 = vxpose.xlu0.b32.cont [10/16] 0.0, 128
          %1250 = vxpose.xlu0.b32.cont [11/16] 0.0, 128
          %1251 = vxpose.xlu0.b32.cont [12/16] 0.0, 128
          %1252 = vxpose.xlu0.b32.cont [13/16] 0.0, 128
          %1253 = vxpose.xlu0.b32.cont [14/16] 0.0, 128
          %1254 = vxpose.xlu0.b32.cont [15/16] 0.0, 128
          %1255 = vxpose.xlu0.b32.end [16/16] 0.0, 128
          %v1256 = vpop.trf.xlu0
          %v1257 = vpop.trf.xlu0
          %v1258 = vpop.trf.xlu0
          %v1259 = vpop.trf.xlu0
          %v1260 = vpop.trf.xlu0
          %v1261 = vpop.trf.xlu0
          %v1262 = vpop.trf.xlu0
          %v1263 = vpop.trf.xlu0
          %v1264 = vpop.trf.xlu0
          %v1265 = vpop.trf.xlu0
          %v1266 = vpop.trf.xlu0
          %v1267 = vpop.trf.xlu0
          %v1268 = vpop.trf.xlu0
          %v1269 = vpop.trf.xlu0
          %v1270 = vpop.trf.xlu0
          %v1271 = vpop.trf.xlu0
          %1272 = vxpose.xlu0.b32.start [1/16] %v811, 128
          %1273 = vxpose.xlu0.b32.cont [2/16] %v879, 128
          %1274 = vxpose.xlu0.b32.cont [3/16] 0.0, 128
          %1275 = vxpose.xlu0.b32.cont [4/16] 0.0, 128
          %1276 = vxpose.xlu0.b32.cont [5/16] 0.0, 128
          %1277 = vxpose.xlu0.b32.cont [6/16] 0.0, 128
          %1278 = vxpose.xlu0.b32.cont [7/16] 0.0, 128
          %1279 = vxpose.xlu0.b32.cont [8/16] 0.0, 128
          %1280 = vxpose.xlu0.b32.cont [9/16] 0.0, 128
          %1281 = vxpose.xlu0.b32.cont [10/16] 0.0, 128
          %1282 = vxpose.xlu0.b32.cont [11/16] 0.0, 128
          %1283 = vxpose.xlu0.b32.cont [12/16] 0.0, 128
          %1284 = vxpose.xlu0.b32.cont [13/16] 0.0, 128
          %1285 = vxpose.xlu0.b32.cont [14/16] 0.0, 128
          %1286 = vxpose.xlu0.b32.cont [15/16] 0.0, 128
          %1287 = vxpose.xlu0.b32.end [16/16] 0.0, 128
          %v1288 = vpop.trf.xlu0
          %v1289 = vpop.trf.xlu0
          %v1290 = vpop.trf.xlu0
          %v1291 = vpop.trf.xlu0
          %v1292 = vpop.trf.xlu0
          %v1293 = vpop.trf.xlu0
          %v1294 = vpop.trf.xlu0
          %v1295 = vpop.trf.xlu0
          %v1296 = vpop.trf.xlu0
          %v1297 = vpop.trf.xlu0
          %v1298 = vpop.trf.xlu0
          %v1299 = vpop.trf.xlu0
          %v1300 = vpop.trf.xlu0
          %v1301 = vpop.trf.xlu0
          %v1302 = vpop.trf.xlu0
          %v1303 = vpop.trf.xlu0
          %v1304 = vpack.c.bf16 %v1192, %v1192
          %v1305 = vpack.c.bf16 %v1224, %v1224
          %v1306 = vpack.c.bf16 %v1256, %v1256
          %v1307 = vpack.c.bf16 %v1288, %v1288
          %s1308 = smul.addr %s505, 4
          %s1309 = scalar_lea.vmem [#allocation2], %s1308
          %vm1310 = vcmask 125952
          %1311 = vst.msk [vmem:[%s1309] sm:$0xf] %vm1310, %v1304
          %1312 = vst.msk [vmem:[%s1309 + $0x4] sm:$0xf] %vm1310, %v1305
          %1313 = vst.msk [vmem:[%s1309 + $0x8] sm:$0xf] %vm1310, %v1306
          %1314 = vst.msk [vmem:[%s1309 + $0xc] sm:$0xf] %vm1310, %v1307
          %v1315 = vpack.c.bf16 %v1172, %v1104
          %v1316 = vpack.c.bf16 %v1173, %v1105
          %v1317 = vpack.c.bf16 %v1174, %v1106
          %v1318 = vpack.c.bf16 %v1175, %v1107
          %v1323 = vunpack.c.l.b16 %v1315
          %v1324 = vunpack.c.h.b16 %v1315
          %v1325 = vunpack.c.l.b16 %v1316
          %v1326 = vunpack.c.h.b16 %v1316
          %v1327 = vunpack.c.l.b16 %v1317
          %v1328 = vunpack.c.h.b16 %v1317
          %v1329 = vunpack.c.l.b16 %v1318
          %v1330 = vunpack.c.h.b16 %v1318
          %v1331 = vpack.c.b16 %v1323, %v1323
          %v1332 = vpack.c.b16 %v1324, %v1324
          %v1333 = vpack.c.b16 %v1325, %v1325
          %v1334 = vpack.c.b16 %v1326, %v1326
          %v1335 = vpack.c.b16 %v1327, %v1327
          %v1336 = vpack.c.b16 %v1328, %v1328
          %v1337 = vpack.c.b16 %v1329, %v1329
          %v1338 = vpack.c.b16 %v1330, %v1330
          %s1347 = smul.u32 %s505, 2
          %s1348 = smul.addr %s1347, 4
          %s1349 = scalar_lea.vmem [#allocation3], %s1348
          %vm1350 = vcmask 60416
          %1351 = vst.msk [vmem:[%s1349] sm:$0xf] %vm1350, %v1331
          %1352 = vst.msk [vmem:[%s1349 + $0x4] sm:$0xf] %vm1350, %v1332
          %1353 = vst.msk [vmem:[%s1349 + $0x8] sm:$0xf] %vm1350, %v1333
          %1354 = vst.msk [vmem:[%s1349 + $0xc] sm:$0xf] %vm1350, %v1334
          %1355 = vst.msk [vmem:[%s1349 + $0x10] sm:$0xf] %vm1350, %v1335
          %1356 = vst.msk [vmem:[%s1349 + $0x14] sm:$0xf] %vm1350, %v1336
          %1357 = vst.msk [vmem:[%s1349 + $0x18] sm:$0xf] %vm1350, %v1337
          %1358 = vst.msk [vmem:[%s1349 + $0x1c] sm:$0xf] %vm1350, %v1338
        $region84: #{tpu_custom_call.1} parent=55 // pred_fallthru
          _
        %v1359 = vld [vmem:[%s426] sm:$0xf]
        %v1360 = vld [vmem:[%s426 + $0x4] sm:$0xf]
        %s1361 = smul.addr %s505, 4
        %s1362 = scalar_lea.vmem [#allocation11], %s1361
        %v1363 = vld [vmem:[%s1362] sm:$0xf]
        %v1364 = vld [vmem:[%s1362 + $0x4] sm:$0xf]
        %v1365 = vld [vmem:[%s1362 + $0x8] sm:$0xf]
        %v1366 = vld [vmem:[%s1362 + $0xc] sm:$0xf]
        %s1367 = scalar_lea.vmem %s4, %s38
        %v1368 = vld [vmem:[%s1367] sm:$0x1]
        %v1370 = vlaneseq
        %v1371 = vshrl.u32 %v1370, 7
        %v1372 = vsub.s32 0, %v1371
        %v1373 = vrot.slane %v1368, %v1372
        %v1377 = vunpack.c.l.b16 %v1359
        %v1378 = vunpack.c.l.b16 %v1360
        %v1379 = vpack.c.b16 %v1378, %v1377
        %v1384 = vunpack.c.l.b16 %v1363
        %v1385 = vunpack.c.l.b16 %v1364
        %v1386 = vunpack.c.l.b16 %v1365
        %v1387 = vunpack.c.l.b16 %v1366
        %v1388 = vpack.c.b16 %v1385, %v1384
        %v1389 = vpack.c.b16 %v1387, %v1386
        %vm1392 = vcmask 261120
        %v1394 = vsel %vm1392, %v1379, 0
        %1396 = vmatprep.subr.bf16.mxu0 0
        %1397 = vmatpush1.bf16.msra.mxu0 0
        %1398 = vmatprep.subr.bf16.mxu0 0
        %1399 = vmatpush1.bf16.msra.mxu0 0
        %1400 = vmatprep.subr.bf16.mxu0 0
        %1401 = vmatpush1.bf16.msra.mxu0 0
        %1402 = vmatprep.subr.bf16.mxu0 0
        %1403 = vmatpush1.bf16.msra.mxu0 0
        %1404 = vmatprep.subr.bf16.mxu0 0
        %1405 = vmatpush1.bf16.msra.mxu0 0
        %1406 = vmatprep.subr.bf16.mxu0 0
        %1407 = vmatpush1.bf16.msra.mxu0 0
        %1408 = vmatprep.subr.bf16.mxu0 0
        %1409 = vmatpush1.bf16.msra.mxu0 %v1389
        %1410 = vmatprep.subr.bf16.mxu0 0
        %1411 = vmatpush1.bf16.msra.mxu0 %v1388
        %1412 = vmatprep.subr.bf16.mxu0 0
        %1413 = vmatpush2.bf16.msra.mxu0 0
        %1414 = vmatprep.subr.bf16.mxu0 0
        %1415 = vmatpush2.bf16.msra.mxu0 0
        %1416 = vmatprep.subr.bf16.mxu0 0
        %1417 = vmatpush2.bf16.msra.mxu0 0
        %1418 = vmatprep.subr.bf16.mxu0 0
        %1419 = vmatpush2.bf16.msra.mxu0 0
        %1420 = vmatprep.subr.bf16.mxu0 0
        %1421 = vmatpush2.bf16.msra.mxu0 0
        %1422 = vmatprep.subr.bf16.mxu0 0
        %1423 = vmatpush2.bf16.msra.mxu0 0
        %1424 = vmatprep.subr.bf16.mxu0 0
        %1425 = vmatpush2.bf16.msra.mxu0 0
        %1426 = vmatprep.subr.bf16.mxu0 0
        %1427 = vmatpush2.bf16.msra.mxu0 0
        %1428 = vmatprep.mubr.bf16.mxu0 0
        %1429 = vmatmul.mubr.bf16.gmra.mxu0 %v1394
        %v1430 = vpop.f32.mrf.mxu0
        %v1431 = vadd.f32 %v1373, %v1430
        %v1432 = vpop.f32.mrf.mxu0
        %v1433 = vpop.f32.mrf.mxu0
        %v1434 = vadd.f32 %v1373, %v1433
        %v1435 = vpop.f32.mrf.mxu0
        %1436 = vdwg.mxu0
        %1439 = vrot.lane.b32.xlu0 %v1431, 120
        %v1440 = vpop.permute.xlu0 %1439
        %1441 = vrot.lane.b32.xlu0 %v1434, 120
        %v1442 = vpop.permute.xlu0 %1441
        %1445 = vrot.lane.b32.xlu0 %v1431, 112
        %v1446 = vpop.permute.xlu0 %1445
        %1447 = vrot.lane.b32.xlu0 %v1434, 112
        %v1448 = vpop.permute.xlu0 %1447
        %1451 = vrot.lane.b32.xlu0 %v1431, 104
        %v1452 = vpop.permute.xlu0 %1451
        %1453 = vrot.lane.b32.xlu0 %v1434, 104
        %v1454 = vpop.permute.xlu0 %1453
        %v1457 = vcombine.low %v1431, %v1446
        %v1458 = vcombine.high %v1431, %v1446
        %v1460 = vunpack.c.l.s4 1983009808
        %v1461 = vunpack.c.0.s8 %v1460
        %v1462 = vlaneseq
        %v1463 = vshrl.u32 %v1462, 7
        %v1464 = vsub.s32 %v1461, %v1463
        %v1465 = vrot.slane %v1457, %v1464
        %v1467 = vunpack.c.l.s4 1983009808
        %v1468 = vunpack.c.0.s8 %v1467
        %v1469 = vlaneseq
        %v1470 = vshrl.u32 %v1469, 7
        %v1471 = vsub.s32 %v1468, %v1470
        %v1472 = vrot.slane %v1458, %v1471
        %v1473 = vcombine.low %v1440, %v1452
        %v1474 = vcombine.high %v1440, %v1452
        %v1476 = vunpack.c.l.s4 1983009808
        %v1477 = vunpack.c.0.s8 %v1476
        %v1478 = vlaneseq
        %v1479 = vshrl.u32 %v1478, 7
        %v1480 = vsub.s32 %v1477, %v1479
        %v1481 = vrot.slane %v1473, %v1480
        %v1483 = vunpack.c.l.s4 1983009808
        %v1484 = vunpack.c.0.s8 %v1483
        %v1485 = vlaneseq
        %v1486 = vshrl.u32 %v1485, 7
        %v1487 = vsub.s32 %v1484, %v1486
        %v1488 = vrot.slane %v1474, %v1487
        %v1489 = vcombine.low %v1465, %v1481
        %v1490 = vcombine.high %v1465, %v1481
        %v1492 = vunpack.c.l.s4 1934713408
        %v1493 = vunpack.c.0.s8 %v1492
        %v1494 = vlaneseq
        %v1495 = vshrl.u32 %v1494, 7
        %v1496 = vsub.s32 %v1493, %v1495
        %v1497 = vrot.slane %v1489, %v1496
        %v1499 = vunpack.c.l.s4 1934713408
        %v1500 = vunpack.c.0.s8 %v1499
        %v1501 = vlaneseq
        %v1502 = vshrl.u32 %v1501, 7
        %v1503 = vsub.s32 %v1500, %v1502
        %v1504 = vrot.slane %v1490, %v1503
        %v1505 = vcombine.low %v1472, %v1488
        %v1506 = vcombine.high %v1472, %v1488
        %v1508 = vunpack.c.l.s4 1934713408
        %v1509 = vunpack.c.0.s8 %v1508
        %v1510 = vlaneseq
        %v1511 = vshrl.u32 %v1510, 7
        %v1512 = vsub.s32 %v1509, %v1511
        %v1513 = vrot.slane %v1505, %v1512
        %v1515 = vunpack.c.l.s4 1934713408
        %v1516 = vunpack.c.0.s8 %v1515
        %v1517 = vlaneseq
        %v1518 = vshrl.u32 %v1517, 7
        %v1519 = vsub.s32 %v1516, %v1518
        %v1520 = vrot.slane %v1506, %v1519
        %v1521 = vcombine.high %v1497, 0.0
        %v1522 = vcombine.high %v1504, 0.0
        %v1523 = vcombine.high %v1513, 0.0
        %v1524 = vcombine.high %v1520, 0.0
        %v1525 = vcombine.low %v1434, %v1448
        %v1526 = vcombine.high %v1434, %v1448
        %v1528 = vunpack.c.l.s4 1983009808
        %v1529 = vunpack.c.0.s8 %v1528
        %v1530 = vlaneseq
        %v1531 = vshrl.u32 %v1530, 7
        %v1532 = vsub.s32 %v1529, %v1531
        %v1533 = vrot.slane %v1525, %v1532
        %v1535 = vunpack.c.l.s4 1983009808
        %v1536 = vunpack.c.0.s8 %v1535
        %v1537 = vlaneseq
        %v1538 = vshrl.u32 %v1537, 7
        %v1539 = vsub.s32 %v1536, %v1538
        %v1540 = vrot.slane %v1526, %v1539
        %v1541 = vcombine.low %v1442, %v1454
        %v1542 = vcombine.high %v1442, %v1454
        %v1544 = vunpack.c.l.s4 1983009808
        %v1545 = vunpack.c.0.s8 %v1544
        %v1546 = vlaneseq
        %v1547 = vshrl.u32 %v1546, 7
        %v1548 = vsub.s32 %v1545, %v1547
        %v1549 = vrot.slane %v1541, %v1548
        %v1551 = vunpack.c.l.s4 1983009808
        %v1552 = vunpack.c.0.s8 %v1551
        %v1553 = vlaneseq
        %v1554 = vshrl.u32 %v1553, 7
        %v1555 = vsub.s32 %v1552, %v1554
        %v1556 = vrot.slane %v1542, %v1555
        %v1557 = vcombine.low %v1533, %v1549
        %v1558 = vcombine.high %v1533, %v1549
        %v1560 = vunpack.c.l.s4 1934713408
        %v1561 = vunpack.c.0.s8 %v1560
        %v1562 = vlaneseq
        %v1563 = vshrl.u32 %v1562, 7
        %v1564 = vsub.s32 %v1561, %v1563
        %v1565 = vrot.slane %v1557, %v1564
        %v1567 = vunpack.c.l.s4 1934713408
        %v1568 = vunpack.c.0.s8 %v1567
        %v1569 = vlaneseq
        %v1570 = vshrl.u32 %v1569, 7
        %v1571 = vsub.s32 %v1568, %v1570
        %v1572 = vrot.slane %v1558, %v1571
        %v1573 = vcombine.low %v1540, %v1556
        %v1574 = vcombine.high %v1540, %v1556
        %v1576 = vunpack.c.l.s4 1934713408
        %v1577 = vunpack.c.0.s8 %v1576
        %v1578 = vlaneseq
        %v1579 = vshrl.u32 %v1578, 7
        %v1580 = vsub.s32 %v1577, %v1579
        %v1581 = vrot.slane %v1573, %v1580
        %v1583 = vunpack.c.l.s4 1934713408
        %v1584 = vunpack.c.0.s8 %v1583
        %v1585 = vlaneseq
        %v1586 = vshrl.u32 %v1585, 7
        %v1587 = vsub.s32 %v1584, %v1586
        %v1588 = vrot.slane %v1574, %v1587
        %v1589 = vcombine.high %v1565, 0.0
        %v1590 = vcombine.high %v1572, 0.0
        %v1591 = vcombine.high %v1581, 0.0
        %v1592 = vcombine.high %v1588, 0.0
        %v1593 = vcombine.low %v1497, %v1504
        %v1595 = vunpack.c.l.s4 1983009808
        %v1596 = vunpack.c.0.s8 %v1595
        %v1597 = vlaneseq
        %v1598 = vshrl.u32 %v1597, 7
        %v1599 = vsub.s32 %v1596, %v1598
        %v1600 = vrot.slane %v1593, %v1599
        %v1601 = vcombine.low %v1521, %v1522
        %v1603 = vunpack.c.l.s4 1983009808
        %v1604 = vunpack.c.0.s8 %v1603
        %v1605 = vlaneseq
        %v1606 = vshrl.u32 %v1605, 7
        %v1607 = vsub.s32 %v1604, %v1606
        %v1608 = vrot.slane %v1601, %v1607
        %v1609 = vcombine.low %v1513, %v1520
        %v1611 = vunpack.c.l.s4 1983009808
        %v1612 = vunpack.c.0.s8 %v1611
        %v1613 = vlaneseq
        %v1614 = vshrl.u32 %v1613, 7
        %v1615 = vsub.s32 %v1612, %v1614
        %v1616 = vrot.slane %v1609, %v1615
        %v1617 = vcombine.low %v1523, %v1524
        %v1619 = vunpack.c.l.s4 1983009808
        %v1620 = vunpack.c.0.s8 %v1619
        %v1621 = vlaneseq
        %v1622 = vshrl.u32 %v1621, 7
        %v1623 = vsub.s32 %v1620, %v1622
        %v1624 = vrot.slane %v1617, %v1623
        %v1625 = vcombine.low %v1600, %v1608
        %v1626 = vcombine.high %v1600, %v1608
        %v1628 = vunpack.c.l.s4 1934713408
        %v1629 = vunpack.c.0.s8 %v1628
        %v1630 = vlaneseq
        %v1631 = vshrl.u32 %v1630, 7
        %v1632 = vsub.s32 %v1629, %v1631
        %v1633 = vrot.slane %v1625, %v1632
        %v1635 = vunpack.c.l.s4 1934713408
        %v1636 = vunpack.c.0.s8 %v1635
        %v1637 = vlaneseq
        %v1638 = vshrl.u32 %v1637, 7
        %v1639 = vsub.s32 %v1636, %v1638
        %v1640 = vrot.slane %v1626, %v1639
        %v1641 = vcombine.low %v1616, %v1624
        %v1642 = vcombine.high %v1616, %v1624
        %v1644 = vunpack.c.l.s4 1934713408
        %v1645 = vunpack.c.0.s8 %v1644
        %v1646 = vlaneseq
        %v1647 = vshrl.u32 %v1646, 7
        %v1648 = vsub.s32 %v1645, %v1647
        %v1649 = vrot.slane %v1641, %v1648
        %v1651 = vunpack.c.l.s4 1934713408
        %v1652 = vunpack.c.0.s8 %v1651
        %v1653 = vlaneseq
        %v1654 = vshrl.u32 %v1653, 7
        %v1655 = vsub.s32 %v1652, %v1654
        %v1656 = vrot.slane %v1642, %v1655
        %v1657 = vcombine.low %v1633, %v1649
        %v1658 = vcombine.high %v1633, %v1649
        %v1659 = vcombine.low %v1640, %v1656
        %v1660 = vcombine.high %v1640, %v1656
        %v1661 = vcombine.low %v1565, %v1572
        %v1663 = vunpack.c.l.s4 1983009808
        %v1664 = vunpack.c.0.s8 %v1663
        %v1665 = vlaneseq
        %v1666 = vshrl.u32 %v1665, 7
        %v1667 = vsub.s32 %v1664, %v1666
        %v1668 = vrot.slane %v1661, %v1667
        %v1669 = vcombine.low %v1589, %v1590
        %v1671 = vunpack.c.l.s4 1983009808
        %v1672 = vunpack.c.0.s8 %v1671
        %v1673 = vlaneseq
        %v1674 = vshrl.u32 %v1673, 7
        %v1675 = vsub.s32 %v1672, %v1674
        %v1676 = vrot.slane %v1669, %v1675
        %v1677 = vcombine.low %v1581, %v1588
        %v1679 = vunpack.c.l.s4 1983009808
        %v1680 = vunpack.c.0.s8 %v1679
        %v1681 = vlaneseq
        %v1682 = vshrl.u32 %v1681, 7
        %v1683 = vsub.s32 %v1680, %v1682
        %v1684 = vrot.slane %v1677, %v1683
        %v1685 = vcombine.low %v1591, %v1592
        %v1687 = vunpack.c.l.s4 1983009808
        %v1688 = vunpack.c.0.s8 %v1687
        %v1689 = vlaneseq
        %v1690 = vshrl.u32 %v1689, 7
        %v1691 = vsub.s32 %v1688, %v1690
        %v1692 = vrot.slane %v1685, %v1691
        %v1693 = vcombine.low %v1668, %v1676
        %v1694 = vcombine.high %v1668, %v1676
        %v1696 = vunpack.c.l.s4 1934713408
        %v1697 = vunpack.c.0.s8 %v1696
        %v1698 = vlaneseq
        %v1699 = vshrl.u32 %v1698, 7
        %v1700 = vsub.s32 %v1697, %v1699
        %v1701 = vrot.slane %v1693, %v1700
        %v1703 = vunpack.c.l.s4 1934713408
        %v1704 = vunpack.c.0.s8 %v1703
        %v1705 = vlaneseq
        %v1706 = vshrl.u32 %v1705, 7
        %v1707 = vsub.s32 %v1704, %v1706
        %v1708 = vrot.slane %v1694, %v1707
        %v1709 = vcombine.low %v1684, %v1692
        %v1710 = vcombine.high %v1684, %v1692
        %v1712 = vunpack.c.l.s4 1934713408
        %v1713 = vunpack.c.0.s8 %v1712
        %v1714 = vlaneseq
        %v1715 = vshrl.u32 %v1714, 7
        %v1716 = vsub.s32 %v1713, %v1715
        %v1717 = vrot.slane %v1709, %v1716
        %v1719 = vunpack.c.l.s4 1934713408
        %v1720 = vunpack.c.0.s8 %v1719
        %v1721 = vlaneseq
        %v1722 = vshrl.u32 %v1721, 7
        %v1723 = vsub.s32 %v1720, %v1722
        %v1724 = vrot.slane %v1710, %v1723
        %v1725 = vcombine.low %v1701, %v1717
        %v1726 = vcombine.high %v1701, %v1717
        %v1727 = vcombine.low %v1708, %v1724
        %v1728 = vcombine.high %v1708, %v1724
        %v1729 = vpack.c.bf16 %v1725, %v1657
        %v1730 = vpack.c.bf16 %v1726, %v1658
        %v1731 = vpack.c.bf16 %v1727, %v1659
        %v1732 = vpack.c.bf16 %v1728, %v1660
        %s1733 = smul.addr %s505, 4
        %s1734 = scalar_lea.vmem [#allocation2], %s1733
        %v1735 = vld [vmem:[%s1734] sm:$0xf]
        %v1736 = vld [vmem:[%s1734 + $0x4] sm:$0xf]
        %v1737 = vld [vmem:[%s1734 + $0x8] sm:$0xf]
        %v1738 = vld [vmem:[%s1734 + $0xc] sm:$0xf]
        %v1739 = vld [vmem:[%s444] sm:$0xf]
        %v1740 = vld [vmem:[%s444 + $0x4] sm:$0xf]
        %v1741 = vunpack.c.l.bf16 %v1739
        %v1742 = vunpack.c.l.bf16 %v1740
        %vm1743 = vcmask 64512
        %v1745 = vsel %vm1743, %v1729, 0
        %vm1747 = vcmask 1043456
        %v1749 = vsel %vm1747, %v1735, 0
        %1751 = vmatprep.subr.bf16.mxu0 0
        %1752 = vmatpush1.bf16.msra.mxu0 0
        %1753 = vmatprep.subr.bf16.mxu0 0
        %1754 = vmatpush1.bf16.msra.mxu0 0
        %1755 = vmatprep.subr.bf16.mxu0 0
        %1756 = vmatpush1.bf16.msra.mxu0 0
        %1757 = vmatprep.subr.bf16.mxu0 0
        %1758 = vmatpush1.bf16.msra.mxu0 0
        %1759 = vmatprep.subr.bf16.mxu0 0
        %1760 = vmatpush1.bf16.msra.mxu0 0
        %1761 = vmatprep.subr.bf16.mxu0 0
        %1762 = vmatpush1.bf16.msra.mxu0 0
        %1763 = vmatprep.subr.bf16.mxu0 0
        %1764 = vmatpush1.bf16.msra.mxu0 0
        %1765 = vmatprep.subr.bf16.mxu0 0
        %1766 = vmatpush1.bf16.msra.mxu0 %v1749
        %1767 = vmatprep.subr.bf16.mxu0 0
        %1768 = vmatpush2.bf16.msra.mxu0 0
        %1769 = vmatprep.subr.bf16.mxu0 0
        %1770 = vmatpush2.bf16.msra.mxu0 0
        %1771 = vmatprep.subr.bf16.mxu0 0
        %1772 = vmatpush2.bf16.msra.mxu0 0
        %1773 = vmatprep.subr.bf16.mxu0 0
        %1774 = vmatpush2.bf16.msra.mxu0 0
        %1775 = vmatprep.subr.bf16.mxu0 0
        %1776 = vmatpush2.bf16.msra.mxu0 0
        %1777 = vmatprep.subr.bf16.mxu0 0
        %1778 = vmatpush2.bf16.msra.mxu0 0
        %1779 = vmatprep.subr.bf16.mxu0 0
        %1780 = vmatpush2.bf16.msra.mxu0 0
        %1781 = vmatprep.subr.bf16.mxu0 0
        %1782 = vmatpush2.bf16.msra.mxu0 0
        %1783 = vmatprep.mubr.bf16.mxu0 0
        %1784 = vmatmul.mubr.bf16.gmra.mxu0 %v1745
        %v1785 = vpop.f32.mrf.mxu0
        %v1786 = vadd.f32 %v1741, %v1785
        %v1787 = vpop.f32.mrf.mxu0
        %v1788 = vpop.f32.mrf.mxu0
        %v1789 = vadd.f32 %v1742, %v1788
        %v1790 = vpop.f32.mrf.mxu0
        %1791 = vdwg.mxu0
        %v1793 = vsel %vm1743, %v1730, 0
        %v1796 = vsel %vm1747, %v1736, 0
        %1798 = vmatprep.subr.bf16.mxu0 0
        %1799 = vmatpush1.bf16.msra.mxu0 0
        %1800 = vmatprep.subr.bf16.mxu0 0
        %1801 = vmatpush1.bf16.msra.mxu0 0
        %1802 = vmatprep.subr.bf16.mxu0 0
        %1803 = vmatpush1.bf16.msra.mxu0 0
        %1804 = vmatprep.subr.bf16.mxu0 0
        %1805 = vmatpush1.bf16.msra.mxu0 0
        %1806 = vmatprep.subr.bf16.mxu0 0
        %1807 = vmatpush1.bf16.msra.mxu0 0
        %1808 = vmatprep.subr.bf16.mxu0 0
        %1809 = vmatpush1.bf16.msra.mxu0 0
        %1810 = vmatprep.subr.bf16.mxu0 0
        %1811 = vmatpush1.bf16.msra.mxu0 0
        %1812 = vmatprep.subr.bf16.mxu0 0
        %1813 = vmatpush1.bf16.msra.mxu0 %v1796
        %1814 = vmatprep.subr.bf16.mxu0 0
        %1815 = vmatpush2.bf16.msra.mxu0 0
        %1816 = vmatprep.subr.bf16.mxu0 0
        %1817 = vmatpush2.bf16.msra.mxu0 0
        %1818 = vmatprep.subr.bf16.mxu0 0
        %1819 = vmatpush2.bf16.msra.mxu0 0
        %1820 = vmatprep.subr.bf16.mxu0 0
        %1821 = vmatpush2.bf16.msra.mxu0 0
        %1822 = vmatprep.subr.bf16.mxu0 0
        %1823 = vmatpush2.bf16.msra.mxu0 0
        %1824 = vmatprep.subr.bf16.mxu0 0
        %1825 = vmatpush2.bf16.msra.mxu0 0
        %1826 = vmatprep.subr.bf16.mxu0 0
        %1827 = vmatpush2.bf16.msra.mxu0 0
        %1828 = vmatprep.subr.bf16.mxu0 0
        %1829 = vmatpush2.bf16.msra.mxu0 0
        %1830 = vmatprep.mubr.bf16.mxu0 0
        %1831 = vmatmul.mubr.bf16.gmra.mxu0 %v1793
        %v1832 = vpop.f32.mrf.mxu0
        %v1833 = vadd.f32 %v1741, %v1832
        %v1834 = vpop.f32.mrf.mxu0
        %v1835 = vpop.f32.mrf.mxu0
        %v1836 = vadd.f32 %v1742, %v1835
        %v1837 = vpop.f32.mrf.mxu0
        %1838 = vdwg.mxu0
        %v1840 = vsel %vm1743, %v1731, 0
        %v1843 = vsel %vm1747, %v1737, 0
        %1845 = vmatprep.subr.bf16.mxu0 0
        %1846 = vmatpush1.bf16.msra.mxu0 0
        %1847 = vmatprep.subr.bf16.mxu0 0
        %1848 = vmatpush1.bf16.msra.mxu0 0
        %1849 = vmatprep.subr.bf16.mxu0 0
        %1850 = vmatpush1.bf16.msra.mxu0 0
        %1851 = vmatprep.subr.bf16.mxu0 0
        %1852 = vmatpush1.bf16.msra.mxu0 0
        %1853 = vmatprep.subr.bf16.mxu0 0
        %1854 = vmatpush1.bf16.msra.mxu0 0
        %1855 = vmatprep.subr.bf16.mxu0 0
        %1856 = vmatpush1.bf16.msra.mxu0 0
        %1857 = vmatprep.subr.bf16.mxu0 0
        %1858 = vmatpush1.bf16.msra.mxu0 0
        %1859 = vmatprep.subr.bf16.mxu0 0
        %1860 = vmatpush1.bf16.msra.mxu0 %v1843
        %1861 = vmatprep.subr.bf16.mxu0 0
        %1862 = vmatpush2.bf16.msra.mxu0 0
        %1863 = vmatprep.subr.bf16.mxu0 0
        %1864 = vmatpush2.bf16.msra.mxu0 0
        %1865 = vmatprep.subr.bf16.mxu0 0
        %1866 = vmatpush2.bf16.msra.mxu0 0
        %1867 = vmatprep.subr.bf16.mxu0 0
        %1868 = vmatpush2.bf16.msra.mxu0 0
        %1869 = vmatprep.subr.bf16.mxu0 0
        %1870 = vmatpush2.bf16.msra.mxu0 0
        %1871 = vmatprep.subr.bf16.mxu0 0
        %1872 = vmatpush2.bf16.msra.mxu0 0
        %1873 = vmatprep.subr.bf16.mxu0 0
        %1874 = vmatpush2.bf16.msra.mxu0 0
        %1875 = vmatprep.subr.bf16.mxu0 0
        %1876 = vmatpush2.bf16.msra.mxu0 0
        %1877 = vmatprep.mubr.bf16.mxu0 0
        %1878 = vmatmul.mubr.bf16.gmra.mxu0 %v1840
        %v1879 = vpop.f32.mrf.mxu0
        %v1880 = vadd.f32 %v1741, %v1879
        %v1881 = vpop.f32.mrf.mxu0
        %v1882 = vpop.f32.mrf.mxu0
        %v1883 = vadd.f32 %v1742, %v1882
        %v1884 = vpop.f32.mrf.mxu0
        %1885 = vdwg.mxu0
        %v1887 = vsel %vm1743, %v1732, 0
        %v1890 = vsel %vm1747, %v1738, 0
        %1892 = vmatprep.subr.bf16.mxu0 0
        %1893 = vmatpush1.bf16.msra.mxu0 0
        %1894 = vmatprep.subr.bf16.mxu0 0
        %1895 = vmatpush1.bf16.msra.mxu0 0
        %1896 = vmatprep.subr.bf16.mxu0 0
        %1897 = vmatpush1.bf16.msra.mxu0 0
        %1898 = vmatprep.subr.bf16.mxu0 0
        %1899 = vmatpush1.bf16.msra.mxu0 0
        %1900 = vmatprep.subr.bf16.mxu0 0
        %1901 = vmatpush1.bf16.msra.mxu0 0
        %1902 = vmatprep.subr.bf16.mxu0 0
        %1903 = vmatpush1.bf16.msra.mxu0 0
        %1904 = vmatprep.subr.bf16.mxu0 0
        %1905 = vmatpush1.bf16.msra.mxu0 0
        %1906 = vmatprep.subr.bf16.mxu0 0
        %1907 = vmatpush1.bf16.msra.mxu0 %v1890
        %1908 = vmatprep.subr.bf16.mxu0 0
        %1909 = vmatpush2.bf16.msra.mxu0 0
        %1910 = vmatprep.subr.bf16.mxu0 0
        %1911 = vmatpush2.bf16.msra.mxu0 0
        %1912 = vmatprep.subr.bf16.mxu0 0
        %1913 = vmatpush2.bf16.msra.mxu0 0
        %1914 = vmatprep.subr.bf16.mxu0 0
        %1915 = vmatpush2.bf16.msra.mxu0 0
        %1916 = vmatprep.subr.bf16.mxu0 0
        %1917 = vmatpush2.bf16.msra.mxu0 0
        %1918 = vmatprep.subr.bf16.mxu0 0
        %1919 = vmatpush2.bf16.msra.mxu0 0
        %1920 = vmatprep.subr.bf16.mxu0 0
        %1921 = vmatpush2.bf16.msra.mxu0 0
        %1922 = vmatprep.subr.bf16.mxu0 0
        %1923 = vmatpush2.bf16.msra.mxu0 0
        %1924 = vmatprep.mubr.bf16.mxu0 0
        %1925 = vmatmul.mubr.bf16.gmra.mxu0 %v1887
        %v1926 = vpop.f32.mrf.mxu0
        %v1927 = vadd.f32 %v1741, %v1926
        %v1928 = vpop.f32.mrf.mxu0
        %v1929 = vpop.f32.mrf.mxu0
        %v1930 = vadd.f32 %v1742, %v1929
        %v1931 = vpop.f32.mrf.mxu0
        %1932 = vdwg.mxu0
        %vm1933 = vcmask 130048
        %v1934 = vsel %vm1933, %v1786, -inf
        %1935 = vmax.xlane.f32.xlu0 %v1934
        %v1936 = vpop.xlane.xlu0 %1935
        %v1937 = vsel %vm1933, %v1789, -inf
        %1938 = vmax.xlane.f32.xlu0 %v1937
        %v1939 = vpop.xlane.xlu0 %1938
        %v1940 = vsel %vm1933, %v1833, -inf
        %1941 = vmax.xlane.f32.xlu0 %v1940
        %v1942 = vpop.xlane.xlu0 %1941
        %v1943 = vsel %vm1933, %v1836, -inf
        %1944 = vmax.xlane.f32.xlu0 %v1943
        %v1945 = vpop.xlane.xlu0 %1944
        %v1946 = vsel %vm1933, %v1880, -inf
        %1947 = vmax.xlane.f32.xlu0 %v1946
        %v1948 = vpop.xlane.xlu0 %1947
        %v1949 = vsel %vm1933, %v1883, -inf
        %1950 = vmax.xlane.f32.xlu0 %v1949
        %v1951 = vpop.xlane.xlu0 %1950
        %v1952 = vsel %vm1933, %v1927, -inf
        %1953 = vmax.xlane.f32.xlu0 %v1952
        %v1954 = vpop.xlane.xlu0 %1953
        %v1955 = vsel %vm1933, %v1930, -inf
        %1956 = vmax.xlane.f32.xlu0 %v1955
        %v1957 = vpop.xlane.xlu0 %1956
        %v1958 = vsub.f32 %v1786, %v1936
        %v1959 = vsub.f32 %v1789, %v1939
        %v1960 = vsub.f32 %v1833, %v1942
        %v1961 = vsub.f32 %v1836, %v1945
        %v1962 = vsub.f32 %v1880, %v1948
        %v1963 = vsub.f32 %v1883, %v1951
        %v1964 = vsub.f32 %v1927, %v1954
        %v1965 = vsub.f32 %v1930, %v1957
        %v1966 = vmul.f32 %v1958, 1.442695
        %v1967 = vpow.pop %v1966
        %v1968 = vmul.f32 %v1959, 1.442695
        %v1969 = vpow.pop %v1968
        %v1970 = vmul.f32 %v1960, 1.442695
        %v1971 = vpow.pop %v1970
        %v1972 = vmul.f32 %v1961, 1.442695
        %v1973 = vpow.pop %v1972
        %v1974 = vmul.f32 %v1962, 1.442695
        %v1975 = vpow.pop %v1974
        %v1976 = vmul.f32 %v1963, 1.442695
        %v1977 = vpow.pop %v1976
        %v1978 = vmul.f32 %v1964, 1.442695
        %v1979 = vpow.pop %v1978
        %v1980 = vmul.f32 %v1965, 1.442695
        %v1981 = vpow.pop %v1980
        %v1982 = vsel %vm1933, %v1967, 0.0
        %1983 = vadd.xlane.f32.xlu0 %v1982
        %v1984 = vpop.xlane.xlu0 %1983
        %v1985 = vsel %vm1933, %v1969, 0.0
        %1986 = vadd.xlane.f32.xlu0 %v1985
        %v1987 = vpop.xlane.xlu0 %1986
        %v1988 = vsel %vm1933, %v1971, 0.0
        %1989 = vadd.xlane.f32.xlu0 %v1988
        %v1990 = vpop.xlane.xlu0 %1989
        %v1991 = vsel %vm1933, %v1973, 0.0
        %1992 = vadd.xlane.f32.xlu0 %v1991
        %v1993 = vpop.xlane.xlu0 %1992
        %v1994 = vsel %vm1933, %v1975, 0.0
        %1995 = vadd.xlane.f32.xlu0 %v1994
        %v1996 = vpop.xlane.xlu0 %1995
        %v1997 = vsel %vm1933, %v1977, 0.0
        %1998 = vadd.xlane.f32.xlu0 %v1997
        %v1999 = vpop.xlane.xlu0 %1998
        %v2000 = vsel %vm1933, %v1979, 0.0
        %2001 = vadd.xlane.f32.xlu0 %v2000
        %v2002 = vpop.xlane.xlu0 %2001
        %v2003 = vsel %vm1933, %v1981, 0.0
        %2004 = vadd.xlane.f32.xlu0 %v2003
        %v2005 = vpop.xlane.xlu0 %2004
        %v2006 = vrcp.pop %v1984
        %v2007 = vrcp.pop %v1987
        %v2008 = vrcp.pop %v1990
        %v2009 = vrcp.pop %v1993
        %v2010 = vrcp.pop %v1996
        %v2011 = vrcp.pop %v1999
        %v2012 = vrcp.pop %v2002
        %v2013 = vrcp.pop %v2005
        %s2014 = smul.u32 %s505, 2
        %s2015 = smul.addr %s2014, 4
        %s2016 = scalar_lea.vmem [#allocation3], %s2015
        %v2017 = vld [vmem:[%s2016] sm:$0xf]
        %v2018 = vld [vmem:[%s2016 + $0x4] sm:$0xf]
        %v2019 = vld [vmem:[%s2016 + $0x8] sm:$0xf]
        %v2020 = vld [vmem:[%s2016 + $0xc] sm:$0xf]
        %v2021 = vld [vmem:[%s2016 + $0x10] sm:$0xf]
        %v2022 = vld [vmem:[%s2016 + $0x14] sm:$0xf]
        %v2023 = vld [vmem:[%s2016 + $0x18] sm:$0xf]
        %v2024 = vld [vmem:[%s2016 + $0x1c] sm:$0xf]
        %v2025 = vpack.c.bf16 %v1969, %v1967
        %v2026 = vpack.c.bf16 %v1973, %v1971
        %v2027 = vpack.c.bf16 %v1977, %v1975
        %v2028 = vpack.c.bf16 %v1981, %v1979
        %v2031 = vunpack.c.l.b16 %v2017
        %v2032 = vunpack.c.l.b16 %v2018
        %v2033 = vpack.c.b16 %v2032, %v2031
        %v2036 = vsel %vm1933, %v2025, 0
        %2038 = vmatprep.subr.bf16.mxu0 0
        %2039 = vmatpush1.bf16.msra.mxu0 0
        %2040 = vmatprep.subr.bf16.mxu0 0
        %2041 = vmatpush1.bf16.msra.mxu0 0
        %2042 = vmatprep.subr.bf16.mxu0 0
        %2043 = vmatpush1.bf16.msra.mxu0 0
        %2044 = vmatprep.subr.bf16.mxu0 0
        %2045 = vmatpush1.bf16.msra.mxu0 0
        %2046 = vmatprep.subr.bf16.mxu0 0
        %2047 = vmatpush1.bf16.msra.mxu0 0
        %2048 = vmatprep.subr.bf16.mxu0 0
        %2049 = vmatpush1.bf16.msra.mxu0 0
        %2050 = vmatprep.subr.bf16.mxu0 0
        %2051 = vmatpush1.bf16.msra.mxu0 0
        %2052 = vmatprep.subr.bf16.mxu0 0
        %2053 = vmatpush1.bf16.msra.mxu0 %v2033
        %2054 = vmatprep.subr.bf16.mxu0 0
        %2055 = vmatpush2.bf16.msra.mxu0 0
        %2056 = vmatprep.subr.bf16.mxu0 0
        %2057 = vmatpush2.bf16.msra.mxu0 0
        %2058 = vmatprep.subr.bf16.mxu0 0
        %2059 = vmatpush2.bf16.msra.mxu0 0
        %2060 = vmatprep.subr.bf16.mxu0 0
        %2061 = vmatpush2.bf16.msra.mxu0 0
        %2062 = vmatprep.subr.bf16.mxu0 0
        %2063 = vmatpush2.bf16.msra.mxu0 0
        %2064 = vmatprep.subr.bf16.mxu0 0
        %2065 = vmatpush2.bf16.msra.mxu0 0
        %2066 = vmatprep.subr.bf16.mxu0 0
        %2067 = vmatpush2.bf16.msra.mxu0 0
        %2068 = vmatprep.subr.bf16.mxu0 0
        %2069 = vmatpush2.bf16.msra.mxu0 0
        %2070 = vmatprep.mubr.bf16.mxu0 0
        %2071 = vmatmul.mubr.bf16.gmra.mxu0 %v2036
        %v2072 = vpop.f32.mrf.mxu0
        %v2073 = vadd.f32 0.0, %v2072
        %v2074 = vpop.f32.mrf.mxu0
        %v2075 = vpop.f32.mrf.mxu0
        %v2076 = vadd.f32 0.0, %v2075
        %v2077 = vpop.f32.mrf.mxu0
        %2078 = vdwg.mxu0
        %v2081 = vunpack.c.l.b16 %v2019
        %v2082 = vunpack.c.l.b16 %v2020
        %v2083 = vpack.c.b16 %v2082, %v2081
        %v2086 = vsel %vm1933, %v2026, 0
        %2088 = vmatprep.subr.bf16.mxu0 0
        %2089 = vmatpush1.bf16.msra.mxu0 0
        %2090 = vmatprep.subr.bf16.mxu0 0
        %2091 = vmatpush1.bf16.msra.mxu0 0
        %2092 = vmatprep.subr.bf16.mxu0 0
        %2093 = vmatpush1.bf16.msra.mxu0 0
        %2094 = vmatprep.subr.bf16.mxu0 0
        %2095 = vmatpush1.bf16.msra.mxu0 0
        %2096 = vmatprep.subr.bf16.mxu0 0
        %2097 = vmatpush1.bf16.msra.mxu0 0
        %2098 = vmatprep.subr.bf16.mxu0 0
        %2099 = vmatpush1.bf16.msra.mxu0 0
        %2100 = vmatprep.subr.bf16.mxu0 0
        %2101 = vmatpush1.bf16.msra.mxu0 0
        %2102 = vmatprep.subr.bf16.mxu0 0
        %2103 = vmatpush1.bf16.msra.mxu0 %v2083
        %2104 = vmatprep.subr.bf16.mxu0 0
        %2105 = vmatpush2.bf16.msra.mxu0 0
        %2106 = vmatprep.subr.bf16.mxu0 0
        %2107 = vmatpush2.bf16.msra.mxu0 0
        %2108 = vmatprep.subr.bf16.mxu0 0
        %2109 = vmatpush2.bf16.msra.mxu0 0
        %2110 = vmatprep.subr.bf16.mxu0 0
        %2111 = vmatpush2.bf16.msra.mxu0 0
        %2112 = vmatprep.subr.bf16.mxu0 0
        %2113 = vmatpush2.bf16.msra.mxu0 0
        %2114 = vmatprep.subr.bf16.mxu0 0
        %2115 = vmatpush2.bf16.msra.mxu0 0
        %2116 = vmatprep.subr.bf16.mxu0 0
        %2117 = vmatpush2.bf16.msra.mxu0 0
        %2118 = vmatprep.subr.bf16.mxu0 0
        %2119 = vmatpush2.bf16.msra.mxu0 0
        %2120 = vmatprep.mubr.bf16.mxu0 0
        %2121 = vmatmul.mubr.bf16.gmra.mxu0 %v2086
        %v2122 = vpop.f32.mrf.mxu0
        %v2123 = vadd.f32 0.0, %v2122
        %v2124 = vpop.f32.mrf.mxu0
        %v2125 = vpop.f32.mrf.mxu0
        %v2126 = vadd.f32 0.0, %v2125
        %v2127 = vpop.f32.mrf.mxu0
        %2128 = vdwg.mxu0
        %v2131 = vunpack.c.l.b16 %v2021
        %v2132 = vunpack.c.l.b16 %v2022
        %v2133 = vpack.c.b16 %v2132, %v2131
        %v2136 = vsel %vm1933, %v2027, 0
        %2138 = vmatprep.subr.bf16.mxu0 0
        %2139 = vmatpush1.bf16.msra.mxu0 0
        %2140 = vmatprep.subr.bf16.mxu0 0
        %2141 = vmatpush1.bf16.msra.mxu0 0
        %2142 = vmatprep.subr.bf16.mxu0 0
        %2143 = vmatpush1.bf16.msra.mxu0 0
        %2144 = vmatprep.subr.bf16.mxu0 0
        %2145 = vmatpush1.bf16.msra.mxu0 0
        %2146 = vmatprep.subr.bf16.mxu0 0
        %2147 = vmatpush1.bf16.msra.mxu0 0
        %2148 = vmatprep.subr.bf16.mxu0 0
        %2149 = vmatpush1.bf16.msra.mxu0 0
        %2150 = vmatprep.subr.bf16.mxu0 0
        %2151 = vmatpush1.bf16.msra.mxu0 0
        %2152 = vmatprep.subr.bf16.mxu0 0
        %2153 = vmatpush1.bf16.msra.mxu0 %v2133
        %2154 = vmatprep.subr.bf16.mxu0 0
        %2155 = vmatpush2.bf16.msra.mxu0 0
        %2156 = vmatprep.subr.bf16.mxu0 0
        %2157 = vmatpush2.bf16.msra.mxu0 0
        %2158 = vmatprep.subr.bf16.mxu0 0
        %2159 = vmatpush2.bf16.msra.mxu0 0
        %2160 = vmatprep.subr.bf16.mxu0 0
        %2161 = vmatpush2.bf16.msra.mxu0 0
        %2162 = vmatprep.subr.bf16.mxu0 0
        %2163 = vmatpush2.bf16.msra.mxu0 0
        %2164 = vmatprep.subr.bf16.mxu0 0
        %2165 = vmatpush2.bf16.msra.mxu0 0
        %2166 = vmatprep.subr.bf16.mxu0 0
        %2167 = vmatpush2.bf16.msra.mxu0 0
        %2168 = vmatprep.subr.bf16.mxu0 0
        %2169 = vmatpush2.bf16.msra.mxu0 0
        %2170 = vmatprep.mubr.bf16.mxu0 0
        %2171 = vmatmul.mubr.bf16.gmra.mxu0 %v2136
        %v2172 = vpop.f32.mrf.mxu0
        %v2173 = vadd.f32 0.0, %v2172
        %v2174 = vpop.f32.mrf.mxu0
        %v2175 = vpop.f32.mrf.mxu0
        %v2176 = vadd.f32 0.0, %v2175
        %v2177 = vpop.f32.mrf.mxu0
        %2178 = vdwg.mxu0
        %v2181 = vunpack.c.l.b16 %v2023
        %v2182 = vunpack.c.l.b16 %v2024
        %v2183 = vpack.c.b16 %v2182, %v2181
        %v2186 = vsel %vm1933, %v2028, 0
        %2188 = vmatprep.subr.bf16.mxu0 0
        %2189 = vmatpush1.bf16.msra.mxu0 0
        %2190 = vmatprep.subr.bf16.mxu0 0
        %2191 = vmatpush1.bf16.msra.mxu0 0
        %2192 = vmatprep.subr.bf16.mxu0 0
        %2193 = vmatpush1.bf16.msra.mxu0 0
        %2194 = vmatprep.subr.bf16.mxu0 0
        %2195 = vmatpush1.bf16.msra.mxu0 0
        %2196 = vmatprep.subr.bf16.mxu0 0
        %2197 = vmatpush1.bf16.msra.mxu0 0
        %2198 = vmatprep.subr.bf16.mxu0 0
        %2199 = vmatpush1.bf16.msra.mxu0 0
        %2200 = vmatprep.subr.bf16.mxu0 0
        %2201 = vmatpush1.bf16.msra.mxu0 0
        %2202 = vmatprep.subr.bf16.mxu0 0
        %2203 = vmatpush1.bf16.msra.mxu0 %v2183
        %2204 = vmatprep.subr.bf16.mxu0 0
        %2205 = vmatpush2.bf16.msra.mxu0 0
        %2206 = vmatprep.subr.bf16.mxu0 0
        %2207 = vmatpush2.bf16.msra.mxu0 0
        %2208 = vmatprep.subr.bf16.mxu0 0
        %2209 = vmatpush2.bf16.msra.mxu0 0
        %2210 = vmatprep.subr.bf16.mxu0 0
        %2211 = vmatpush2.bf16.msra.mxu0 0
        %2212 = vmatprep.subr.bf16.mxu0 0
        %2213 = vmatpush2.bf16.msra.mxu0 0
        %2214 = vmatprep.subr.bf16.mxu0 0
        %2215 = vmatpush2.bf16.msra.mxu0 0
        %2216 = vmatprep.subr.bf16.mxu0 0
        %2217 = vmatpush2.bf16.msra.mxu0 0
        %2218 = vmatprep.subr.bf16.mxu0 0
        %2219 = vmatpush2.bf16.msra.mxu0 0
        %2220 = vmatprep.mubr.bf16.mxu0 0
        %2221 = vmatmul.mubr.bf16.gmra.mxu0 %v2186
        %v2222 = vpop.f32.mrf.mxu0
        %v2223 = vadd.f32 0.0, %v2222
        %v2224 = vpop.f32.mrf.mxu0
        %v2225 = vpop.f32.mrf.mxu0
        %v2226 = vadd.f32 0.0, %v2225
        %v2227 = vpop.f32.mrf.mxu0
        %2228 = vdwg.mxu0
        %v2229 = vmul.f32 %v2073, %v2006
        %v2230 = vmul.f32 %v2076, %v2007
        %v2231 = vmul.f32 %v2123, %v2008
        %v2232 = vmul.f32 %v2126, %v2009
        %v2233 = vmul.f32 %v2173, %v2010
        %v2234 = vmul.f32 %v2176, %v2011
        %v2235 = vmul.f32 %v2223, %v2012
        %v2236 = vmul.f32 %v2226, %v2013
        %v2237 = vpack.c.bf16 %v2230, %v2229
        %v2238 = vpack.c.bf16 %v2232, %v2231
        %v2239 = vpack.c.bf16 %v2234, %v2233
        %v2240 = vpack.c.bf16 %v2236, %v2235
        %s2241 = smul.addr %s505, 4
        %s2242 = scalar_lea.vmem [#allocation14], %s2241
        %v2243 = vld [vmem:[%s2242] sm:$0xf]
        %v2244 = vld [vmem:[%s2242 + $0x4] sm:$0xf]
        %v2245 = vld [vmem:[%s2242 + $0x8] sm:$0xf]
        %v2246 = vld [vmem:[%s2242 + $0xc] sm:$0xf]
        %v2248 = vsel %vm1743, %v2237, 0
        %v2251 = vsel %vm1747, %v2243, 0
        %2253 = vmatprep.subr.bf16.mxu0 0
        %2254 = vmatpush1.bf16.msra.mxu0 0
        %2255 = vmatprep.subr.bf16.mxu0 0
        %2256 = vmatpush1.bf16.msra.mxu0 0
        %2257 = vmatprep.subr.bf16.mxu0 0
        %2258 = vmatpush1.bf16.msra.mxu0 0
        %2259 = vmatprep.subr.bf16.mxu0 0
        %2260 = vmatpush1.bf16.msra.mxu0 0
        %2261 = vmatprep.subr.bf16.mxu0 0
        %2262 = vmatpush1.bf16.msra.mxu0 0
        %2263 = vmatprep.subr.bf16.mxu0 0
        %2264 = vmatpush1.bf16.msra.mxu0 0
        %2265 = vmatprep.subr.bf16.mxu0 0
        %2266 = vmatpush1.bf16.msra.mxu0 0
        %2267 = vmatprep.subr.bf16.mxu0 0
        %2268 = vmatpush1.bf16.msra.mxu0 %v2251
        %2269 = vmatprep.subr.bf16.mxu0 0
        %2270 = vmatpush2.bf16.msra.mxu0 0
        %2271 = vmatprep.subr.bf16.mxu0 0
        %2272 = vmatpush2.bf16.msra.mxu0 0
        %2273 = vmatprep.subr.bf16.mxu0 0
        %2274 = vmatpush2.bf16.msra.mxu0 0
        %2275 = vmatprep.subr.bf16.mxu0 0
        %2276 = vmatpush2.bf16.msra.mxu0 0
        %2277 = vmatprep.subr.bf16.mxu0 0
        %2278 = vmatpush2.bf16.msra.mxu0 0
        %2279 = vmatprep.subr.bf16.mxu0 0
        %2280 = vmatpush2.bf16.msra.mxu0 0
        %2281 = vmatprep.subr.bf16.mxu0 0
        %2282 = vmatpush2.bf16.msra.mxu0 0
        %2283 = vmatprep.subr.bf16.mxu0 0
        %2284 = vmatpush2.bf16.msra.mxu0 0
        %2285 = vmatprep.mubr.bf16.mxu0 0
        %2286 = vmatmul.mubr.bf16.gmra.mxu0 %v2248
        %v2287 = vpop.f32.mrf.mxu0
        %v2288 = vadd.f32 0.0, %v2287
        %v2289 = vpop.f32.mrf.mxu0
        %v2290 = vpop.f32.mrf.mxu0
        %v2291 = vadd.f32 0.0, %v2290
        %v2292 = vpop.f32.mrf.mxu0
        %2293 = vdwg.mxu0
        %v2295 = vsel %vm1743, %v2238, 0
        %v2298 = vsel %vm1747, %v2244, 0
        %2300 = vmatprep.subr.bf16.mxu0 0
        %2301 = vmatpush1.bf16.msra.mxu0 0
        %2302 = vmatprep.subr.bf16.mxu0 0
        %2303 = vmatpush1.bf16.msra.mxu0 0
        %2304 = vmatprep.subr.bf16.mxu0 0
        %2305 = vmatpush1.bf16.msra.mxu0 0
        %2306 = vmatprep.subr.bf16.mxu0 0
        %2307 = vmatpush1.bf16.msra.mxu0 0
        %2308 = vmatprep.subr.bf16.mxu0 0
        %2309 = vmatpush1.bf16.msra.mxu0 0
        %2310 = vmatprep.subr.bf16.mxu0 0
        %2311 = vmatpush1.bf16.msra.mxu0 0
        %2312 = vmatprep.subr.bf16.mxu0 0
        %2313 = vmatpush1.bf16.msra.mxu0 0
        %2314 = vmatprep.subr.bf16.mxu0 0
        %2315 = vmatpush1.bf16.msra.mxu0 %v2298
        %2316 = vmatprep.subr.bf16.mxu0 0
        %2317 = vmatpush2.bf16.msra.mxu0 0
        %2318 = vmatprep.subr.bf16.mxu0 0
        %2319 = vmatpush2.bf16.msra.mxu0 0
        %2320 = vmatprep.subr.bf16.mxu0 0
        %2321 = vmatpush2.bf16.msra.mxu0 0
        %2322 = vmatprep.subr.bf16.mxu0 0
        %2323 = vmatpush2.bf16.msra.mxu0 0
        %2324 = vmatprep.subr.bf16.mxu0 0
        %2325 = vmatpush2.bf16.msra.mxu0 0
        %2326 = vmatprep.subr.bf16.mxu0 0
        %2327 = vmatpush2.bf16.msra.mxu0 0
        %2328 = vmatprep.subr.bf16.mxu0 0
        %2329 = vmatpush2.bf16.msra.mxu0 0
        %2330 = vmatprep.subr.bf16.mxu0 0
        %2331 = vmatpush2.bf16.msra.mxu0 0
        %2332 = vmatprep.mubr.bf16.mxu0 0
        %2333 = vmatmul.mubr.bf16.gmra.mxu0 %v2295
        %v2334 = vpop.f32.mrf.mxu0
        %v2335 = vadd.f32 0.0, %v2334
        %v2336 = vpop.f32.mrf.mxu0
        %v2337 = vpop.f32.mrf.mxu0
        %v2338 = vadd.f32 0.0, %v2337
        %v2339 = vpop.f32.mrf.mxu0
        %2340 = vdwg.mxu0
        %v2342 = vsel %vm1743, %v2239, 0
        %v2345 = vsel %vm1747, %v2245, 0
        %2347 = vmatprep.subr.bf16.mxu0 0
        %2348 = vmatpush1.bf16.msra.mxu0 0
        %2349 = vmatprep.subr.bf16.mxu0 0
        %2350 = vmatpush1.bf16.msra.mxu0 0
        %2351 = vmatprep.subr.bf16.mxu0 0
        %2352 = vmatpush1.bf16.msra.mxu0 0
        %2353 = vmatprep.subr.bf16.mxu0 0
        %2354 = vmatpush1.bf16.msra.mxu0 0
        %2355 = vmatprep.subr.bf16.mxu0 0
        %2356 = vmatpush1.bf16.msra.mxu0 0
        %2357 = vmatprep.subr.bf16.mxu0 0
        %2358 = vmatpush1.bf16.msra.mxu0 0
        %2359 = vmatprep.subr.bf16.mxu0 0
        %2360 = vmatpush1.bf16.msra.mxu0 0
        %2361 = vmatprep.subr.bf16.mxu0 0
        %2362 = vmatpush1.bf16.msra.mxu0 %v2345
        %2363 = vmatprep.subr.bf16.mxu0 0
        %2364 = vmatpush2.bf16.msra.mxu0 0
        %2365 = vmatprep.subr.bf16.mxu0 0
        %2366 = vmatpush2.bf16.msra.mxu0 0
        %2367 = vmatprep.subr.bf16.mxu0 0
        %2368 = vmatpush2.bf16.msra.mxu0 0
        %2369 = vmatprep.subr.bf16.mxu0 0
        %2370 = vmatpush2.bf16.msra.mxu0 0
        %2371 = vmatprep.subr.bf16.mxu0 0
        %2372 = vmatpush2.bf16.msra.mxu0 0
        %2373 = vmatprep.subr.bf16.mxu0 0
        %2374 = vmatpush2.bf16.msra.mxu0 0
        %2375 = vmatprep.subr.bf16.mxu0 0
        %2376 = vmatpush2.bf16.msra.mxu0 0
        %2377 = vmatprep.subr.bf16.mxu0 0
        %2378 = vmatpush2.bf16.msra.mxu0 0
        %2379 = vmatprep.mubr.bf16.mxu0 0
        %2380 = vmatmul.mubr.bf16.gmra.mxu0 %v2342
        %v2381 = vpop.f32.mrf.mxu0
        %v2382 = vadd.f32 0.0, %v2381
        %v2383 = vpop.f32.mrf.mxu0
        %v2384 = vpop.f32.mrf.mxu0
        %v2385 = vadd.f32 0.0, %v2384
        %v2386 = vpop.f32.mrf.mxu0
        %2387 = vdwg.mxu0
        %v2389 = vsel %vm1743, %v2240, 0
        %v2392 = vsel %vm1747, %v2246, 0
        %2394 = vmatprep.subr.bf16.mxu0 0
        %2395 = vmatpush1.bf16.msra.mxu0 0
        %2396 = vmatprep.subr.bf16.mxu0 0
        %2397 = vmatpush1.bf16.msra.mxu0 0
        %2398 = vmatprep.subr.bf16.mxu0 0
        %2399 = vmatpush1.bf16.msra.mxu0 0
        %2400 = vmatprep.subr.bf16.mxu0 0
        %2401 = vmatpush1.bf16.msra.mxu0 0
        %2402 = vmatprep.subr.bf16.mxu0 0
        %2403 = vmatpush1.bf16.msra.mxu0 0
        %2404 = vmatprep.subr.bf16.mxu0 0
        %2405 = vmatpush1.bf16.msra.mxu0 0
        %2406 = vmatprep.subr.bf16.mxu0 0
        %2407 = vmatpush1.bf16.msra.mxu0 0
        %2408 = vmatprep.subr.bf16.mxu0 0
        %2409 = vmatpush1.bf16.msra.mxu0 %v2392
        %2410 = vmatprep.subr.bf16.mxu0 0
        %2411 = vmatpush2.bf16.msra.mxu0 0
        %2412 = vmatprep.subr.bf16.mxu0 0
        %2413 = vmatpush2.bf16.msra.mxu0 0
        %2414 = vmatprep.subr.bf16.mxu0 0
        %2415 = vmatpush2.bf16.msra.mxu0 0
        %2416 = vmatprep.subr.bf16.mxu0 0
        %2417 = vmatpush2.bf16.msra.mxu0 0
        %2418 = vmatprep.subr.bf16.mxu0 0
        %2419 = vmatpush2.bf16.msra.mxu0 0
        %2420 = vmatprep.subr.bf16.mxu0 0
        %2421 = vmatpush2.bf16.msra.mxu0 0
        %2422 = vmatprep.subr.bf16.mxu0 0
        %2423 = vmatpush2.bf16.msra.mxu0 0
        %2424 = vmatprep.subr.bf16.mxu0 0
        %2425 = vmatpush2.bf16.msra.mxu0 0
        %2426 = vmatprep.mubr.bf16.mxu0 0
        %2427 = vmatmul.mubr.bf16.gmra.mxu0 %v2389
        %v2428 = vpop.f32.mrf.mxu0
        %v2429 = vadd.f32 0.0, %v2428
        %v2430 = vpop.f32.mrf.mxu0
        %v2431 = vpop.f32.mrf.mxu0
        %v2432 = vadd.f32 0.0, %v2431
        %v2433 = vpop.f32.mrf.mxu0
        %2434 = vdwg.mxu0
        %v2435 = vsel %vm1392, %v2288, 0.0
        %v2436 = vsel %vm1392, %v2335, 0.0
        %v2437 = vadd.f32 %v2435, %v2436
        %v2438 = vsel %vm1392, %v2382, 0.0
        %v2439 = vadd.f32 %v2437, %v2438
        %v2440 = vsel %vm1392, %v2429, 0.0
        %v2441 = vadd.f32 %v2439, %v2440
        %v2442 = vsel %vm1392, %v2291, 0.0
        %v2443 = vsel %vm1392, %v2338, 0.0
        %v2444 = vadd.f32 %v2442, %v2443
        %v2445 = vsel %vm1392, %v2385, 0.0
        %v2446 = vadd.f32 %v2444, %v2445
        %v2447 = vsel %vm1392, %v2432, 0.0
        %v2448 = vadd.f32 %v2446, %v2447
        %p2449 = scmp.eq.s32.totalorder %s38, 0
        // Predicated region
        $region85: #{tpu_custom_call.1} parent=55 // pred_check
          %p2450 = pneg %p2449
        $region86: #{tpu_custom_call.1} parent=55 // pred_check_branch
          %2452 = sbr.rel (%p2450) target = $region88
        $region87: #{tpu_custom_call.1} parent=55 // pred_region
          %2453 = vst.msk [vmem:[#allocation4] sm:$0xff] %vm1392, 0.0
          %2454 = vst.msk [vmem:[#allocation4 + $0x8] sm:$0xff] %vm1392, 0.0
        $region88: #{tpu_custom_call.1} parent=55 // pred_fallthru
          _
        %v2455 = vld [vmem:[#allocation4] sm:$0xff]
        %v2456 = vld [vmem:[#allocation4 + $0x8] sm:$0xff]
        %v2457 = vadd.f32 %v2455, %v2441
        %v2458 = vadd.f32 %v2456, %v2448
        %2459 = vst.msk [vmem:[#allocation4] sm:$0xff] %vm1392, %v2457
        %2460 = vst.msk [vmem:[#allocation4 + $0x8] sm:$0xff] %vm1392, %v2458
        // Predicated region
        $region89: #{tpu_custom_call.1} parent=55 // pred_check
          %p2461 = pneg %p2449
        $region90: #{tpu_custom_call.1} parent=55 // pred_check_branch
          %2463 = sbr.rel (%p2461) target = $region92
        $region91: #{tpu_custom_call.1} parent=55 // pred_region
          %v2464 = vld [vmem:[#allocation4] sm:$0xff]
          %v2465 = vld [vmem:[#allocation4 + $0x8] sm:$0xff]
          %v2466 = vld [vmem:[%s8] sm:$0x1]
          %v2468 = vlaneseq
          %v2469 = vshrl.u32 %v2468, 7
          %v2470 = vsub.s32 0, %v2469
          %v2471 = vrot.slane %v2466, %v2470
          %v2473 = vadd.f32 %v2464, %v2471
          %v2474 = vadd.f32 %v2465, %v2471
          %2475 = vst.msk [vmem:[%s500] sm:$0xff] %vm1392, %v2473
          %2476 = vst.msk [vmem:[%s500 + $0x8] sm:$0xff] %vm1392, %v2474
        $region92: #{tpu_custom_call.1} parent=55 // pred_fallthru
          _
        %s2477 = sand.u32 %s268, 1
        %s2478 = scalar_lea.sflag [#allocation7], %s2477
        %s2479 = sand.u32 %s268, 1
        %s2480 = smul.addr %s2479, 16
        %s2481 = scalar_lea.vmem [#allocation16], %s2480
        // Predicated region
        $region93: #{tpu_custom_call.1} parent=55 // pred_check
          %p2482 = pneg %p278
        $region94: #{tpu_custom_call.1} parent=55 // pred_check_branch
          %2484 = sbr.rel (%p2482) target = $region96
        $region95: #{tpu_custom_call.1} parent=55 // pred_region
          %s2485 = smul.u32 2, %s37
          %s2487 = ssub.s32 256, 256
          %2488 = vsyncadd %s2478, %s2487
          %s2489 = smul.addr %s36, 2
          %s2490 = sadd.s32 %s2485, %s2489
          %s2491 = smul.addr %s2490, 128
          %s2492 = scalar_lea.hbm %s9, %s2491
          %s2493 = sshll.u32 %s2481, 4
          %s2494 = int_to_ptr.vmem [resolvable:$true] %s2493
          %2499 = dma.vmem_to_hbm [thread:$0]  %s2494, 256, %s2492, %s2478, 128, 128, 8
        $region96: #{tpu_custom_call.1} parent=55 // pred_fallthru
          _
      $region56: #{tpu_custom_call.1} parent=5 // pred_fallthru
        _
      %p2500 = scmp.le.s32.totalorder 2, %s26
      // Predicated region
      $region97: #{tpu_custom_call.1} parent=5 // pred_check
        %p2501 = pneg %p2500
      $region98: #{tpu_custom_call.1} parent=5 // pred_check_branch
        %2503 = sbr.rel (%p2501) target = $region100
      $region99: #{tpu_custom_call.1} parent=5 // pred_region
        %s2504 = ssub.s32 %s26, 2
        // Predicated region
        $region101: #{tpu_custom_call.1} parent=99 // pred_check
          %p2505 = pneg %p284
        $region102: #{tpu_custom_call.1} parent=99 // pred_check_branch
          %2507 = sbr.rel (%p2505) target = $region104
        $region103: #{tpu_custom_call.1} parent=99 // pred_region
          %s2508 = sand.u32 %s269, 1
          %s2509 = scalar_lea.sflag [#allocation7], %s2508
          %s2510 = sand.u32 %s269, 1
          %s2511 = smul.addr %s2510, 16
          %s2512 = scalar_lea.vmem [#allocation16], %s2511
          %2513 = dma.done %s2509, 256
        $region104: #{tpu_custom_call.1} parent=99 // pred_fallthru
          _
      $region100: #{tpu_custom_call.1} parent=5 // pred_fallthru
        _
    $region6: #{tpu_custom_call.1} parent=1 // loop_footer
      %s30 = sadd.s32 1, %s26
    $region7: #{tpu_custom_call.1} parent=1 // loop_footer_branch
      %25 = sbr.rel target = $region3
    $region8: #{tpu_custom_call.1} parent=1 // loop_exit
      _
    %2514 = vsyncpa [#allocation6], 1
    %s2515 = scalar_lea.sflag [#allocation6], 1
    %2516 = vsyncpa %s2515, 1
    %2517 = vsyncpa [#allocation9], 1
    %s2518 = scalar_lea.sflag [#allocation9], 1
    %2519 = vsyncpa %s2518, 1
    %2520 = vsyncpa [#allocation12], 1
    %2521 = vsyncpa [#allocation15], 1
    %2522 = vsyncpa [#allocation7], 1
    %s2523 = scalar_lea.sflag [#allocation7], 1
    %2524 = vsyncpa %s2523, 1

</llo_original>
